<compile_context>
chip_gen: v7x
topology: tpu7x:2x2x1
jax: 0.10.0
libtpu: 0.0.40
codegen_flags: <defaults>
</compile_context>

<pallas_src>
import functools

import jax
import jax.numpy as jnp
from jax.experimental import pallas as pl
from jax.experimental.pallas import tpu as pltpu


def _vmem_limit_bytes():
    # Per-generation scoped-VMEM budget (128 MiB physical on v5e/v6e, 64 MiB
    # on v7x); clamp well below physical — this model needs < 1 MiB anyway.
    try:
        cap = pltpu.get_tpu_info().vmem_capacity_bytes
        return int(min(cap * 3 // 4, 64 * 1024 * 1024))
    except Exception:
        return 32 * 1024 * 1024


_VMEM_LIMIT = _vmem_limit_bytes()
_VMEM_SPEC = pl.BlockSpec(memory_space=pltpu.MemorySpace.VMEM)


# ------------------------------ in-kernel math ------------------------------ #

def _layernorm(y, g, b, eps):
    mu = jnp.mean(y, axis=-1, keepdims=True)
    yc = y - mu
    var = jnp.mean(yc * yc, axis=-1, keepdims=True)
    return yc * jax.lax.rsqrt(var + eps) * g + b


def _erf_gelu(x):
    # erf-form GELU (matches HF BERT, unlike tanh-approx GELU), computed with
    # the Abramowitz-Stegun 7.1.26 polynomial (|err| < 1.5e-7) so only
    # exp / mul / add / where are needed inside the kernel.
    z = x * 0.7071067811865476
    a = jnp.abs(z)
    t = 1.0 / (1.0 + 0.3275911 * a)
    poly = t * (0.254829592 + t * (-0.284496736 + t * (1.421413741
              + t * (-1.453152027 + t * 1.061405429))))
    erf_abs = 1.0 - poly * jnp.exp(-a * a)
    erf = jnp.where(z >= 0.0, erf_abs, -erf_abs)
    return 0.5 * x * (1.0 + erf)


# ------------------------- fused whole-network kernel ----------------------- #

def _cross_encoder_kernel(x_ref, mask_ref, emb_g_ref, emb_b_ref,
                          wqkv_ref, bqkv_ref, wao_ref, bao_ref,
                          ln1_g_ref, ln1_b_ref, w1_ref, b1_ref,
                          w2_ref, b2_ref, ln2_g_ref, ln2_b_ref,
                          wpool_ref, bpool_ref, wcls_ref, bcls_ref,
                          logits_ref, *, n_layers, n_heads, head_dim, scale,
                          eps):
    H = n_heads * head_dim

    x = x_ref[0]                       # (S, H) f32: summed embeddings
    mask = mask_ref[0]                 # (1, S) additive key mask

    # Embedding LayerNorm.
    x = _layernorm(x, emb_g_ref[...], emb_b_ref[...], eps)

    for l in range(n_layers):          # static unroll; weights VMEM-resident
        # ---------------- attention: one fused QKV projection ---------------
        qkv = jnp.dot(x.astype(jnp.bfloat16), wqkv_ref[l],
                      preferred_element_type=jnp.float32) + bqkv_ref[l]

        ctx_heads = []
        for h in range(n_heads):       # static 2-D lane slices, no 3-D relayout
            q_h = qkv[:, h * head_dim:(h + 1) * head_dim].astype(jnp.bfloat16)
            k_h = qkv[:, H + h * head_dim:
                        H + (h + 1) * head_dim].astype(jnp.bfloat16)
            v_h = qkv[:, 2 * H + h * head_dim:
                        2 * H + (h + 1) * head_dim].astype(jnp.bfloat16)
            # q @ k^T expressed via contracting dims (trans_b) — no
            # materialized transpose of k.
            s = jax.lax.dot_general(q_h, k_h, (((1,), (1,)), ((), ())),
                                    preferred_element_type=jnp.float32)
            s = s * scale + mask
            s = s - jnp.max(s, axis=-1, keepdims=True)
            p = jnp.exp(s)
            p = p / jnp.sum(p, axis=-1, keepdims=True)     # exact softmax
            ctx_heads.append(jnp.dot(p.astype(jnp.bfloat16), v_h,
                                     preferred_element_type=jnp.float32))
        ctx = jnp.concatenate(ctx_heads, axis=-1)          # (S, H) merge heads

        attn = jnp.dot(ctx.astype(jnp.bfloat16), wao_ref[l],
                       preferred_element_type=jnp.float32) + bao_ref[l]
        x = _layernorm(x + attn, ln1_g_ref[l], ln1_b_ref[l], eps)

        # ------------------------------ FFN ---------------------------------
        hmid = jnp.dot(x.astype(jnp.bfloat16), w1_ref[l],
                       preferred_element_type=jnp.float32) + b1_ref[l]
        hmid = _erf_gelu(hmid)
        y = jnp.dot(hmid.astype(jnp.bfloat16), w2_ref[l],
                    preferred_element_type=jnp.float32) + b2_ref[l]
        x = _layernorm(x + y, ln2_g_ref[l], ln2_b_ref[l], eps)

    # ---------------- pooler (tanh on CLS) + regression head ----------------
    cls = x[0:1, :]                                        # (1, H)
    pooled = jnp.tanh(jnp.dot(cls.astype(jnp.bfloat16), wpool_ref[...],
                              preferred_element_type=jnp.float32)
                      + bpool_ref[...])
    logit = (jnp.sum(pooled * wcls_ref[...], axis=-1, keepdims=True)
             + bcls_ref[...])                              # (1, 1)
    logits_ref[...] = logit.reshape(1, 1, 1)


def pallas_cross_encoder(emb, add_mask, params, cfg):
    B, S, H = emb.shape
    L, nH, I = cfg.layers, cfg.heads, cfg.intermediate
    Dh = H // nH

    kernel = functools.partial(
        _cross_encoder_kernel, n_layers=L, n_heads=nH, head_dim=Dh,
        scale=1.0 / (Dh ** 0.5), eps=1e-12)

    def rep(shape):
        # Full-array block with a constant index_map: fetched once per core,
        # stays VMEM-resident across grid steps.
        nd = len(shape)
        return pl.BlockSpec(shape, lambda b: (0,) * nd)

    return pl.pallas_call(
        kernel,
        out_shape=jax.ShapeDtypeStruct((B, 1, 1), jnp.float32),
        grid=(B,),
        in_specs=[
            pl.BlockSpec((1, S, H), lambda b: (b, 0, 0)),  # summed embeddings
            pl.BlockSpec((1, 1, S), lambda b: (b, 0, 0)),  # additive mask
            rep((1, H)), rep((1, H)),                      # embedding LN
            rep((L, H, 3 * H)), rep((L, 1, 3 * H)),        # fused QKV
            rep((L, H, H)), rep((L, 1, H)),                # attention output
            rep((L, 1, H)), rep((L, 1, H)),                # LN1
            rep((L, H, I)), rep((L, 1, I)),                # FFN in
            rep((L, I, H)), rep((L, 1, H)),                # FFN out
            rep((L, 1, H)), rep((L, 1, H)),                # LN2
            rep((H, H)), rep((1, H)),                      # pooler
            rep((1, H)), rep((1, 1)),                      # classifier
        ],
        out_specs=pl.BlockSpec((1, 1, 1), lambda b: (b, 0, 0)),
        compiler_params=pltpu.CompilerParams(
            dimension_semantics=("parallel",),             # v7x: 1 batch/core
            vmem_limit_bytes=_VMEM_LIMIT),
    )(emb, add_mask,
      params["emb_ln_g"], params["emb_ln_b"],
      params["Wqkv"], params["bqkv"], params["Wao"], params["bao"],
      params["ln1_g"], params["ln1_b"], params["W1"], params["b1"],
      params["W2"], params["b2"], params["ln2_g"], params["ln2_b"],
      params["W_pool"], params["b_pool"], params["W_cls_row"], params["b_cls"])


# -------------------------------- loss kernel ------------------------------- #

def _loss_kernel(logits_ref, labels_ref, loss_ref, *, loss_kind, margin):
    lg = logits_ref[...]                                   # (1, B)
    lb = labels_ref[...]
    if loss_kind == "mse":
        e = (lg - lb) * (lg - lb)
    elif loss_kind == "mae":
        e = jnp.abs(lg - lb)
    else:  # contrastive
        e = (lb * (1.0 - lg) * (1.0 - lg)
             + (1.0 - lb) * jnp.maximum(margin - lg, 0.0) ** 2)
    loss_ref[...] = jnp.mean(e).reshape(1, 1)


def pallas_loss(logits_row, labels_row, loss_kind, margin=0.5):
    kernel = functools.partial(_loss_kernel, loss_kind=loss_kind, margin=margin)
    loss = pl.pallas_call(
        kernel,
        out_shape=jax.ShapeDtypeStruct((1, 1), jnp.float32),
        in_specs=[_VMEM_SPEC, _VMEM_SPEC],
        out_specs=_VMEM_SPEC,
        compiler_params=pltpu.CompilerParams(vmem_limit_bytes=_VMEM_LIMIT),
    )(logits_row, labels_row)
    return loss[0, 0]


# ------------------------- model config & parameters ------------------------ #

class Config:
    vocab_size = 100
    max_position = 16
    type_vocab = 2
    hidden = 32
    heads = 4
    layers = 2
    intermediate = 64


def init_params(key, cfg):
    """Weights stored pre-fused / stacked / bf16-cast once (review item 2)."""
    def nrm(k, shape):
        return 0.02 * jax.random.normal(k, shape, jnp.float32)

    H, I, L = cfg.hidden, cfg.intermediate, cfg.layers
    keys = iter(jax.random.split(key, 32))
    return {
        "word_emb": nrm(next(keys), (cfg.vocab_size, H)),
        "pos_emb": nrm(next(keys), (cfg.max_position, H)),
        "type_emb": nrm(next(keys), (cfg.type_vocab, H)),
        "emb_ln_g": jnp.ones((1, H), jnp.float32),
        "emb_ln_b": jnp.zeros((1, H), jnp.float32),
        # Q/K/V fused into one [H, 3H] weight per layer, layers stacked on a
        # leading axis, matmul weights pre-cast to bf16 here (not per call).
        "Wqkv": nrm(next(keys), (L, H, 3 * H)).astype(jnp.bfloat16),
        "bqkv": jnp.zeros((L, 1, 3 * H), jnp.float32),
        "Wao": nrm(next(keys), (L, H, H)).astype(jnp.bfloat16),
        "bao": jnp.zeros((L, 1, H), jnp.float32),
        "ln1_g": jnp.ones((L, 1, H), jnp.float32),
        "ln1_b": jnp.zeros((L, 1, H), jnp.float32),
        "W1": nrm(next(keys), (L, H, I)).astype(jnp.bfloat16),
        "b1": jnp.zeros((L, 1, I), jnp.float32),
        "W2": nrm(next(keys), (L, I, H)).astype(jnp.bfloat16),
        "b2": jnp.zeros((L, 1, H), jnp.float32),
        "ln2_g": jnp.ones((L, 1, H), jnp.float32),
        "ln2_b": jnp.zeros((L, 1, H), jnp.float32),
        "W_pool": nrm(next(keys), (H, H)).astype(jnp.bfloat16),
        "b_pool": jnp.zeros((1, H), jnp.float32),
        "W_cls_row": nrm(next(keys), (1, H)),     # classifier weight as a row
        "b_cls": jnp.zeros((1, 1), jnp.float32),
    }


# ------------------------------- forward pass ------------------------------- #

def cross_encoder_forward(params, input_ids, attention_mask, labels=None,
                          cfg=Config, loss_fn="mse"):
    B, S = input_ids.shape

    # Embedding lookups (word + position + token_type 0) stay as one XLA
    # gather; everything downstream of the summed embeddings runs in Pallas.
    # TODO(synk): token-embedding gather left to XLA take — no worthwhile
    # Pallas gather at vocab=100 / H=32.
    pos = jnp.arange(S)
    emb = (jnp.take(params["word_emb"], input_ids, axis=0)
           + params["pos_emb"][pos][None, :, :]
           + params["type_emb"][0][None, None, :]).astype(jnp.float32)

    # HF-BERT additive key mask, (B, 1, S).
    add_mask = ((1.0 - attention_mask.astype(jnp.float32)) * -10000.0
                ).reshape(B, 1, S)

    logits_b = pallas_cross_encoder(emb, add_mask, params, cfg).reshape(B)

    loss = None
    if labels is not None:
        if loss_fn in ("mse", "mae", "contrastive"):
            loss = pallas_loss(logits_b.reshape(1, B),
                               labels.reshape(1, B).astype(jnp.float32),
                               loss_fn)
        elif loss_fn == "cosine_embedding":
            # TODO(synk): reference calls CosineEmbeddingLoss(logits, target)
            # with a missing second input — not a well-defined computation.
            raise NotImplementedError(
                "cosine_embedding loss is ill-defined in the reference module")
        else:
            raise ValueError(f"Unknown loss function: {loss_fn}")

    return {"loss": loss, "logits": jnp.squeeze(logits_b)}  # mirrors .squeeze()


# ----------------------------------- main ------------------------------------ #

if __name__ == "__main__":
    cfg = Config
    B, S = 2, 8

    key = jax.random.PRNGKey(0)
    k_param, k_ids, k_lab = jax.random.split(key, 3)

    params = init_params(k_param, cfg)
    input_ids = jax.random.randint(k_ids, (B, S), 0, cfg.vocab_size,
                                   dtype=jnp.int32)
    attention_mask = jnp.ones((B, S), jnp.int32).at[1, -2:].set(0)
    labels = jax.random.uniform(k_lab, (B,), jnp.float32)

    fwd = jax.jit(functools.partial(cross_encoder_forward, cfg=cfg,
                                    loss_fn="mse"))
    out = fwd(params, input_ids, attention_mask, labels)
    jax.block_until_ready(out["logits"])
    jax.block_until_ready(out["loss"])
    print("KERNEL_OK")
</pallas_src>

<mosaic_0001>
module attributes {stable_mosaic.version = 11 : i64} {
  func.func @_loss_kernel(%arg0: memref<1x2xf32, #tpu.memory_space<vmem>>, %arg1: memref<1x2xf32, #tpu.memory_space<vmem>>, %arg2: memref<1x1xf32, #tpu.memory_space<vmem>>) attributes {dimension_semantics = [], scalar_prefetch = 0 : i64, scratch_operands = 0 : i64, tpu.core_type = #tpu.core_type<tc>} {
    %c0 = arith.constant 0 : index
    %c0_0 = arith.constant 0 : index
    %0 = vector.load %arg0[%c0, %c0_0] : memref<1x2xf32, #tpu.memory_space<vmem>>, vector<1x2xf32>
    %c0_1 = arith.constant 0 : index
    %c0_2 = arith.constant 0 : index
    %1 = vector.load %arg1[%c0_1, %c0_2] : memref<1x2xf32, #tpu.memory_space<vmem>>, vector<1x2xf32>
    %2 = arith.subf %0, %1 : vector<1x2xf32>
    %3 = arith.subf %0, %1 : vector<1x2xf32>
    %4 = arith.mulf %2, %3 : vector<1x2xf32>
    %5 = vector.shape_cast %4 : vector<1x2xf32> to vector<1x1x2xf32>
    %cst = arith.constant dense<0.000000e+00> : vector<1xf32>
    %6 = vector.multi_reduction <add>, %5, %cst [1, 2] : vector<1x1x2xf32> to vector<1xf32>
    %7 = vector.shape_cast %6 : vector<1xf32> to vector<1x1x1xf32>
    %8 = vector.extract %7[0, 0, 0] : f32 from vector<1x1x1xf32>
    %cst_3 = arith.constant 2.000000e+00 : f32
    %9 = arith.divf %8, %cst_3 : f32
    %10 = vector.broadcast %9 : f32 to vector<1x1xf32>
    %c0_4 = arith.constant 0 : index
    %c0_5 = arith.constant 0 : index
    %11 = vector.load %arg2[%c0_4, %c0_5] : memref<1x1xf32, #tpu.memory_space<vmem>>, vector<1x1xf32>
    tpu.vector_store %arg2[%c0_4, %c0_5], %10 {strides = array<i32>} : memref<1x1xf32, #tpu.memory_space<vmem>>, vector<1x1xf32>,
    return
  }
}

module attributes {stable_mosaic.version = 11 : i64} {
  func.func @_cross_encoder_kernel(%arg0: i32, %arg1: memref<1x8x32xf32, #tpu.memory_space<vmem>>, %arg2: memref<1x1x8xf32, #tpu.memory_space<vmem>>, %arg3: memref<1x32xf32, #tpu.memory_space<vmem>>, %arg4: memref<1x32xf32, #tpu.memory_space<vmem>>, %arg5: memref<2x32x96xbf16, #tpu.memory_space<vmem>>, %arg6: memref<2x1x96xf32, #tpu.memory_space<vmem>>, %arg7: memref<2x32x32xbf16, #tpu.memory_space<vmem>>, %arg8: memref<2x1x32xf32, #tpu.memory_space<vmem>>, %arg9: memref<2x1x32xf32, #tpu.memory_space<vmem>>, %arg10: memref<2x1x32xf32, #tpu.memory_space<vmem>>, %arg11: memref<2x32x64xbf16, #tpu.memory_space<vmem>>, %arg12: memref<2x1x64xf32, #tpu.memory_space<vmem>>, %arg13: memref<2x64x32xbf16, #tpu.memory_space<vmem>>, %arg14: memref<2x1x32xf32, #tpu.memory_space<vmem>>, %arg15: memref<2x1x32xf32, #tpu.memory_space<vmem>>, %arg16: memref<2x1x32xf32, #tpu.memory_space<vmem>>, %arg17: memref<32x32xbf16, #tpu.memory_space<vmem>>, %arg18: memref<1x32xf32, #tpu.memory_space<vmem>>, %arg19: memref<1x32xf32, #tpu.memory_space<vmem>>, %arg20: memref<1x1xf32, #tpu.memory_space<vmem>>, %arg21: memref<1x1x1xf32, #tpu.memory_space<vmem>>) attributes {dimension_semantics = [#tpu.dimension_semantics<parallel>], iteration_bounds = array<i64: 2>, scalar_prefetch = 0 : i64, scratch_operands = 0 : i64, tpu.core_type = #tpu.core_type<tc>, window_params = [{transform_indices = @transform_0, window_bounds = array<i64: 1, 8, 32>}, {transform_indices = @transform_1, window_bounds = array<i64: 1, 1, 8>}, {pipeline_mode = #tpu.pipeline_mode<synchronous>, transform_indices = @transform_2, window_bounds = array<i64: 1, 32>}, {pipeline_mode = #tpu.pipeline_mode<synchronous>, transform_indices = @transform_3, window_bounds = array<i64: 1, 32>}, {pipeline_mode = #tpu.pipeline_mode<synchronous>, transform_indices = @transform_4, window_bounds = array<i64: 2, 32, 96>}, {pipeline_mode = #tpu.pipeline_mode<synchronous>, transform_indices = @transform_5, window_bounds = array<i64: 2, 1, 96>}, {pipeline_mode = #tpu.pipeline_mode<synchronous>, transform_indices = @transform_6, window_bounds = array<i64: 2, 32, 32>}, {pipeline_mode = #tpu.pipeline_mode<synchronous>, transform_indices = @transform_7, window_bounds = array<i64: 2, 1, 32>}, {pipeline_mode = #tpu.pipeline_mode<synchronous>, transform_indices = @transform_8, window_bounds = array<i64: 2, 1, 32>}, {pipeline_mode = #tpu.pipeline_mode<synchronous>, transform_indices = @transform_9, window_bounds = array<i64: 2, 1, 32>}, {pipeline_mode = #tpu.pipeline_mode<synchronous>, transform_indices = @transform_10, window_bounds = array<i64: 2, 32, 64>}, {pipeline_mode = #tpu.pipeline_mode<synchronous>, transform_indices = @transform_11, window_bounds = array<i64: 2, 1, 64>}, {pipeline_mode = #tpu.pipeline_mode<synchronous>, transform_indices = @transform_12, window_bounds = array<i64: 2, 64, 32>}, {pipeline_mode = #tpu.pipeline_mode<synchronous>, transform_indices = @transform_13, window_bounds = array<i64: 2, 1, 32>}, {pipeline_mode = #tpu.pipeline_mode<synchronous>, transform_indices = @transform_14, window_bounds = array<i64: 2, 1, 32>}, {pipeline_mode = #tpu.pipeline_mode<synchronous>, transform_indices = @transform_15, window_bounds = array<i64: 2, 1, 32>}, {pipeline_mode = #tpu.pipeline_mode<synchronous>, transform_indices = @transform_16, window_bounds = array<i64: 32, 32>}, {pipeline_mode = #tpu.pipeline_mode<synchronous>, transform_indices = @transform_17, window_bounds = array<i64: 1, 32>}, {pipeline_mode = #tpu.pipeline_mode<synchronous>, transform_indices = @transform_18, window_bounds = array<i64: 1, 32>}, {pipeline_mode = #tpu.pipeline_mode<synchronous>, transform_indices = @transform_19, window_bounds = array<i64: 1, 1>}, {transform_indices = @transform_20, window_bounds = array<i64: 1, 1, 1>}]} {
    %c0 = arith.constant 0 : index
    %c0_0 = arith.constant 0 : index
    %c0_1 = arith.constant 0 : index
    %0 = vector.load %arg1[%c0, %c0_0, %c0_1] : memref<1x8x32xf32, #tpu.memory_space<vmem>>, vector<1x8x32xf32>
    %1 = vector.shape_cast %0 : vector<1x8x32xf32> to vector<8x32xf32>
    %c0_2 = arith.constant 0 : index
    %c0_3 = arith.constant 0 : index
    %c0_4 = arith.constant 0 : index
    %2 = vector.load %arg2[%c0_2, %c0_3, %c0_4] : memref<1x1x8xf32, #tpu.memory_space<vmem>>, vector<1x1x8xf32>
    %3 = vector.shape_cast %2 : vector<1x1x8xf32> to vector<1x8xf32>
    %c0_5 = arith.constant 0 : index
    %c0_6 = arith.constant 0 : index
    %4 = vector.load %arg3[%c0_5, %c0_6] : memref<1x32xf32, #tpu.memory_space<vmem>>, vector<1x32xf32>
    %c0_7 = arith.constant 0 : index
    %c0_8 = arith.constant 0 : index
    %5 = vector.load %arg4[%c0_7, %c0_8] : memref<1x32xf32, #tpu.memory_space<vmem>>, vector<1x32xf32>
    %cst = arith.constant dense<0.000000e+00> : vector<8xf32>
    %6 = vector.multi_reduction <add>, %1, %cst [1] : vector<8x32xf32> to vector<8xf32>
    %7 = vector.shape_cast %6 : vector<8xf32> to vector<8x1xf32>
    %cst_9 = arith.constant 3.200000e+01 : f32
    %8 = vector.broadcast %cst_9 : f32 to vector<8x1xf32>
    %9 = arith.divf %7, %8 : vector<8x1xf32>
    %10 = vector.broadcast %9 : vector<8x1xf32> to vector<8x32xf32>
    %11 = arith.subf %1, %10 : vector<8x32xf32>
    %12 = arith.mulf %11, %11 : vector<8x32xf32>
    %cst_10 = arith.constant dense<0.000000e+00> : vector<8xf32>
    %13 = vector.multi_reduction <add>, %12, %cst_10 [1] : vector<8x32xf32> to vector<8xf32>
    %14 = vector.shape_cast %13 : vector<8xf32> to vector<8x1xf32>
    %cst_11 = arith.constant 3.200000e+01 : f32
    %15 = vector.broadcast %cst_11 : f32 to vector<8x1xf32>
    %16 = arith.divf %14, %15 : vector<8x1xf32>
    %cst_12 = arith.constant 9.99999996E-13 : f32
    %17 = vector.broadcast %cst_12 : f32 to vector<8x1xf32>
    %18 = arith.addf %16, %17 : vector<8x1xf32>
    %19 = math.rsqrt %18 : vector<8x1xf32>
    %20 = vector.broadcast %19 : vector<8x1xf32> to vector<8x32xf32>
    %21 = arith.mulf %11, %20 : vector<8x32xf32>
    %22 = vector.broadcast %4 : vector<1x32xf32> to vector<8x32xf32>
    %23 = arith.mulf %21, %22 : vector<8x32xf32>
    %24 = vector.broadcast %5 : vector<1x32xf32> to vector<8x32xf32>
    %25 = arith.addf %23, %24 : vector<8x32xf32>
    %26 = arith.truncf %25 : vector<8x32xf32> to vector<8x32xbf16>
    %c0_13 = arith.constant 0 : index
    %c0_14 = arith.constant 0 : index
    %c0_15 = arith.constant 0 : index
    %27 = vector.load %arg5[%c0_13, %c0_14, %c0_15] : memref<2x32x96xbf16, #tpu.memory_space<vmem>>, vector<1x32x96xbf16>
    %28 = vector.shape_cast %27 : vector<1x32x96xbf16> to vector<32x96xbf16>
    %cst_16 = arith.constant dense<0.000000e+00> : vector<8x96xf32>
    %29 = tpu.matmul %26, %28, %cst_16 {dimension_numbers = #tpu.dot_dimension_numbers<[1], [0], [0], [1], [0, 0, 1, 1], [], []>} : vector<8x32xbf16>, vector<32x96xbf16>, vector<8x96xf32> -> vector<8x96xf32>
    %c0_17 = arith.constant 0 : index
    %c0_18 = arith.constant 0 : index
    %c0_19 = arith.constant 0 : index
    %30 = vector.load %arg6[%c0_17, %c0_18, %c0_19] : memref<2x1x96xf32, #tpu.memory_space<vmem>>, vector<1x1x96xf32>
    %31 = vector.shape_cast %30 : vector<1x1x96xf32> to vector<1x96xf32>
    %32 = vector.broadcast %31 : vector<1x96xf32> to vector<8x96xf32>
    %33 = arith.addf %29, %32 : vector<8x96xf32>
    %34 = vector.extract_strided_slice %33 {offsets = [0, 0], sizes = [8, 8], strides = [1, 1]} : vector<8x96xf32> to vector<8x8xf32>
    %35 = arith.truncf %34 : vector<8x8xf32> to vector<8x8xbf16>
    %36 = vector.extract_strided_slice %33 {offsets = [0, 32], sizes = [8, 8], strides = [1, 1]} : vector<8x96xf32> to vector<8x8xf32>
    %37 = arith.truncf %36 : vector<8x8xf32> to vector<8x8xbf16>
    %38 = vector.extract_strided_slice %33 {offsets = [0, 64], sizes = [8, 8], strides = [1, 1]} : vector<8x96xf32> to vector<8x8xf32>
    %39 = arith.truncf %38 : vector<8x8xf32> to vector<8x8xbf16>
    %cst_20 = arith.constant dense<0.000000e+00> : vector<8x8xf32>
    %40 = tpu.matmul %35, %37, %cst_20 {dimension_numbers = #tpu.dot_dimension_numbers<[1], [1], [0], [0], [0, 0, 1, 0], [], []>} : vector<8x8xbf16>, vector<8x8xbf16>, vector<8x8xf32> -> vector<8x8xf32>
    %cst_21 = arith.constant 0.353553385 : f32
    %41 = vector.broadcast %cst_21 : f32 to vector<8x8xf32>
    %42 = arith.mulf %40, %41 : vector<8x8xf32>
    %43 = vector.broadcast %3 : vector<1x8xf32> to vector<8x8xf32>
    %44 = arith.addf %42, %43 : vector<8x8xf32>
    %cst_22 = arith.constant dense<0xFF800000> : vector<8xf32>
    %45 = vector.multi_reduction <maximumf>, %44, %cst_22 [1] : vector<8x8xf32> to vector<8xf32>
    %46 = vector.shape_cast %45 : vector<8xf32> to vector<8x1xf32>
    %47 = vector.broadcast %46 : vector<8x1xf32> to vector<8x8xf32>
    %48 = arith.subf %44, %47 : vector<8x8xf32>
    %49 = math.exp %48 : vector<8x8xf32>
    %cst_23 = arith.constant dense<0.000000e+00> : vector<8xf32>
    %50 = vector.multi_reduction <add>, %49, %cst_23 [1] : vector<8x8xf32> to vector<8xf32>
    %51 = vector.shape_cast %50 : vector<8xf32> to vector<8x1xf32>
    %52 = vector.broadcast %51 : vector<8x1xf32> to vector<8x8xf32>
    %53 = arith.divf %49, %52 : vector<8x8xf32>
    %54 = arith.truncf %53 : vector<8x8xf32> to vector<8x8xbf16>
    %cst_24 = arith.constant dense<0.000000e+00> : vector<8x8xf32>
    %55 = tpu.matmul %54, %39, %cst_24 {dimension_numbers = #tpu.dot_dimension_numbers<[1], [0], [0], [1], [0, 0, 1, 1], [], []>} : vector<8x8xbf16>, vector<8x8xbf16>, vector<8x8xf32> -> vector<8x8xf32>
    %56 = vector.extract_strided_slice %33 {offsets = [0, 8], sizes = [8, 8], strides = [1, 1]} : vector<8x96xf32> to vector<8x8xf32>
    %57 = arith.truncf %56 : vector<8x8xf32> to vector<8x8xbf16>
    %58 = vector.extract_strided_slice %33 {offsets = [0, 40], sizes = [8, 8], strides = [1, 1]} : vector<8x96xf32> to vector<8x8xf32>
    %59 = arith.truncf %58 : vector<8x8xf32> to vector<8x8xbf16>
    %60 = vector.extract_strided_slice %33 {offsets = [0, 72], sizes = [8, 8], strides = [1, 1]} : vector<8x96xf32> to vector<8x8xf32>
    %61 = arith.truncf %60 : vector<8x8xf32> to vector<8x8xbf16>
    %cst_25 = arith.constant dense<0.000000e+00> : vector<8x8xf32>
    %62 = tpu.matmul %57, %59, %cst_25 {dimension_numbers = #tpu.dot_dimension_numbers<[1], [1], [0], [0], [0, 0, 1, 0], [], []>} : vector<8x8xbf16>, vector<8x8xbf16>, vector<8x8xf32> -> vector<8x8xf32>
    %cst_26 = arith.constant 0.353553385 : f32
    %63 = vector.broadcast %cst_26 : f32 to vector<8x8xf32>
    %64 = arith.mulf %62, %63 : vector<8x8xf32>
    %65 = vector.broadcast %3 : vector<1x8xf32> to vector<8x8xf32>
    %66 = arith.addf %64, %65 : vector<8x8xf32>
    %cst_27 = arith.constant dense<0xFF800000> : vector<8xf32>
    %67 = vector.multi_reduction <maximumf>, %66, %cst_27 [1] : vector<8x8xf32> to vector<8xf32>
    %68 = vector.shape_cast %67 : vector<8xf32> to vector<8x1xf32>
    %69 = vector.broadcast %68 : vector<8x1xf32> to vector<8x8xf32>
    %70 = arith.subf %66, %69 : vector<8x8xf32>
    %71 = math.exp %70 : vector<8x8xf32>
    %cst_28 = arith.constant dense<0.000000e+00> : vector<8xf32>
    %72 = vector.multi_reduction <add>, %71, %cst_28 [1] : vector<8x8xf32> to vector<8xf32>
    %73 = vector.shape_cast %72 : vector<8xf32> to vector<8x1xf32>
    %74 = vector.broadcast %73 : vector<8x1xf32> to vector<8x8xf32>
    %75 = arith.divf %71, %74 : vector<8x8xf32>
    %76 = arith.truncf %75 : vector<8x8xf32> to vector<8x8xbf16>
    %cst_29 = arith.constant dense<0.000000e+00> : vector<8x8xf32>
    %77 = tpu.matmul %76, %61, %cst_29 {dimension_numbers = #tpu.dot_dimension_numbers<[1], [0], [0], [1], [0, 0, 1, 1], [], []>} : vector<8x8xbf16>, vector<8x8xbf16>, vector<8x8xf32> -> vector<8x8xf32>
    %78 = vector.extract_strided_slice %33 {offsets = [0, 16], sizes = [8, 8], strides = [1, 1]} : vector<8x96xf32> to vector<8x8xf32>
    %79 = arith.truncf %78 : vector<8x8xf32> to vector<8x8xbf16>
    %80 = vector.extract_strided_slice %33 {offsets = [0, 48], sizes = [8, 8], strides = [1, 1]} : vector<8x96xf32> to vector<8x8xf32>
    %81 = arith.truncf %80 : vector<8x8xf32> to vector<8x8xbf16>
    %82 = vector.extract_strided_slice %33 {offsets = [0, 80], sizes = [8, 8], strides = [1, 1]} : vector<8x96xf32> to vector<8x8xf32>
    %83 = arith.truncf %82 : vector<8x8xf32> to vector<8x8xbf16>
    %cst_30 = arith.constant dense<0.000000e+00> : vector<8x8xf32>
    %84 = tpu.matmul %79, %81, %cst_30 {dimension_numbers = #tpu.dot_dimension_numbers<[1], [1], [0], [0], [0, 0, 1, 0], [], []>} : vector<8x8xbf16>, vector<8x8xbf16>, vector<8x8xf32> -> vector<8x8xf32>
    %cst_31 = arith.constant 0.353553385 : f32
    %85 = vector.broadcast %cst_31 : f32 to vector<8x8xf32>
    %86 = arith.mulf %84, %85 : vector<8x8xf32>
    %87 = vector.broadcast %3 : vector<1x8xf32> to vector<8x8xf32>
    %88 = arith.addf %86, %87 : vector<8x8xf32>
    %cst_32 = arith.constant dense<0xFF800000> : vector<8xf32>
    %89 = vector.multi_reduction <maximumf>, %88, %cst_32 [1] : vector<8x8xf32> to vector<8xf32>
    %90 = vector.shape_cast %89 : vector<8xf32> to vector<8x1xf32>
    %91 = vector.broadcast %90 : vector<8x1xf32> to vector<8x8xf32>
    %92 = arith.subf %88, %91 : vector<8x8xf32>
    %93 = math.exp %92 : vector<8x8xf32>
    %cst_33 = arith.constant dense<0.000000e+00> : vector<8xf32>
    %94 = vector.multi_reduction <add>, %93, %cst_33 [1] : vector<8x8xf32> to vector<8xf32>
    %95 = vector.shape_cast %94 : vector<8xf32> to vector<8x1xf32>
    %96 = vector.broadcast %95 : vector<8x1xf32> to vector<8x8xf32>
    %97 = arith.divf %93, %96 : vector<8x8xf32>
    %98 = arith.truncf %97 : vector<8x8xf32> to vector<8x8xbf16>
    %cst_34 = arith.constant dense<0.000000e+00> : vector<8x8xf32>
    %99 = tpu.matmul %98, %83, %cst_34 {dimension_numbers = #tpu.dot_dimension_numbers<[1], [0], [0], [1], [0, 0, 1, 1], [], []>} : vector<8x8xbf16>, vector<8x8xbf16>, vector<8x8xf32> -> vector<8x8xf32>
    %100 = vector.extract_strided_slice %33 {offsets = [0, 24], sizes = [8, 8], strides = [1, 1]} : vector<8x96xf32> to vector<8x8xf32>
    %101 = arith.truncf %100 : vector<8x8xf32> to vector<8x8xbf16>
    %102 = vector.extract_strided_slice %33 {offsets = [0, 56], sizes = [8, 8], strides = [1, 1]} : vector<8x96xf32> to vector<8x8xf32>
    %103 = arith.truncf %102 : vector<8x8xf32> to vector<8x8xbf16>
    %104 = vector.extract_strided_slice %33 {offsets = [0, 88], sizes = [8, 8], strides = [1, 1]} : vector<8x96xf32> to vector<8x8xf32>
    %105 = arith.truncf %104 : vector<8x8xf32> to vector<8x8xbf16>
    %cst_35 = arith.constant dense<0.000000e+00> : vector<8x8xf32>
    %106 = tpu.matmul %101, %103, %cst_35 {dimension_numbers = #tpu.dot_dimension_numbers<[1], [1], [0], [0], [0, 0, 1, 0], [], []>} : vector<8x8xbf16>, vector<8x8xbf16>, vector<8x8xf32> -> vector<8x8xf32>
    %cst_36 = arith.constant 0.353553385 : f32
    %107 = vector.broadcast %cst_36 : f32 to vector<8x8xf32>
    %108 = arith.mulf %106, %107 : vector<8x8xf32>
    %109 = vector.broadcast %3 : vector<1x8xf32> to vector<8x8xf32>
    %110 = arith.addf %108, %109 : vector<8x8xf32>
    %cst_37 = arith.constant dense<0xFF800000> : vector<8xf32>
    %111 = vector.multi_reduction <maximumf>, %110, %cst_37 [1] : vector<8x8xf32> to vector<8xf32>
    %112 = vector.shape_cast %111 : vector<8xf32> to vector<8x1xf32>
    %113 = vector.broadcast %112 : vector<8x1xf32> to vector<8x8xf32>
    %114 = arith.subf %110, %113 : vector<8x8xf32>
    %115 = math.exp %114 : vector<8x8xf32>
    %cst_38 = arith.constant dense<0.000000e+00> : vector<8xf32>
    %116 = vector.multi_reduction <add>, %115, %cst_38 [1] : vector<8x8xf32> to vector<8xf32>
    %117 = vector.shape_cast %116 : vector<8xf32> to vector<8x1xf32>
    %118 = vector.broadcast %117 : vector<8x1xf32> to vector<8x8xf32>
    %119 = arith.divf %115, %118 : vector<8x8xf32>
    %120 = arith.truncf %119 : vector<8x8xf32> to vector<8x8xbf16>
    %cst_39 = arith.constant dense<0.000000e+00> : vector<8x8xf32>
    %121 = tpu.matmul %120, %105, %cst_39 {dimension_numbers = #tpu.dot_dimension_numbers<[1], [0], [0], [1], [0, 0, 1, 1], [], []>} : vector<8x8xbf16>, vector<8x8xbf16>, vector<8x8xf32> -> vector<8x8xf32>
    %122 = tpu.concatenate %55, %77, %99, %121 in 1 : vector<8x8xf32>, vector<8x8xf32>, vector<8x8xf32>, vector<8x8xf32> -> vector<8x32xf32>
    %123 = arith.truncf %122 : vector<8x32xf32> to vector<8x32xbf16>
    %c0_40 = arith.constant 0 : index
    %c0_41 = arith.constant 0 : index
    %c0_42 = arith.constant 0 : index
    %124 = vector.load %arg7[%c0_40, %c0_41, %c0_42] : memref<2x32x32xbf16, #tpu.memory_space<vmem>>, vector<1x32x32xbf16>
    %125 = vector.shape_cast %124 : vector<1x32x32xbf16> to vector<32x32xbf16>
    %cst_43 = arith.constant dense<0.000000e+00> : vector<8x32xf32>
    %126 = tpu.matmul %123, %125, %cst_43 {dimension_numbers = #tpu.dot_dimension_numbers<[1], [0], [0], [1], [0, 0, 1, 1], [], []>} : vector<8x32xbf16>, vector<32x32xbf16>, vector<8x32xf32> -> vector<8x32xf32>
    %c0_44 = arith.constant 0 : index
    %c0_45 = arith.constant 0 : index
    %c0_46 = arith.constant 0 : index
    %127 = vector.load %arg8[%c0_44, %c0_45, %c0_46] : memref<2x1x32xf32, #tpu.memory_space<vmem>>, vector<1x1x32xf32>
    %128 = vector.shape_cast %127 : vector<1x1x32xf32> to vector<1x32xf32>
    %129 = vector.broadcast %128 : vector<1x32xf32> to vector<8x32xf32>
    %130 = arith.addf %126, %129 : vector<8x32xf32>
    %131 = arith.addf %25, %130 : vector<8x32xf32>
    %c0_47 = arith.constant 0 : index
    %c0_48 = arith.constant 0 : index
    %c0_49 = arith.constant 0 : index
    %132 = vector.load %arg9[%c0_47, %c0_48, %c0_49] : memref<2x1x32xf32, #tpu.memory_space<vmem>>, vector<1x1x32xf32>
    %133 = vector.shape_cast %132 : vector<1x1x32xf32> to vector<1x32xf32>
    %c0_50 = arith.constant 0 : index
    %c0_51 = arith.constant 0 : index
    %c0_52 = arith.constant 0 : index
    %134 = vector.load %arg10[%c0_50, %c0_51, %c0_52] : memref<2x1x32xf32, #tpu.memory_space<vmem>>, vector<1x1x32xf32>
    %135 = vector.shape_cast %134 : vector<1x1x32xf32> to vector<1x32xf32>
    %cst_53 = arith.constant dense<0.000000e+00> : vector<8xf32>
    %136 = vector.multi_reduction <add>, %131, %cst_53 [1] : vector<8x32xf32> to vector<8xf32>
    %137 = vector.shape_cast %136 : vector<8xf32> to vector<8x1xf32>
    %cst_54 = arith.constant 3.200000e+01 : f32
    %138 = vector.broadcast %cst_54 : f32 to vector<8x1xf32>
    %139 = arith.divf %137, %138 : vector<8x1xf32>
    %140 = vector.broadcast %139 : vector<8x1xf32> to vector<8x32xf32>
    %141 = arith.subf %131, %140 : vector<8x32xf32>
    %142 = arith.mulf %141, %141 : vector<8x32xf32>
    %cst_55 = arith.constant dense<0.000000e+00> : vector<8xf32>
    %143 = vector.multi_reduction <add>, %142, %cst_55 [1] : vector<8x32xf32> to vector<8xf32>
    %144 = vector.shape_cast %143 : vector<8xf32> to vector<8x1xf32>
    %cst_56 = arith.constant 3.200000e+01 : f32
    %145 = vector.broadcast %cst_56 : f32 to vector<8x1xf32>
    %146 = arith.divf %144, %145 : vector<8x1xf32>
    %cst_57 = arith.constant 9.99999996E-13 : f32
    %147 = vector.broadcast %cst_57 : f32 to vector<8x1xf32>
    %148 = arith.addf %146, %147 : vector<8x1xf32>
    %149 = math.rsqrt %148 : vector<8x1xf32>
    %150 = vector.broadcast %149 : vector<8x1xf32> to vector<8x32xf32>
    %151 = arith.mulf %141, %150 : vector<8x32xf32>
    %152 = vector.broadcast %133 : vector<1x32xf32> to vector<8x32xf32>
    %153 = arith.mulf %151, %152 : vector<8x32xf32>
    %154 = vector.broadcast %135 : vector<1x32xf32> to vector<8x32xf32>
    %155 = arith.addf %153, %154 : vector<8x32xf32>
    %156 = arith.truncf %155 : vector<8x32xf32> to vector<8x32xbf16>
    %c0_58 = arith.constant 0 : index
    %c0_59 = arith.constant 0 : index
    %c0_60 = arith.constant 0 : index
    %157 = vector.load %arg11[%c0_58, %c0_59, %c0_60] : memref<2x32x64xbf16, #tpu.memory_space<vmem>>, vector<1x32x64xbf16>
    %158 = vector.shape_cast %157 : vector<1x32x64xbf16> to vector<32x64xbf16>
    %cst_61 = arith.constant dense<0.000000e+00> : vector<8x64xf32>
    %159 = tpu.matmul %156, %158, %cst_61 {dimension_numbers = #tpu.dot_dimension_numbers<[1], [0], [0], [1], [0, 0, 1, 1], [], []>} : vector<8x32xbf16>, vector<32x64xbf16>, vector<8x64xf32> -> vector<8x64xf32>
    %c0_62 = arith.constant 0 : index
    %c0_63 = arith.constant 0 : index
    %c0_64 = arith.constant 0 : index
    %160 = vector.load %arg12[%c0_62, %c0_63, %c0_64] : memref<2x1x64xf32, #tpu.memory_space<vmem>>, vector<1x1x64xf32>
    %161 = vector.shape_cast %160 : vector<1x1x64xf32> to vector<1x64xf32>
    %162 = vector.broadcast %161 : vector<1x64xf32> to vector<8x64xf32>
    %163 = arith.addf %159, %162 : vector<8x64xf32>
    %cst_65 = arith.constant 0.707106769 : f32
    %164 = vector.broadcast %cst_65 : f32 to vector<8x64xf32>
    %165 = arith.mulf %163, %164 : vector<8x64xf32>
    %166 = math.absf %165 : vector<8x64xf32>
    %cst_66 = arith.constant 0.327591091 : f32
    %167 = vector.broadcast %cst_66 : f32 to vector<8x64xf32>
    %168 = arith.mulf %167, %166 : vector<8x64xf32>
    %cst_67 = arith.constant 1.000000e+00 : f32
    %169 = vector.broadcast %cst_67 : f32 to vector<8x64xf32>
    %170 = arith.addf %169, %168 : vector<8x64xf32>
    %cst_68 = arith.constant 1.000000e+00 : f32
    %171 = vector.broadcast %cst_68 : f32 to vector<8x64xf32>
    %172 = arith.divf %171, %170 : vector<8x64xf32>
    %cst_69 = arith.constant 1.06140542 : f32
    %173 = vector.broadcast %cst_69 : f32 to vector<8x64xf32>
    %174 = arith.mulf %172, %173 : vector<8x64xf32>
    %cst_70 = arith.constant -1.45315206 : f32
    %175 = vector.broadcast %cst_70 : f32 to vector<8x64xf32>
    %176 = arith.addf %175, %174 : vector<8x64xf32>
    %177 = arith.mulf %172, %176 : vector<8x64xf32>
    %cst_71 = arith.constant 1.42141378 : f32
    %178 = vector.broadcast %cst_71 : f32 to vector<8x64xf32>
    %179 = arith.addf %178, %177 : vector<8x64xf32>
    %180 = arith.mulf %172, %179 : vector<8x64xf32>
    %cst_72 = arith.constant -0.284496725 : f32
    %181 = vector.broadcast %cst_72 : f32 to vector<8x64xf32>
    %182 = arith.addf %181, %180 : vector<8x64xf32>
    %183 = arith.mulf %172, %182 : vector<8x64xf32>
    %cst_73 = arith.constant 0.254829586 : f32
    %184 = vector.broadcast %cst_73 : f32 to vector<8x64xf32>
    %185 = arith.addf %184, %183 : vector<8x64xf32>
    %186 = arith.mulf %172, %185 : vector<8x64xf32>
    %cst_74 = arith.constant 0.000000e+00 : f32
    %187 = vector.broadcast %cst_74 : f32 to vector<8x64xf32>
    %188 = arith.subf %187, %166 : vector<8x64xf32>
    %189 = arith.mulf %188, %166 : vector<8x64xf32>
    %190 = math.exp %189 : vector<8x64xf32>
    %191 = arith.mulf %186, %190 : vector<8x64xf32>
    %cst_75 = arith.constant 1.000000e+00 : f32
    %192 = vector.broadcast %cst_75 : f32 to vector<8x64xf32>
    %193 = arith.subf %192, %191 : vector<8x64xf32>
    %cst_76 = arith.constant 0.000000e+00 : f32
    %194 = vector.broadcast %cst_76 : f32 to vector<8x64xf32>
    %195 = arith.cmpf oge, %165, %194 : vector<8x64xf32>
    %cst_77 = arith.constant 0.000000e+00 : f32
    %196 = vector.broadcast %cst_77 : f32 to vector<8x64xf32>
    %197 = arith.subf %196, %193 : vector<8x64xf32>
    %198 = arith.select %195, %193, %197 : vector<8x64xi1>, vector<8x64xf32>
    %cst_78 = arith.constant 5.000000e-01 : f32
    %199 = vector.broadcast %cst_78 : f32 to vector<8x64xf32>
    %200 = arith.mulf %199, %163 : vector<8x64xf32>
    %cst_79 = arith.constant 1.000000e+00 : f32
    %201 = vector.broadcast %cst_79 : f32 to vector<8x64xf32>
    %202 = arith.addf %201, %198 : vector<8x64xf32>
    %203 = arith.mulf %200, %202 : vector<8x64xf32>
    %204 = arith.truncf %203 : vector<8x64xf32> to vector<8x64xbf16>
    %c0_80 = arith.constant 0 : index
    %c0_81 = arith.constant 0 : index
    %c0_82 = arith.constant 0 : index
    %205 = vector.load %arg13[%c0_80, %c0_81, %c0_82] : memref<2x64x32xbf16, #tpu.memory_space<vmem>>, vector<1x64x32xbf16>
    %206 = vector.shape_cast %205 : vector<1x64x32xbf16> to vector<64x32xbf16>
    %cst_83 = arith.constant dense<0.000000e+00> : vector<8x32xf32>
    %207 = tpu.matmul %204, %206, %cst_83 {dimension_numbers = #tpu.dot_dimension_numbers<[1], [0], [0], [1], [0, 0, 1, 1], [], []>} : vector<8x64xbf16>, vector<64x32xbf16>, vector<8x32xf32> -> vector<8x32xf32>
    %c0_84 = arith.constant 0 : index
    %c0_85 = arith.constant 0 : index
    %c0_86 = arith.constant 0 : index
    %208 = vector.load %arg14[%c0_84, %c0_85, %c0_86] : memref<2x1x32xf32, #tpu.memory_space<vmem>>, vector<1x1x32xf32>
    %209 = vector.shape_cast %208 : vector<1x1x32xf32> to vector<1x32xf32>
    %210 = vector.broadcast %209 : vector<1x32xf32> to vector<8x32xf32>
    %211 = arith.addf %207, %210 : vector<8x32xf32>
    %212 = arith.addf %155, %211 : vector<8x32xf32>
    %c0_87 = arith.constant 0 : index
    %c0_88 = arith.constant 0 : index
    %c0_89 = arith.constant 0 : index
    %213 = vector.load %arg15[%c0_87, %c0_88, %c0_89] : memref<2x1x32xf32, #tpu.memory_space<vmem>>, vector<1x1x32xf32>
    %214 = vector.shape_cast %213 : vector<1x1x32xf32> to vector<1x32xf32>
    %c0_90 = arith.constant 0 : index
    %c0_91 = arith.constant 0 : index
    %c0_92 = arith.constant 0 : index
    %215 = vector.load %arg16[%c0_90, %c0_91, %c0_92] : memref<2x1x32xf32, #tpu.memory_space<vmem>>, vector<1x1x32xf32>
    %216 = vector.shape_cast %215 : vector<1x1x32xf32> to vector<1x32xf32>
    %cst_93 = arith.constant dense<0.000000e+00> : vector<8xf32>
    %217 = vector.multi_reduction <add>, %212, %cst_93 [1] : vector<8x32xf32> to vector<8xf32>
    %218 = vector.shape_cast %217 : vector<8xf32> to vector<8x1xf32>
    %cst_94 = arith.constant 3.200000e+01 : f32
    %219 = vector.broadcast %cst_94 : f32 to vector<8x1xf32>
    %220 = arith.divf %218, %219 : vector<8x1xf32>
    %221 = vector.broadcast %220 : vector<8x1xf32> to vector<8x32xf32>
    %222 = arith.subf %212, %221 : vector<8x32xf32>
    %223 = arith.mulf %222, %222 : vector<8x32xf32>
    %cst_95 = arith.constant dense<0.000000e+00> : vector<8xf32>
    %224 = vector.multi_reduction <add>, %223, %cst_95 [1] : vector<8x32xf32> to vector<8xf32>
    %225 = vector.shape_cast %224 : vector<8xf32> to vector<8x1xf32>
    %cst_96 = arith.constant 3.200000e+01 : f32
    %226 = vector.broadcast %cst_96 : f32 to vector<8x1xf32>
    %227 = arith.divf %225, %226 : vector<8x1xf32>
    %cst_97 = arith.constant 9.99999996E-13 : f32
    %228 = vector.broadcast %cst_97 : f32 to vector<8x1xf32>
    %229 = arith.addf %227, %228 : vector<8x1xf32>
    %230 = math.rsqrt %229 : vector<8x1xf32>
    %231 = vector.broadcast %230 : vector<8x1xf32> to vector<8x32xf32>
    %232 = arith.mulf %222, %231 : vector<8x32xf32>
    %233 = vector.broadcast %214 : vector<1x32xf32> to vector<8x32xf32>
    %234 = arith.mulf %232, %233 : vector<8x32xf32>
    %235 = vector.broadcast %216 : vector<1x32xf32> to vector<8x32xf32>
    %236 = arith.addf %234, %235 : vector<8x32xf32>
    %237 = arith.truncf %236 : vector<8x32xf32> to vector<8x32xbf16>
    %c1 = arith.constant 1 : index
    %c0_98 = arith.constant 0 : index
    %c0_99 = arith.constant 0 : index
    %238 = vector.load %arg5[%c1, %c0_98, %c0_99] : memref<2x32x96xbf16, #tpu.memory_space<vmem>>, vector<1x32x96xbf16>
    %239 = vector.shape_cast %238 : vector<1x32x96xbf16> to vector<32x96xbf16>
    %cst_100 = arith.constant dense<0.000000e+00> : vector<8x96xf32>
    %240 = tpu.matmul %237, %239, %cst_100 {dimension_numbers = #tpu.dot_dimension_numbers<[1], [0], [0], [1], [0, 0, 1, 1], [], []>} : vector<8x32xbf16>, vector<32x96xbf16>, vector<8x96xf32> -> vector<8x96xf32>
    %c1_101 = arith.constant 1 : index
    %c0_102 = arith.constant 0 : index
    %c0_103 = arith.constant 0 : index
    %241 = vector.load %arg6[%c1_101, %c0_102, %c0_103] : memref<2x1x96xf32, #tpu.memory_space<vmem>>, vector<1x1x96xf32>
    %242 = vector.shape_cast %241 : vector<1x1x96xf32> to vector<1x96xf32>
    %243 = vector.broadcast %242 : vector<1x96xf32> to vector<8x96xf32>
    %244 = arith.addf %240, %243 : vector<8x96xf32>
    %245 = vector.extract_strided_slice %244 {offsets = [0, 0], sizes = [8, 8], strides = [1, 1]} : vector<8x96xf32> to vector<8x8xf32>
    %246 = arith.truncf %245 : vector<8x8xf32> to vector<8x8xbf16>
    %247 = vector.extract_strided_slice %244 {offsets = [0, 32], sizes = [8, 8], strides = [1, 1]} : vector<8x96xf32> to vector<8x8xf32>
    %248 = arith.truncf %247 : vector<8x8xf32> to vector<8x8xbf16>
    %249 = vector.extract_strided_slice %244 {offsets = [0, 64], sizes = [8, 8], strides = [1, 1]} : vector<8x96xf32> to vector<8x8xf32>
    %250 = arith.truncf %249 : vector<8x8xf32> to vector<8x8xbf16>
    %cst_104 = arith.constant dense<0.000000e+00> : vector<8x8xf32>
    %251 = tpu.matmul %246, %248, %cst_104 {dimension_numbers = #tpu.dot_dimension_numbers<[1], [1], [0], [0], [0, 0, 1, 0], [], []>} : vector<8x8xbf16>, vector<8x8xbf16>, vector<8x8xf32> -> vector<8x8xf32>
    %cst_105 = arith.constant 0.353553385 : f32
    %252 = vector.broadcast %cst_105 : f32 to vector<8x8xf32>
    %253 = arith.mulf %251, %252 : vector<8x8xf32>
    %254 = vector.broadcast %3 : vector<1x8xf32> to vector<8x8xf32>
    %255 = arith.addf %253, %254 : vector<8x8xf32>
    %cst_106 = arith.constant dense<0xFF800000> : vector<8xf32>
    %256 = vector.multi_reduction <maximumf>, %255, %cst_106 [1] : vector<8x8xf32> to vector<8xf32>
    %257 = vector.shape_cast %256 : vector<8xf32> to vector<8x1xf32>
    %258 = vector.broadcast %257 : vector<8x1xf32> to vector<8x8xf32>
    %259 = arith.subf %255, %258 : vector<8x8xf32>
    %260 = math.exp %259 : vector<8x8xf32>
    %cst_107 = arith.constant dense<0.000000e+00> : vector<8xf32>
    %261 = vector.multi_reduction <add>, %260, %cst_107 [1] : vector<8x8xf32> to vector<8xf32>
    %262 = vector.shape_cast %261 : vector<8xf32> to vector<8x1xf32>
    %263 = vector.broadcast %262 : vector<8x1xf32> to vector<8x8xf32>
    %264 = arith.divf %260, %263 : vector<8x8xf32>
    %265 = arith.truncf %264 : vector<8x8xf32> to vector<8x8xbf16>
    %cst_108 = arith.constant dense<0.000000e+00> : vector<8x8xf32>
    %266 = tpu.matmul %265, %250, %cst_108 {dimension_numbers = #tpu.dot_dimension_numbers<[1], [0], [0], [1], [0, 0, 1, 1], [], []>} : vector<8x8xbf16>, vector<8x8xbf16>, vector<8x8xf32> -> vector<8x8xf32>
    %267 = vector.extract_strided_slice %244 {offsets = [0, 8], sizes = [8, 8], strides = [1, 1]} : vector<8x96xf32> to vector<8x8xf32>
    %268 = arith.truncf %267 : vector<8x8xf32> to vector<8x8xbf16>
    %269 = vector.extract_strided_slice %244 {offsets = [0, 40], sizes = [8, 8], strides = [1, 1]} : vector<8x96xf32> to vector<8x8xf32>
    %270 = arith.truncf %269 : vector<8x8xf32> to vector<8x8xbf16>
    %271 = vector.extract_strided_slice %244 {offsets = [0, 72], sizes = [8, 8], strides = [1, 1]} : vector<8x96xf32> to vector<8x8xf32>
    %272 = arith.truncf %271 : vector<8x8xf32> to vector<8x8xbf16>
    %cst_109 = arith.constant dense<0.000000e+00> : vector<8x8xf32>
    %273 = tpu.matmul %268, %270, %cst_109 {dimension_numbers = #tpu.dot_dimension_numbers<[1], [1], [0], [0], [0, 0, 1, 0], [], []>} : vector<8x8xbf16>, vector<8x8xbf16>, vector<8x8xf32> -> vector<8x8xf32>
    %cst_110 = arith.constant 0.353553385 : f32
    %274 = vector.broadcast %cst_110 : f32 to vector<8x8xf32>
    %275 = arith.mulf %273, %274 : vector<8x8xf32>
    %276 = vector.broadcast %3 : vector<1x8xf32> to vector<8x8xf32>
    %277 = arith.addf %275, %276 : vector<8x8xf32>
    %cst_111 = arith.constant dense<0xFF800000> : vector<8xf32>
    %278 = vector.multi_reduction <maximumf>, %277, %cst_111 [1] : vector<8x8xf32> to vector<8xf32>
    %279 = vector.shape_cast %278 : vector<8xf32> to vector<8x1xf32>
    %280 = vector.broadcast %279 : vector<8x1xf32> to vector<8x8xf32>
    %281 = arith.subf %277, %280 : vector<8x8xf32>
    %282 = math.exp %281 : vector<8x8xf32>
    %cst_112 = arith.constant dense<0.000000e+00> : vector<8xf32>
    %283 = vector.multi_reduction <add>, %282, %cst_112 [1] : vector<8x8xf32> to vector<8xf32>
    %284 = vector.shape_cast %283 : vector<8xf32> to vector<8x1xf32>
    %285 = vector.broadcast %284 : vector<8x1xf32> to vector<8x8xf32>
    %286 = arith.divf %282, %285 : vector<8x8xf32>
    %287 = arith.truncf %286 : vector<8x8xf32> to vector<8x8xbf16>
    %cst_113 = arith.constant dense<0.000000e+00> : vector<8x8xf32>
    %288 = tpu.matmul %287, %272, %cst_113 {dimension_numbers = #tpu.dot_dimension_numbers<[1], [0], [0], [1], [0, 0, 1, 1], [], []>} : vector<8x8xbf16>, vector<8x8xbf16>, vector<8x8xf32> -> vector<8x8xf32>
    %289 = vector.extract_strided_slice %244 {offsets = [0, 16], sizes = [8, 8], strides = [1, 1]} : vector<8x96xf32> to vector<8x8xf32>
    %290 = arith.truncf %289 : vector<8x8xf32> to vector<8x8xbf16>
    %291 = vector.extract_strided_slice %244 {offsets = [0, 48], sizes = [8, 8], strides = [1, 1]} : vector<8x96xf32> to vector<8x8xf32>
    %292 = arith.truncf %291 : vector<8x8xf32> to vector<8x8xbf16>
    %293 = vector.extract_strided_slice %244 {offsets = [0, 80], sizes = [8, 8], strides = [1, 1]} : vector<8x96xf32> to vector<8x8xf32>
    %294 = arith.truncf %293 : vector<8x8xf32> to vector<8x8xbf16>
    %cst_114 = arith.constant dense<0.000000e+00> : vector<8x8xf32>
    %295 = tpu.matmul %290, %292, %cst_114 {dimension_numbers = #tpu.dot_dimension_numbers<[1], [1], [0], [0], [0, 0, 1, 0], [], []>} : vector<8x8xbf16>, vector<8x8xbf16>, vector<8x8xf32> -> vector<8x8xf32>
    %cst_115 = arith.constant 0.353553385 : f32
    %296 = vector.broadcast %cst_115 : f32 to vector<8x8xf32>
    %297 = arith.mulf %295, %296 : vector<8x8xf32>
    %298 = vector.broadcast %3 : vector<1x8xf32> to vector<8x8xf32>
    %299 = arith.addf %297, %298 : vector<8x8xf32>
    %cst_116 = arith.constant dense<0xFF800000> : vector<8xf32>
    %300 = vector.multi_reduction <maximumf>, %299, %cst_116 [1] : vector<8x8xf32> to vector<8xf32>
    %301 = vector.shape_cast %300 : vector<8xf32> to vector<8x1xf32>
    %302 = vector.broadcast %301 : vector<8x1xf32> to vector<8x8xf32>
    %303 = arith.subf %299, %302 : vector<8x8xf32>
    %304 = math.exp %303 : vector<8x8xf32>
    %cst_117 = arith.constant dense<0.000000e+00> : vector<8xf32>
    %305 = vector.multi_reduction <add>, %304, %cst_117 [1] : vector<8x8xf32> to vector<8xf32>
    %306 = vector.shape_cast %305 : vector<8xf32> to vector<8x1xf32>
    %307 = vector.broadcast %306 : vector<8x1xf32> to vector<8x8xf32>
    %308 = arith.divf %304, %307 : vector<8x8xf32>
    %309 = arith.truncf %308 : vector<8x8xf32> to vector<8x8xbf16>
    %cst_118 = arith.constant dense<0.000000e+00> : vector<8x8xf32>
    %310 = tpu.matmul %309, %294, %cst_118 {dimension_numbers = #tpu.dot_dimension_numbers<[1], [0], [0], [1], [0, 0, 1, 1], [], []>} : vector<8x8xbf16>, vector<8x8xbf16>, vector<8x8xf32> -> vector<8x8xf32>
    %311 = vector.extract_strided_slice %244 {offsets = [0, 24], sizes = [8, 8], strides = [1, 1]} : vector<8x96xf32> to vector<8x8xf32>
    %312 = arith.truncf %311 : vector<8x8xf32> to vector<8x8xbf16>
    %313 = vector.extract_strided_slice %244 {offsets = [0, 56], sizes = [8, 8], strides = [1, 1]} : vector<8x96xf32> to vector<8x8xf32>
    %314 = arith.truncf %313 : vector<8x8xf32> to vector<8x8xbf16>
    %315 = vector.extract_strided_slice %244 {offsets = [0, 88], sizes = [8, 8], strides = [1, 1]} : vector<8x96xf32> to vector<8x8xf32>
    %316 = arith.truncf %315 : vector<8x8xf32> to vector<8x8xbf16>
    %cst_119 = arith.constant dense<0.000000e+00> : vector<8x8xf32>
    %317 = tpu.matmul %312, %314, %cst_119 {dimension_numbers = #tpu.dot_dimension_numbers<[1], [1], [0], [0], [0, 0, 1, 0], [], []>} : vector<8x8xbf16>, vector<8x8xbf16>, vector<8x8xf32> -> vector<8x8xf32>
    %cst_120 = arith.constant 0.353553385 : f32
    %318 = vector.broadcast %cst_120 : f32 to vector<8x8xf32>
    %319 = arith.mulf %317, %318 : vector<8x8xf32>
    %320 = vector.broadcast %3 : vector<1x8xf32> to vector<8x8xf32>
    %321 = arith.addf %319, %320 : vector<8x8xf32>
    %cst_121 = arith.constant dense<0xFF800000> : vector<8xf32>
    %322 = vector.multi_reduction <maximumf>, %321, %cst_121 [1] : vector<8x8xf32> to vector<8xf32>
    %323 = vector.shape_cast %322 : vector<8xf32> to vector<8x1xf32>
    %324 = vector.broadcast %323 : vector<8x1xf32> to vector<8x8xf32>
    %325 = arith.subf %321, %324 : vector<8x8xf32>
    %326 = math.exp %325 : vector<8x8xf32>
    %cst_122 = arith.constant dense<0.000000e+00> : vector<8xf32>
    %327 = vector.multi_reduction <add>, %326, %cst_122 [1] : vector<8x8xf32> to vector<8xf32>
    %328 = vector.shape_cast %327 : vector<8xf32> to vector<8x1xf32>
    %329 = vector.broadcast %328 : vector<8x1xf32> to vector<8x8xf32>
    %330 = arith.divf %326, %329 : vector<8x8xf32>
    %331 = arith.truncf %330 : vector<8x8xf32> to vector<8x8xbf16>
    %cst_123 = arith.constant dense<0.000000e+00> : vector<8x8xf32>
    %332 = tpu.matmul %331, %316, %cst_123 {dimension_numbers = #tpu.dot_dimension_numbers<[1], [0], [0], [1], [0, 0, 1, 1], [], []>} : vector<8x8xbf16>, vector<8x8xbf16>, vector<8x8xf32> -> vector<8x8xf32>
    %333 = tpu.concatenate %266, %288, %310, %332 in 1 : vector<8x8xf32>, vector<8x8xf32>, vector<8x8xf32>, vector<8x8xf32> -> vector<8x32xf32>
    %334 = arith.truncf %333 : vector<8x32xf32> to vector<8x32xbf16>
    %c1_124 = arith.constant 1 : index
    %c0_125 = arith.constant 0 : index
    %c0_126 = arith.constant 0 : index
    %335 = vector.load %arg7[%c1_124, %c0_125, %c0_126] : memref<2x32x32xbf16, #tpu.memory_space<vmem>>, vector<1x32x32xbf16>
    %336 = vector.shape_cast %335 : vector<1x32x32xbf16> to vector<32x32xbf16>
    %cst_127 = arith.constant dense<0.000000e+00> : vector<8x32xf32>
    %337 = tpu.matmul %334, %336, %cst_127 {dimension_numbers = #tpu.dot_dimension_numbers<[1], [0], [0], [1], [0, 0, 1, 1], [], []>} : vector<8x32xbf16>, vector<32x32xbf16>, vector<8x32xf32> -> vector<8x32xf32>
    %c1_128 = arith.constant 1 : index
    %c0_129 = arith.constant 0 : index
    %c0_130 = arith.constant 0 : index
    %338 = vector.load %arg8[%c1_128, %c0_129, %c0_130] : memref<2x1x32xf32, #tpu.memory_space<vmem>>, vector<1x1x32xf32>
    %339 = vector.shape_cast %338 : vector<1x1x32xf32> to vector<1x32xf32>
    %340 = vector.broadcast %339 : vector<1x32xf32> to vector<8x32xf32>
    %341 = arith.addf %337, %340 : vector<8x32xf32>
    %342 = arith.addf %236, %341 : vector<8x32xf32>
    %c1_131 = arith.constant 1 : index
    %c0_132 = arith.constant 0 : index
    %c0_133 = arith.constant 0 : index
    %343 = vector.load %arg9[%c1_131, %c0_132, %c0_133] : memref<2x1x32xf32, #tpu.memory_space<vmem>>, vector<1x1x32xf32>
    %344 = vector.shape_cast %343 : vector<1x1x32xf32> to vector<1x32xf32>
    %c1_134 = arith.constant 1 : index
    %c0_135 = arith.constant 0 : index
    %c0_136 = arith.constant 0 : index
    %345 = vector.load %arg10[%c1_134, %c0_135, %c0_136] : memref<2x1x32xf32, #tpu.memory_space<vmem>>, vector<1x1x32xf32>
    %346 = vector.shape_cast %345 : vector<1x1x32xf32> to vector<1x32xf32>
    %cst_137 = arith.constant dense<0.000000e+00> : vector<8xf32>
    %347 = vector.multi_reduction <add>, %342, %cst_137 [1] : vector<8x32xf32> to vector<8xf32>
    %348 = vector.shape_cast %347 : vector<8xf32> to vector<8x1xf32>
    %cst_138 = arith.constant 3.200000e+01 : f32
    %349 = vector.broadcast %cst_138 : f32 to vector<8x1xf32>
    %350 = arith.divf %348, %349 : vector<8x1xf32>
    %351 = vector.broadcast %350 : vector<8x1xf32> to vector<8x32xf32>
    %352 = arith.subf %342, %351 : vector<8x32xf32>
    %353 = arith.mulf %352, %352 : vector<8x32xf32>
    %cst_139 = arith.constant dense<0.000000e+00> : vector<8xf32>
    %354 = vector.multi_reduction <add>, %353, %cst_139 [1] : vector<8x32xf32> to vector<8xf32>
    %355 = vector.shape_cast %354 : vector<8xf32> to vector<8x1xf32>
    %cst_140 = arith.constant 3.200000e+01 : f32
    %356 = vector.broadcast %cst_140 : f32 to vector<8x1xf32>
    %357 = arith.divf %355, %356 : vector<8x1xf32>
    %cst_141 = arith.constant 9.99999996E-13 : f32
    %358 = vector.broadcast %cst_141 : f32 to vector<8x1xf32>
    %359 = arith.addf %357, %358 : vector<8x1xf32>
    %360 = math.rsqrt %359 : vector<8x1xf32>
    %361 = vector.broadcast %360 : vector<8x1xf32> to vector<8x32xf32>
    %362 = arith.mulf %352, %361 : vector<8x32xf32>
    %363 = vector.broadcast %344 : vector<1x32xf32> to vector<8x32xf32>
    %364 = arith.mulf %362, %363 : vector<8x32xf32>
    %365 = vector.broadcast %346 : vector<1x32xf32> to vector<8x32xf32>
    %366 = arith.addf %364, %365 : vector<8x32xf32>
    %367 = arith.truncf %366 : vector<8x32xf32> to vector<8x32xbf16>
    %c1_142 = arith.constant 1 : index
    %c0_143 = arith.constant 0 : index
    %c0_144 = arith.constant 0 : index
    %368 = vector.load %arg11[%c1_142, %c0_143, %c0_144] : memref<2x32x64xbf16, #tpu.memory_space<vmem>>, vector<1x32x64xbf16>
    %369 = vector.shape_cast %368 : vector<1x32x64xbf16> to vector<32x64xbf16>
    %cst_145 = arith.constant dense<0.000000e+00> : vector<8x64xf32>
    %370 = tpu.matmul %367, %369, %cst_145 {dimension_numbers = #tpu.dot_dimension_numbers<[1], [0], [0], [1], [0, 0, 1, 1], [], []>} : vector<8x32xbf16>, vector<32x64xbf16>, vector<8x64xf32> -> vector<8x64xf32>
    %c1_146 = arith.constant 1 : index
    %c0_147 = arith.constant 0 : index
    %c0_148 = arith.constant 0 : index
    %371 = vector.load %arg12[%c1_146, %c0_147, %c0_148] : memref<2x1x64xf32, #tpu.memory_space<vmem>>, vector<1x1x64xf32>
    %372 = vector.shape_cast %371 : vector<1x1x64xf32> to vector<1x64xf32>
    %373 = vector.broadcast %372 : vector<1x64xf32> to vector<8x64xf32>
    %374 = arith.addf %370, %373 : vector<8x64xf32>
    %cst_149 = arith.constant 0.707106769 : f32
    %375 = vector.broadcast %cst_149 : f32 to vector<8x64xf32>
    %376 = arith.mulf %374, %375 : vector<8x64xf32>
    %377 = math.absf %376 : vector<8x64xf32>
    %cst_150 = arith.constant 0.327591091 : f32
    %378 = vector.broadcast %cst_150 : f32 to vector<8x64xf32>
    %379 = arith.mulf %378, %377 : vector<8x64xf32>
    %cst_151 = arith.constant 1.000000e+00 : f32
    %380 = vector.broadcast %cst_151 : f32 to vector<8x64xf32>
    %381 = arith.addf %380, %379 : vector<8x64xf32>
    %cst_152 = arith.constant 1.000000e+00 : f32
    %382 = vector.broadcast %cst_152 : f32 to vector<8x64xf32>
    %383 = arith.divf %382, %381 : vector<8x64xf32>
    %cst_153 = arith.constant 1.06140542 : f32
    %384 = vector.broadcast %cst_153 : f32 to vector<8x64xf32>
    %385 = arith.mulf %383, %384 : vector<8x64xf32>
    %cst_154 = arith.constant -1.45315206 : f32
    %386 = vector.broadcast %cst_154 : f32 to vector<8x64xf32>
    %387 = arith.addf %386, %385 : vector<8x64xf32>
    %388 = arith.mulf %383, %387 : vector<8x64xf32>
    %cst_155 = arith.constant 1.42141378 : f32
    %389 = vector.broadcast %cst_155 : f32 to vector<8x64xf32>
    %390 = arith.addf %389, %388 : vector<8x64xf32>
    %391 = arith.mulf %383, %390 : vector<8x64xf32>
    %cst_156 = arith.constant -0.284496725 : f32
    %392 = vector.broadcast %cst_156 : f32 to vector<8x64xf32>
    %393 = arith.addf %392, %391 : vector<8x64xf32>
    %394 = arith.mulf %383, %393 : vector<8x64xf32>
    %cst_157 = arith.constant 0.254829586 : f32
    %395 = vector.broadcast %cst_157 : f32 to vector<8x64xf32>
    %396 = arith.addf %395, %394 : vector<8x64xf32>
    %397 = arith.mulf %383, %396 : vector<8x64xf32>
    %cst_158 = arith.constant 0.000000e+00 : f32
    %398 = vector.broadcast %cst_158 : f32 to vector<8x64xf32>
    %399 = arith.subf %398, %377 : vector<8x64xf32>
    %400 = arith.mulf %399, %377 : vector<8x64xf32>
    %401 = math.exp %400 : vector<8x64xf32>
    %402 = arith.mulf %397, %401 : vector<8x64xf32>
    %cst_159 = arith.constant 1.000000e+00 : f32
    %403 = vector.broadcast %cst_159 : f32 to vector<8x64xf32>
    %404 = arith.subf %403, %402 : vector<8x64xf32>
    %cst_160 = arith.constant 0.000000e+00 : f32
    %405 = vector.broadcast %cst_160 : f32 to vector<8x64xf32>
    %406 = arith.cmpf oge, %376, %405 : vector<8x64xf32>
    %cst_161 = arith.constant 0.000000e+00 : f32
    %407 = vector.broadcast %cst_161 : f32 to vector<8x64xf32>
    %408 = arith.subf %407, %404 : vector<8x64xf32>
    %409 = arith.select %406, %404, %408 : vector<8x64xi1>, vector<8x64xf32>
    %cst_162 = arith.constant 5.000000e-01 : f32
    %410 = vector.broadcast %cst_162 : f32 to vector<8x64xf32>
    %411 = arith.mulf %410, %374 : vector<8x64xf32>
    %cst_163 = arith.constant 1.000000e+00 : f32
    %412 = vector.broadcast %cst_163 : f32 to vector<8x64xf32>
    %413 = arith.addf %412, %409 : vector<8x64xf32>
    %414 = arith.mulf %411, %413 : vector<8x64xf32>
    %415 = arith.truncf %414 : vector<8x64xf32> to vector<8x64xbf16>
    %c1_164 = arith.constant 1 : index
    %c0_165 = arith.constant 0 : index
    %c0_166 = arith.constant 0 : index
    %416 = vector.load %arg13[%c1_164, %c0_165, %c0_166] : memref<2x64x32xbf16, #tpu.memory_space<vmem>>, vector<1x64x32xbf16>
    %417 = vector.shape_cast %416 : vector<1x64x32xbf16> to vector<64x32xbf16>
    %cst_167 = arith.constant dense<0.000000e+00> : vector<8x32xf32>
    %418 = tpu.matmul %415, %417, %cst_167 {dimension_numbers = #tpu.dot_dimension_numbers<[1], [0], [0], [1], [0, 0, 1, 1], [], []>} : vector<8x64xbf16>, vector<64x32xbf16>, vector<8x32xf32> -> vector<8x32xf32>
    %c1_168 = arith.constant 1 : index
    %c0_169 = arith.constant 0 : index
    %c0_170 = arith.constant 0 : index
    %419 = vector.load %arg14[%c1_168, %c0_169, %c0_170] : memref<2x1x32xf32, #tpu.memory_space<vmem>>, vector<1x1x32xf32>
    %420 = vector.shape_cast %419 : vector<1x1x32xf32> to vector<1x32xf32>
    %421 = vector.broadcast %420 : vector<1x32xf32> to vector<8x32xf32>
    %422 = arith.addf %418, %421 : vector<8x32xf32>
    %423 = arith.addf %366, %422 : vector<8x32xf32>
    %c1_171 = arith.constant 1 : index
    %c0_172 = arith.constant 0 : index
    %c0_173 = arith.constant 0 : index
    %424 = vector.load %arg15[%c1_171, %c0_172, %c0_173] : memref<2x1x32xf32, #tpu.memory_space<vmem>>, vector<1x1x32xf32>
    %425 = vector.shape_cast %424 : vector<1x1x32xf32> to vector<1x32xf32>
    %c1_174 = arith.constant 1 : index
    %c0_175 = arith.constant 0 : index
    %c0_176 = arith.constant 0 : index
    %426 = vector.load %arg16[%c1_174, %c0_175, %c0_176] : memref<2x1x32xf32, #tpu.memory_space<vmem>>, vector<1x1x32xf32>
    %427 = vector.shape_cast %426 : vector<1x1x32xf32> to vector<1x32xf32>
    %cst_177 = arith.constant dense<0.000000e+00> : vector<8xf32>
    %428 = vector.multi_reduction <add>, %423, %cst_177 [1] : vector<8x32xf32> to vector<8xf32>
    %429 = vector.shape_cast %428 : vector<8xf32> to vector<8x1xf32>
    %cst_178 = arith.constant 3.200000e+01 : f32
    %430 = vector.broadcast %cst_178 : f32 to vector<8x1xf32>
    %431 = arith.divf %429, %430 : vector<8x1xf32>
    %432 = vector.broadcast %431 : vector<8x1xf32> to vector<8x32xf32>
    %433 = arith.subf %423, %432 : vector<8x32xf32>
    %434 = arith.mulf %433, %433 : vector<8x32xf32>
    %cst_179 = arith.constant dense<0.000000e+00> : vector<8xf32>
    %435 = vector.multi_reduction <add>, %434, %cst_179 [1] : vector<8x32xf32> to vector<8xf32>
    %436 = vector.shape_cast %435 : vector<8xf32> to vector<8x1xf32>
    %cst_180 = arith.constant 3.200000e+01 : f32
    %437 = vector.broadcast %cst_180 : f32 to vector<8x1xf32>
    %438 = arith.divf %436, %437 : vector<8x1xf32>
    %cst_181 = arith.constant 9.99999996E-13 : f32
    %439 = vector.broadcast %cst_181 : f32 to vector<8x1xf32>
    %440 = arith.addf %438, %439 : vector<8x1xf32>
    %441 = math.rsqrt %440 : vector<8x1xf32>
    %442 = vector.broadcast %441 : vector<8x1xf32> to vector<8x32xf32>
    %443 = arith.mulf %433, %442 : vector<8x32xf32>
    %444 = vector.broadcast %425 : vector<1x32xf32> to vector<8x32xf32>
    %445 = arith.mulf %443, %444 : vector<8x32xf32>
    %446 = vector.broadcast %427 : vector<1x32xf32> to vector<8x32xf32>
    %447 = arith.addf %445, %446 : vector<8x32xf32>
    %448 = vector.extract_strided_slice %447 {offsets = [0, 0], sizes = [1, 32], strides = [1, 1]} : vector<8x32xf32> to vector<1x32xf32>
    %449 = arith.truncf %448 : vector<1x32xf32> to vector<1x32xbf16>
    %c0_182 = arith.constant 0 : index
    %c0_183 = arith.constant 0 : index
    %450 = vector.load %arg17[%c0_182, %c0_183] : memref<32x32xbf16, #tpu.memory_space<vmem>>, vector<32x32xbf16>
    %cst_184 = arith.constant dense<0.000000e+00> : vector<1x32xf32>
    %451 = tpu.matmul %449, %450, %cst_184 {dimension_numbers = #tpu.dot_dimension_numbers<[1], [0], [0], [1], [0, 0, 1, 1], [], []>} : vector<1x32xbf16>, vector<32x32xbf16>, vector<1x32xf32> -> vector<1x32xf32>
    %c0_185 = arith.constant 0 : index
    %c0_186 = arith.constant 0 : index
    %452 = vector.load %arg18[%c0_185, %c0_186] : memref<1x32xf32, #tpu.memory_space<vmem>>, vector<1x32xf32>
    %453 = arith.addf %451, %452 : vector<1x32xf32>
    %454 = math.tanh %453 : vector<1x32xf32>
    %c0_187 = arith.constant 0 : index
    %c0_188 = arith.constant 0 : index
    %455 = vector.load %arg19[%c0_187, %c0_188] : memref<1x32xf32, #tpu.memory_space<vmem>>, vector<1x32xf32>
    %456 = arith.mulf %454, %455 : vector<1x32xf32>
    %cst_189 = arith.constant dense<0.000000e+00> : vector<1xf32>
    %457 = vector.multi_reduction <add>, %456, %cst_189 [1] : vector<1x32xf32> to vector<1xf32>
    %458 = vector.shape_cast %457 : vector<1xf32> to vector<1x1xf32>
    %c0_190 = arith.constant 0 : index
    %c0_191 = arith.constant 0 : index
    %459 = vector.load %arg20[%c0_190, %c0_191] : memref<1x1xf32, #tpu.memory_space<vmem>>, vector<1x1xf32>
    %460 = arith.addf %458, %459 : vector<1x1xf32>
    %461 = vector.shape_cast %460 : vector<1x1xf32> to vector<1x1x1xf32>
    %c0_192 = arith.constant 0 : index
    %c0_193 = arith.constant 0 : index
    %c0_194 = arith.constant 0 : index
    %462 = vector.load %arg21[%c0_192, %c0_193, %c0_194] : memref<1x1x1xf32, #tpu.memory_space<vmem>>, vector<1x1x1xf32>
    tpu.vector_store %arg21[%c0_192, %c0_193, %c0_194], %461 {strides = array<i32>} : memref<1x1x1xf32, #tpu.memory_space<vmem>>, vector<1x1x1xf32>,
    return
  }
  func.func @transform_0(%arg0: i32) -> (i32, i32, i32) {
    %c0_i32 = arith.constant 0 : i32
    %c0_i32_0 = arith.constant 0 : i32
    %c0_i32_1 = arith.constant 0 : i32
    return %arg0, %c0_i32, %c0_i32_0 : i32, i32, i32
  }
  func.func @transform_1(%arg0: i32) -> (i32, i32, i32) {
    %c0_i32 = arith.constant 0 : i32
    %c0_i32_0 = arith.constant 0 : i32
    %c0_i32_1 = arith.constant 0 : i32
    return %arg0, %c0_i32, %c0_i32_0 : i32, i32, i32
  }
  func.func @transform_2(%arg0: i32) -> (i32, i32) {
    %c0_i32 = arith.constant 0 : i32
    %c0_i32_0 = arith.constant 0 : i32
    %c0_i32_1 = arith.constant 0 : i32
    return %c0_i32, %c0_i32_0 : i32, i32
  }
  func.func @transform_3(%arg0: i32) -> (i32, i32) {
    %c0_i32 = arith.constant 0 : i32
    %c0_i32_0 = arith.constant 0 : i32
    %c0_i32_1 = arith.constant 0 : i32
    return %c0_i32, %c0_i32_0 : i32, i32
  }
  func.func @transform_4(%arg0: i32) -> (i32, i32, i32) {
    %c0_i32 = arith.constant 0 : i32
    %c0_i32_0 = arith.constant 0 : i32
    %c0_i32_1 = arith.constant 0 : i32
    %c0_i32_2 = arith.constant 0 : i32
    return %c0_i32, %c0_i32_0, %c0_i32_1 : i32, i32, i32
  }
  func.func @transform_5(%arg0: i32) -> (i32, i32, i32) {
    %c0_i32 = arith.constant 0 : i32
    %c0_i32_0 = arith.constant 0 : i32
    %c0_i32_1 = arith.constant 0 : i32
    %c0_i32_2 = arith.constant 0 : i32
    return %c0_i32, %c0_i32_0, %c0_i32_1 : i32, i32, i32
  }
  func.func @transform_6(%arg0: i32) -> (i32, i32, i32) {
    %c0_i32 = arith.constant 0 : i32
    %c0_i32_0 = arith.constant 0 : i32
    %c0_i32_1 = arith.constant 0 : i32
    %c0_i32_2 = arith.constant 0 : i32
    return %c0_i32, %c0_i32_0, %c0_i32_1 : i32, i32, i32
  }
  func.func @transform_7(%arg0: i32) -> (i32, i32, i32) {
    %c0_i32 = arith.constant 0 : i32
    %c0_i32_0 = arith.constant 0 : i32
    %c0_i32_1 = arith.constant 0 : i32
    %c0_i32_2 = arith.constant 0 : i32
    return %c0_i32, %c0_i32_0, %c0_i32_1 : i32, i32, i32
  }
  func.func @transform_8(%arg0: i32) -> (i32, i32, i32) {
    %c0_i32 = arith.constant 0 : i32
    %c0_i32_0 = arith.constant 0 : i32
    %c0_i32_1 = arith.constant 0 : i32
    %c0_i32_2 = arith.constant 0 : i32
    return %c0_i32, %c0_i32_0, %c0_i32_1 : i32, i32, i32
  }
  func.func @transform_9(%arg0: i32) -> (i32, i32, i32) {
    %c0_i32 = arith.constant 0 : i32
    %c0_i32_0 = arith.constant 0 : i32
    %c0_i32_1 = arith.constant 0 : i32
    %c0_i32_2 = arith.constant 0 : i32
    return %c0_i32, %c0_i32_0, %c0_i32_1 : i32, i32, i32
  }
  func.func @transform_10(%arg0: i32) -> (i32, i32, i32) {
    %c0_i32 = arith.constant 0 : i32
    %c0_i32_0 = arith.constant 0 : i32
    %c0_i32_1 = arith.constant 0 : i32
    %c0_i32_2 = arith.constant 0 : i32
    return %c0_i32, %c0_i32_0, %c0_i32_1 : i32, i32, i32
  }
  func.func @transform_11(%arg0: i32) -> (i32, i32, i32) {
    %c0_i32 = arith.constant 0 : i32
    %c0_i32_0 = arith.constant 0 : i32
    %c0_i32_1 = arith.constant 0 : i32
    %c0_i32_2 = arith.constant 0 : i32
    return %c0_i32, %c0_i32_0, %c0_i32_1 : i32, i32, i32
  }
  func.func @transform_12(%arg0: i32) -> (i32, i32, i32) {
    %c0_i32 = arith.constant 0 : i32
    %c0_i32_0 = arith.constant 0 : i32
    %c0_i32_1 = arith.constant 0 : i32
    %c0_i32_2 = arith.constant 0 : i32
    return %c0_i32, %c0_i32_0, %c0_i32_1 : i32, i32, i32
  }
  func.func @transform_13(%arg0: i32) -> (i32, i32, i32) {
    %c0_i32 = arith.constant 0 : i32
    %c0_i32_0 = arith.constant 0 : i32
    %c0_i32_1 = arith.constant 0 : i32
    %c0_i32_2 = arith.constant 0 : i32
    return %c0_i32, %c0_i32_0, %c0_i32_1 : i32, i32, i32
  }
  func.func @transform_14(%arg0: i32) -> (i32, i32, i32) {
    %c0_i32 = arith.constant 0 : i32
    %c0_i32_0 = arith.constant 0 : i32
    %c0_i32_1 = arith.constant 0 : i32
    %c0_i32_2 = arith.constant 0 : i32
    return %c0_i32, %c0_i32_0, %c0_i32_1 : i32, i32, i32
  }
  func.func @transform_15(%arg0: i32) -> (i32, i32, i32) {
    %c0_i32 = arith.constant 0 : i32
    %c0_i32_0 = arith.constant 0 : i32
    %c0_i32_1 = arith.constant 0 : i32
    %c0_i32_2 = arith.constant 0 : i32
    return %c0_i32, %c0_i32_0, %c0_i32_1 : i32, i32, i32
  }
  func.func @transform_16(%arg0: i32) -> (i32, i32) {
    %c0_i32 = arith.constant 0 : i32
    %c0_i32_0 = arith.constant 0 : i32
    %c0_i32_1 = arith.constant 0 : i32
    return %c0_i32, %c0_i32_0 : i32, i32
  }
  func.func @transform_17(%arg0: i32) -> (i32, i32) {
    %c0_i32 = arith.constant 0 : i32
    %c0_i32_0 = arith.constant 0 : i32
    %c0_i32_1 = arith.constant 0 : i32
    return %c0_i32, %c0_i32_0 : i32, i32
  }
  func.func @transform_18(%arg0: i32) -> (i32, i32) {
    %c0_i32 = arith.constant 0 : i32
    %c0_i32_0 = arith.constant 0 : i32
    %c0_i32_1 = arith.constant 0 : i32
    return %c0_i32, %c0_i32_0 : i32, i32
  }
  func.func @transform_19(%arg0: i32) -> (i32, i32) {
    %c0_i32 = arith.constant 0 : i32
    %c0_i32_0 = arith.constant 0 : i32
    %c0_i32_1 = arith.constant 0 : i32
    return %c0_i32, %c0_i32_0 : i32, i32
  }
  func.func @transform_20(%arg0: i32) -> (i32, i32, i32) {
    %c0_i32 = arith.constant 0 : i32
    %c0_i32_0 = arith.constant 0 : i32
    %c0_i32_1 = arith.constant 0 : i32
    return %arg0, %c0_i32, %c0_i32_0 : i32, i32, i32
  }
}

</mosaic_0001>

<llo_original>
// kernel: cross_encoder_forward.3
$region0: #{cross_encoder_forward.3}
  #allocation0 [shape = 'u32[]', space=smem, size = 0x4, offset = 0x4, fixed_abs, tag = 'smem constant byte address 0x4 - core index']
  #allocation1 [shape = 'u32[144,128]{1,0:T(1,128)}', space=vmem, size = 0x12000, scoped, tag = 'internal scratch']
  %s0 = inlined_call_operand.vmem [shape: f32[1,2], index: 0, kind: input, shape index: {}]
  %s1 = inlined_call_operand.vmem [shape: f32[1,2], index: 1, kind: input, shape index: {}]
  %s2 = inlined_call_operand.hbm [shape: f32[1,1], index: 2, kind: output, shape index: {}]
  %s3 = sld [smem:[#allocation0]]
  $region18: #{cross_encoder_forward.3} parent=0
    _
  %s5 = ssub.s32 1, %s3
  %s6 = scalar_select 0, %s5, %s3
  $region1: #{cross_encoder_forward.3} parent=0
    #allocation2 [shape = 'u8[512]{0}', space=vmem, size = 0x400, scoped, tag = 'output window, operand 0, single buffered']
    #allocation3 [shape = 's32[1]{0}', space=sflag, size = 0x4, scoped, tag = 'scoped memory for cross_encoder_forward.3']
    %7 = vsyncpa [#allocation3], 0
    // Predicated region
    $region2: #{cross_encoder_forward.3} parent=1 // pred_check
      _
    $region3: #{cross_encoder_forward.3} parent=1 // pred_check_branch
      %9 = sbr.rel (0) target = $region5
    $region4: #{cross_encoder_forward.3} parent=1 // pred_region
      _
    $region5: #{cross_encoder_forward.3} parent=1 // pred_fallthru
      _
    // Predicated region
    $region6: #{cross_encoder_forward.3} parent=1 // pred_check
      _
    $region7: #{cross_encoder_forward.3} parent=1 // pred_check_branch
      %11 = sbr.rel (0) target = $region9
    $region8: #{cross_encoder_forward.3} parent=1 // pred_region
      _
    $region9: #{cross_encoder_forward.3} parent=1 // pred_fallthru
      _
    %v12 = vld [vmem:[%s0] sm:$0x1]
    %v13 = vld [vmem:[%s1] sm:$0x1]
    %v14 = vsub.f32 %v12, %v13
    %v15 = vmul.f32 %v14, %v14
    %vm16 = vcmask 8192
    %v17 = vsel %vm16, %v15, 0.0
    %18 = vadd.xlane.f32.xlu0 %v17
    %v19 = vpop.xlane.xlu0 %18
    %v20 = vrot.slane %v19, 4
    %v21 = vadd.f32 %v19, %v20
    %v22 = vrot.slane %v21, 2
    %v23 = vadd.f32 %v21, %v22
    %v24 = vrot.slane %v23, 1
    %v25 = vadd.f32 %v23, %v24
    %s26 = vtos %v25
    %v27 = vrcp.pop 2.0
    %s28 = vtos %v27
    %s29 = smul.f32 %s26, %s28
    %v30 = vstv %s29
    %vm31 = vcmask 0
    %32 = vst.msk [vmem:[#allocation2] sm:$0x1] %vm31, %v30
    // Predicated region
    $region10: #{cross_encoder_forward.3} parent=1 // pred_check
      _
    $region11: #{cross_encoder_forward.3} parent=1 // pred_check_branch
      %34 = sbr.rel (0) target = $region13
    $region12: #{cross_encoder_forward.3} parent=1 // pred_region
      %s36 = ssub.s32 16, 16
      %37 = vsyncadd [#allocation3], %s36
      %s39 = sshll.u32 [#allocation2], 4
      %s40 = int_to_ptr.vmem [resolvable:$true] %s39
      %42 = dma.vmem_to_hbm [thread:$0]  %s40, 16, %s2, [#allocation3]
    $region13: #{cross_encoder_forward.3} parent=1 // pred_fallthru
      _
    // Predicated region
    $region14: #{cross_encoder_forward.3} parent=1 // pred_check
      _
    $region15: #{cross_encoder_forward.3} parent=1 // pred_check_branch
      %44 = sbr.rel (0) target = $region17
    $region16: #{cross_encoder_forward.3} parent=1 // pred_region
      %45 = dma.done [#allocation3], 16
    $region17: #{cross_encoder_forward.3} parent=1 // pred_fallthru
      _
    %46 = vsyncpa [#allocation3], 1

// kernel: cross_encoder_forward.2
$region0: #{cross_encoder_forward.2}
  #allocation0 [shape = 'u32[]', space=smem, size = 0x4, offset = 0x4, fixed_abs, tag = 'smem constant byte address 0x4 - core index']
  #allocation1 [shape = 'u32[144,128]{1,0:T(1,128)}', space=vmem, size = 0x12000, scoped, tag = 'internal scratch']
  #allocation2 [shape = 'f32[1,1]{1,0:T(1,128)S(1)}', space=vmem, size = 0x200, scoped, tag = 'scoped memory for cross_encoder_forward.2']
  %s0 = inlined_call_operand.vmem [shape: f32[2,8,32], index: 0, kind: input, shape index: {}]
  %s1 = inlined_call_operand.vmem [shape: f32[2,1,8], index: 1, kind: input, shape index: {}]
  %s2 = inlined_call_operand.vmem [shape: f32[1,32], index: 2, kind: input, shape index: {}]
  %s3 = inlined_call_operand.vmem [shape: f32[1,32], index: 3, kind: input, shape index: {}]
  %s4 = inlined_call_operand.vmem [shape: bf16[2,32,96], index: 4, kind: input, shape index: {}]
  %s5 = inlined_call_operand.vmem [shape: f32[2,1,96], index: 5, kind: input, shape index: {}]
  %s6 = inlined_call_operand.vmem [shape: bf16[2,32,32], index: 6, kind: input, shape index: {}]
  %s7 = inlined_call_operand.vmem [shape: f32[2,1,32], index: 7, kind: input, shape index: {}]
  %s8 = inlined_call_operand.vmem [shape: f32[2,1,32], index: 8, kind: input, shape index: {}]
  %s9 = inlined_call_operand.vmem [shape: f32[2,1,32], index: 9, kind: input, shape index: {}]
  %s10 = inlined_call_operand.vmem [shape: bf16[2,32,64], index: 10, kind: input, shape index: {}]
  %s11 = inlined_call_operand.vmem [shape: f32[2,1,64], index: 11, kind: input, shape index: {}]
  %s12 = inlined_call_operand.vmem [shape: bf16[2,64,32], index: 12, kind: input, shape index: {}]
  %s13 = inlined_call_operand.vmem [shape: f32[2,1,32], index: 13, kind: input, shape index: {}]
  %s14 = inlined_call_operand.vmem [shape: f32[2,1,32], index: 14, kind: input, shape index: {}]
  %s15 = inlined_call_operand.vmem [shape: f32[2,1,32], index: 15, kind: input, shape index: {}]
  %s16 = inlined_call_operand.vmem [shape: bf16[32,32], index: 16, kind: input, shape index: {}]
  %s17 = inlined_call_operand.vmem [shape: f32[1,32], index: 17, kind: input, shape index: {}]
  %s18 = inlined_call_operand.vmem [shape: f32[1,32], index: 18, kind: input, shape index: {}]
  %s19 = inlined_call_operand.<no memory space> [shape: f32[1,1], index: 19, kind: input, shape index: {}]
  %s20 = inlined_call_operand.vmem [shape: f32[2,1,1], index: 20, kind: output, shape index: {}]
  %s21 = sld [smem:[#allocation0]]
  $region113: #{cross_encoder_forward.2} parent=0
    _
  %s23 = ssub.s32 1, %s21
  %s24 = scalar_select 0, %s23, %s21
  %v25 = vstv %s19
  %26 = vst [vmem:[#allocation2] sm:$0x1] %v25
  loop: start=0, step=1, limit=4
  $region2: #{cross_encoder_forward.2} parent=0 // loop_pre_header
    _
  $region3: #{cross_encoder_forward.2} parent=0 // loop_header
    %s28 = sphi 0, %s32
    %p29 = scmp.ge.s32.totalorder %s28, 4
    %s38 = sphi 0, %s40
    %s41 = sphi 0, %s38
    %s42 = sphi 0, %s41
    %s58 = sphi 0, %s42
    %s64 = sphi 0, %s66
    %s67 = sphi 0, %s64
    %s68 = sphi 0, %s67
    %s84 = sphi 0, %s68
    %s88 = sphi 0, %s88
    %s90 = sphi 0, %s88
    %s91 = sphi 0, %s90
    %s105 = sphi 0, %s91
    %s109 = sphi 0, %s109
    %s111 = sphi 0, %s109
    %s112 = sphi 0, %s111
    %s126 = sphi 0, %s112
    %s130 = sphi 0, %s130
    %s132 = sphi 0, %s130
    %s133 = sphi 0, %s132
    %s147 = sphi 0, %s133
    %s151 = sphi 0, %s151
    %s153 = sphi 0, %s151
    %s154 = sphi 0, %s153
    %s168 = sphi 0, %s154
    %s172 = sphi 0, %s172
    %s174 = sphi 0, %s172
    %s175 = sphi 0, %s174
    %s189 = sphi 0, %s175
    %s193 = sphi 0, %s193
    %s195 = sphi 0, %s193
    %s196 = sphi 0, %s195
    %s210 = sphi 0, %s196
    %s214 = sphi 0, %s214
    %s216 = sphi 0, %s214
    %s217 = sphi 0, %s216
    %s231 = sphi 0, %s217
    %s235 = sphi 0, %s235
    %s237 = sphi 0, %s235
    %s238 = sphi 0, %s237
    %s252 = sphi 0, %s238
    %s256 = sphi 0, %s256
    %s258 = sphi 0, %s256
    %s259 = sphi 0, %s258
    %s273 = sphi 0, %s259
    %s277 = sphi 0, %s277
    %s279 = sphi 0, %s277
    %s280 = sphi 0, %s279
    %s294 = sphi 0, %s280
    %s298 = sphi 0, %s298
    %s300 = sphi 0, %s298
    %s301 = sphi 0, %s300
    %s315 = sphi 0, %s301
    %s319 = sphi 0, %s319
    %s321 = sphi 0, %s319
    %s322 = sphi 0, %s321
    %s336 = sphi 0, %s322
    %s340 = sphi 0, %s340
    %s342 = sphi 0, %s340
    %s343 = sphi 0, %s342
    %s357 = sphi 0, %s343
    %s361 = sphi 0, %s361
    %s363 = sphi 0, %s361
    %s364 = sphi 0, %s363
    %s378 = sphi 0, %s364
    %s382 = sphi 0, %s382
    %s384 = sphi 0, %s382
    %s385 = sphi 0, %s384
    %s399 = sphi 0, %s385
    %s403 = sphi 0, %s403
    %s405 = sphi 0, %s403
    %s406 = sphi 0, %s405
    %s420 = sphi 0, %s406
    %s424 = sphi 0, %s424
    %s426 = sphi 0, %s424
    %s427 = sphi 0, %s426
    %s441 = sphi 0, %s427
    %s445 = sphi 0, %s445
    %s447 = sphi 0, %s445
    %s448 = sphi 0, %s447
    %s462 = sphi 0, %s448
    %s468 = sphi 0, %s470
    %s471 = sphi 0, %s468
    %s472 = sphi 0, %s471
    %s488 = sphi 0, %s472
  $region4: #{cross_encoder_forward.2} parent=0 // loop_header_branch
    %31 = sbr.rel (%p29) target = $region8
  $region5: #{cross_encoder_forward.2} parent=0 // loop_body
    %s33 = ssub.s32 %s28, 1
    %s34 = ssub.s32 %s28, 2
    %s35 = sadd.s32 %s28, 1
    %s36 = ssub.s32 %s28, %s35
    %p37 = scmp.eq.s32.totalorder %s36, 0
    %s39 = sadd.s32 %s38, 1
    %s40 = scalar_select %p37, %s38, %s39
    %p43 = pneg %p37
    %p44 = scmp.eq.s32.totalorder %s28, 1
    %p45 = por %p43, %p44
    %p46 = scmp.ne.s32.totalorder %s38, %s41
    %p47 = scmp.eq.s32.totalorder %s28, 0
    %p48 = por %p46, %p47
    %p49 = scmp.ne.s32.totalorder %s38, %s41
    %p50 = scmp.eq.s32.totalorder %s33, 1
    %p51 = por %p49, %p50
    %p52 = scmp.ne.s32.totalorder %s41, %s42
    %p53 = scmp.eq.s32.totalorder %s33, 0
    %p54 = por %p52, %p53
    %p55 = scmp.ne.s32.totalorder %s41, %s42
    %p56 = scmp.eq.s32.totalorder %s34, 1
    %p57 = por %p55, %p56
    %p59 = scmp.ne.s32.totalorder %s42, %s58
    %p60 = scmp.eq.s32.totalorder %s34, 0
    %p61 = por %p59, %p60
    %s62 = ssub.s32 %s28, %s35
    %p63 = scmp.eq.s32.totalorder %s62, 0
    %s65 = sadd.s32 %s64, 1
    %s66 = scalar_select %p63, %s64, %s65
    %p69 = pneg %p63
    %p70 = scmp.eq.s32.totalorder %s28, 1
    %p71 = por %p69, %p70
    %p72 = scmp.ne.s32.totalorder %s64, %s67
    %p73 = scmp.eq.s32.totalorder %s28, 0
    %p74 = por %p72, %p73
    %p75 = scmp.ne.s32.totalorder %s64, %s67
    %p76 = scmp.eq.s32.totalorder %s33, 1
    %p77 = por %p75, %p76
    %p78 = scmp.ne.s32.totalorder %s67, %s68
    %p79 = scmp.eq.s32.totalorder %s33, 0
    %p80 = por %p78, %p79
    %p81 = scmp.ne.s32.totalorder %s67, %s68
    %p82 = scmp.eq.s32.totalorder %s34, 1
    %p83 = por %p81, %p82
    %p85 = scmp.ne.s32.totalorder %s68, %s84
    %p86 = scmp.eq.s32.totalorder %s34, 0
    %p87 = por %p85, %p86
    %s89 = sadd.s32 %s88, 1
    %p92 = scmp.eq.s32.totalorder %s28, 1
    %p93 = scmp.ne.s32.totalorder %s88, %s90
    %p94 = scmp.eq.s32.totalorder %s28, 0
    %p95 = por %p93, %p94
    %p96 = scmp.ne.s32.totalorder %s88, %s90
    %p97 = scmp.eq.s32.totalorder %s33, 1
    %p98 = por %p96, %p97
    %p99 = scmp.ne.s32.totalorder %s90, %s91
    %p100 = scmp.eq.s32.totalorder %s33, 0
    %p101 = por %p99, %p100
    %p102 = scmp.ne.s32.totalorder %s90, %s91
    %p103 = scmp.eq.s32.totalorder %s34, 1
    %p104 = por %p102, %p103
    %p106 = scmp.ne.s32.totalorder %s91, %s105
    %p107 = scmp.eq.s32.totalorder %s34, 0
    %p108 = por %p106, %p107
    %s110 = sadd.s32 %s109, 1
    %p113 = scmp.eq.s32.totalorder %s28, 1
    %p114 = scmp.ne.s32.totalorder %s109, %s111
    %p115 = scmp.eq.s32.totalorder %s28, 0
    %p116 = por %p114, %p115
    %p117 = scmp.ne.s32.totalorder %s109, %s111
    %p118 = scmp.eq.s32.totalorder %s33, 1
    %p119 = por %p117, %p118
    %p120 = scmp.ne.s32.totalorder %s111, %s112
    %p121 = scmp.eq.s32.totalorder %s33, 0
    %p122 = por %p120, %p121
    %p123 = scmp.ne.s32.totalorder %s111, %s112
    %p124 = scmp.eq.s32.totalorder %s34, 1
    %p125 = por %p123, %p124
    %p127 = scmp.ne.s32.totalorder %s112, %s126
    %p128 = scmp.eq.s32.totalorder %s34, 0
    %p129 = por %p127, %p128
    %s131 = sadd.s32 %s130, 1
    %p134 = scmp.eq.s32.totalorder %s28, 1
    %p135 = scmp.ne.s32.totalorder %s130, %s132
    %p136 = scmp.eq.s32.totalorder %s28, 0
    %p137 = por %p135, %p136
    %p138 = scmp.ne.s32.totalorder %s130, %s132
    %p139 = scmp.eq.s32.totalorder %s33, 1
    %p140 = por %p138, %p139
    %p141 = scmp.ne.s32.totalorder %s132, %s133
    %p142 = scmp.eq.s32.totalorder %s33, 0
    %p143 = por %p141, %p142
    %p144 = scmp.ne.s32.totalorder %s132, %s133
    %p145 = scmp.eq.s32.totalorder %s34, 1
    %p146 = por %p144, %p145
    %p148 = scmp.ne.s32.totalorder %s133, %s147
    %p149 = scmp.eq.s32.totalorder %s34, 0
    %p150 = por %p148, %p149
    %s152 = sadd.s32 %s151, 1
    %p155 = scmp.eq.s32.totalorder %s28, 1
    %p156 = scmp.ne.s32.totalorder %s151, %s153
    %p157 = scmp.eq.s32.totalorder %s28, 0
    %p158 = por %p156, %p157
    %p159 = scmp.ne.s32.totalorder %s151, %s153
    %p160 = scmp.eq.s32.totalorder %s33, 1
    %p161 = por %p159, %p160
    %p162 = scmp.ne.s32.totalorder %s153, %s154
    %p163 = scmp.eq.s32.totalorder %s33, 0
    %p164 = por %p162, %p163
    %p165 = scmp.ne.s32.totalorder %s153, %s154
    %p166 = scmp.eq.s32.totalorder %s34, 1
    %p167 = por %p165, %p166
    %p169 = scmp.ne.s32.totalorder %s154, %s168
    %p170 = scmp.eq.s32.totalorder %s34, 0
    %p171 = por %p169, %p170
    %s173 = sadd.s32 %s172, 1
    %p176 = scmp.eq.s32.totalorder %s28, 1
    %p177 = scmp.ne.s32.totalorder %s172, %s174
    %p178 = scmp.eq.s32.totalorder %s28, 0
    %p179 = por %p177, %p178
    %p180 = scmp.ne.s32.totalorder %s172, %s174
    %p181 = scmp.eq.s32.totalorder %s33, 1
    %p182 = por %p180, %p181
    %p183 = scmp.ne.s32.totalorder %s174, %s175
    %p184 = scmp.eq.s32.totalorder %s33, 0
    %p185 = por %p183, %p184
    %p186 = scmp.ne.s32.totalorder %s174, %s175
    %p187 = scmp.eq.s32.totalorder %s34, 1
    %p188 = por %p186, %p187
    %p190 = scmp.ne.s32.totalorder %s175, %s189
    %p191 = scmp.eq.s32.totalorder %s34, 0
    %p192 = por %p190, %p191
    %s194 = sadd.s32 %s193, 1
    %p197 = scmp.eq.s32.totalorder %s28, 1
    %p198 = scmp.ne.s32.totalorder %s193, %s195
    %p199 = scmp.eq.s32.totalorder %s28, 0
    %p200 = por %p198, %p199
    %p201 = scmp.ne.s32.totalorder %s193, %s195
    %p202 = scmp.eq.s32.totalorder %s33, 1
    %p203 = por %p201, %p202
    %p204 = scmp.ne.s32.totalorder %s195, %s196
    %p205 = scmp.eq.s32.totalorder %s33, 0
    %p206 = por %p204, %p205
    %p207 = scmp.ne.s32.totalorder %s195, %s196
    %p208 = scmp.eq.s32.totalorder %s34, 1
    %p209 = por %p207, %p208
    %p211 = scmp.ne.s32.totalorder %s196, %s210
    %p212 = scmp.eq.s32.totalorder %s34, 0
    %p213 = por %p211, %p212
    %s215 = sadd.s32 %s214, 1
    %p218 = scmp.eq.s32.totalorder %s28, 1
    %p219 = scmp.ne.s32.totalorder %s214, %s216
    %p220 = scmp.eq.s32.totalorder %s28, 0
    %p221 = por %p219, %p220
    %p222 = scmp.ne.s32.totalorder %s214, %s216
    %p223 = scmp.eq.s32.totalorder %s33, 1
    %p224 = por %p222, %p223
    %p225 = scmp.ne.s32.totalorder %s216, %s217
    %p226 = scmp.eq.s32.totalorder %s33, 0
    %p227 = por %p225, %p226
    %p228 = scmp.ne.s32.totalorder %s216, %s217
    %p229 = scmp.eq.s32.totalorder %s34, 1
    %p230 = por %p228, %p229
    %p232 = scmp.ne.s32.totalorder %s217, %s231
    %p233 = scmp.eq.s32.totalorder %s34, 0
    %p234 = por %p232, %p233
    %s236 = sadd.s32 %s235, 1
    %p239 = scmp.eq.s32.totalorder %s28, 1
    %p240 = scmp.ne.s32.totalorder %s235, %s237
    %p241 = scmp.eq.s32.totalorder %s28, 0
    %p242 = por %p240, %p241
    %p243 = scmp.ne.s32.totalorder %s235, %s237
    %p244 = scmp.eq.s32.totalorder %s33, 1
    %p245 = por %p243, %p244
    %p246 = scmp.ne.s32.totalorder %s237, %s238
    %p247 = scmp.eq.s32.totalorder %s33, 0
    %p248 = por %p246, %p247
    %p249 = scmp.ne.s32.totalorder %s237, %s238
    %p250 = scmp.eq.s32.totalorder %s34, 1
    %p251 = por %p249, %p250
    %p253 = scmp.ne.s32.totalorder %s238, %s252
    %p254 = scmp.eq.s32.totalorder %s34, 0
    %p255 = por %p253, %p254
    %s257 = sadd.s32 %s256, 1
    %p260 = scmp.eq.s32.totalorder %s28, 1
    %p261 = scmp.ne.s32.totalorder %s256, %s258
    %p262 = scmp.eq.s32.totalorder %s28, 0
    %p263 = por %p261, %p262
    %p264 = scmp.ne.s32.totalorder %s256, %s258
    %p265 = scmp.eq.s32.totalorder %s33, 1
    %p266 = por %p264, %p265
    %p267 = scmp.ne.s32.totalorder %s258, %s259
    %p268 = scmp.eq.s32.totalorder %s33, 0
    %p269 = por %p267, %p268
    %p270 = scmp.ne.s32.totalorder %s258, %s259
    %p271 = scmp.eq.s32.totalorder %s34, 1
    %p272 = por %p270, %p271
    %p274 = scmp.ne.s32.totalorder %s259, %s273
    %p275 = scmp.eq.s32.totalorder %s34, 0
    %p276 = por %p274, %p275
    %s278 = sadd.s32 %s277, 1
    %p281 = scmp.eq.s32.totalorder %s28, 1
    %p282 = scmp.ne.s32.totalorder %s277, %s279
    %p283 = scmp.eq.s32.totalorder %s28, 0
    %p284 = por %p282, %p283
    %p285 = scmp.ne.s32.totalorder %s277, %s279
    %p286 = scmp.eq.s32.totalorder %s33, 1
    %p287 = por %p285, %p286
    %p288 = scmp.ne.s32.totalorder %s279, %s280
    %p289 = scmp.eq.s32.totalorder %s33, 0
    %p290 = por %p288, %p289
    %p291 = scmp.ne.s32.totalorder %s279, %s280
    %p292 = scmp.eq.s32.totalorder %s34, 1
    %p293 = por %p291, %p292
    %p295 = scmp.ne.s32.totalorder %s280, %s294
    %p296 = scmp.eq.s32.totalorder %s34, 0
    %p297 = por %p295, %p296
    %s299 = sadd.s32 %s298, 1
    %p302 = scmp.eq.s32.totalorder %s28, 1
    %p303 = scmp.ne.s32.totalorder %s298, %s300
    %p304 = scmp.eq.s32.totalorder %s28, 0
    %p305 = por %p303, %p304
    %p306 = scmp.ne.s32.totalorder %s298, %s300
    %p307 = scmp.eq.s32.totalorder %s33, 1
    %p308 = por %p306, %p307
    %p309 = scmp.ne.s32.totalorder %s300, %s301
    %p310 = scmp.eq.s32.totalorder %s33, 0
    %p311 = por %p309, %p310
    %p312 = scmp.ne.s32.totalorder %s300, %s301
    %p313 = scmp.eq.s32.totalorder %s34, 1
    %p314 = por %p312, %p313
    %p316 = scmp.ne.s32.totalorder %s301, %s315
    %p317 = scmp.eq.s32.totalorder %s34, 0
    %p318 = por %p316, %p317
    %s320 = sadd.s32 %s319, 1
    %p323 = scmp.eq.s32.totalorder %s28, 1
    %p324 = scmp.ne.s32.totalorder %s319, %s321
    %p325 = scmp.eq.s32.totalorder %s28, 0
    %p326 = por %p324, %p325
    %p327 = scmp.ne.s32.totalorder %s319, %s321
    %p328 = scmp.eq.s32.totalorder %s33, 1
    %p329 = por %p327, %p328
    %p330 = scmp.ne.s32.totalorder %s321, %s322
    %p331 = scmp.eq.s32.totalorder %s33, 0
    %p332 = por %p330, %p331
    %p333 = scmp.ne.s32.totalorder %s321, %s322
    %p334 = scmp.eq.s32.totalorder %s34, 1
    %p335 = por %p333, %p334
    %p337 = scmp.ne.s32.totalorder %s322, %s336
    %p338 = scmp.eq.s32.totalorder %s34, 0
    %p339 = por %p337, %p338
    %s341 = sadd.s32 %s340, 1
    %p344 = scmp.eq.s32.totalorder %s28, 1
    %p345 = scmp.ne.s32.totalorder %s340, %s342
    %p346 = scmp.eq.s32.totalorder %s28, 0
    %p347 = por %p345, %p346
    %p348 = scmp.ne.s32.totalorder %s340, %s342
    %p349 = scmp.eq.s32.totalorder %s33, 1
    %p350 = por %p348, %p349
    %p351 = scmp.ne.s32.totalorder %s342, %s343
    %p352 = scmp.eq.s32.totalorder %s33, 0
    %p353 = por %p351, %p352
    %p354 = scmp.ne.s32.totalorder %s342, %s343
    %p355 = scmp.eq.s32.totalorder %s34, 1
    %p356 = por %p354, %p355
    %p358 = scmp.ne.s32.totalorder %s343, %s357
    %p359 = scmp.eq.s32.totalorder %s34, 0
    %p360 = por %p358, %p359
    %s362 = sadd.s32 %s361, 1
    %p365 = scmp.eq.s32.totalorder %s28, 1
    %p366 = scmp.ne.s32.totalorder %s361, %s363
    %p367 = scmp.eq.s32.totalorder %s28, 0
    %p368 = por %p366, %p367
    %p369 = scmp.ne.s32.totalorder %s361, %s363
    %p370 = scmp.eq.s32.totalorder %s33, 1
    %p371 = por %p369, %p370
    %p372 = scmp.ne.s32.totalorder %s363, %s364
    %p373 = scmp.eq.s32.totalorder %s33, 0
    %p374 = por %p372, %p373
    %p375 = scmp.ne.s32.totalorder %s363, %s364
    %p376 = scmp.eq.s32.totalorder %s34, 1
    %p377 = por %p375, %p376
    %p379 = scmp.ne.s32.totalorder %s364, %s378
    %p380 = scmp.eq.s32.totalorder %s34, 0
    %p381 = por %p379, %p380
    %s383 = sadd.s32 %s382, 1
    %p386 = scmp.eq.s32.totalorder %s28, 1
    %p387 = scmp.ne.s32.totalorder %s382, %s384
    %p388 = scmp.eq.s32.totalorder %s28, 0
    %p389 = por %p387, %p388
    %p390 = scmp.ne.s32.totalorder %s382, %s384
    %p391 = scmp.eq.s32.totalorder %s33, 1
    %p392 = por %p390, %p391
    %p393 = scmp.ne.s32.totalorder %s384, %s385
    %p394 = scmp.eq.s32.totalorder %s33, 0
    %p395 = por %p393, %p394
    %p396 = scmp.ne.s32.totalorder %s384, %s385
    %p397 = scmp.eq.s32.totalorder %s34, 1
    %p398 = por %p396, %p397
    %p400 = scmp.ne.s32.totalorder %s385, %s399
    %p401 = scmp.eq.s32.totalorder %s34, 0
    %p402 = por %p400, %p401
    %s404 = sadd.s32 %s403, 1
    %p407 = scmp.eq.s32.totalorder %s28, 1
    %p408 = scmp.ne.s32.totalorder %s403, %s405
    %p409 = scmp.eq.s32.totalorder %s28, 0
    %p410 = por %p408, %p409
    %p411 = scmp.ne.s32.totalorder %s403, %s405
    %p412 = scmp.eq.s32.totalorder %s33, 1
    %p413 = por %p411, %p412
    %p414 = scmp.ne.s32.totalorder %s405, %s406
    %p415 = scmp.eq.s32.totalorder %s33, 0
    %p416 = por %p414, %p415
    %p417 = scmp.ne.s32.totalorder %s405, %s406
    %p418 = scmp.eq.s32.totalorder %s34, 1
    %p419 = por %p417, %p418
    %p421 = scmp.ne.s32.totalorder %s406, %s420
    %p422 = scmp.eq.s32.totalorder %s34, 0
    %p423 = por %p421, %p422
    %s425 = sadd.s32 %s424, 1
    %p428 = scmp.eq.s32.totalorder %s28, 1
    %p429 = scmp.ne.s32.totalorder %s424, %s426
    %p430 = scmp.eq.s32.totalorder %s28, 0
    %p431 = por %p429, %p430
    %p432 = scmp.ne.s32.totalorder %s424, %s426
    %p433 = scmp.eq.s32.totalorder %s33, 1
    %p434 = por %p432, %p433
    %p435 = scmp.ne.s32.totalorder %s426, %s427
    %p436 = scmp.eq.s32.totalorder %s33, 0
    %p437 = por %p435, %p436
    %p438 = scmp.ne.s32.totalorder %s426, %s427
    %p439 = scmp.eq.s32.totalorder %s34, 1
    %p440 = por %p438, %p439
    %p442 = scmp.ne.s32.totalorder %s427, %s441
    %p443 = scmp.eq.s32.totalorder %s34, 0
    %p444 = por %p442, %p443
    %s446 = sadd.s32 %s445, 1
    %p449 = scmp.eq.s32.totalorder %s28, 1
    %p450 = scmp.ne.s32.totalorder %s445, %s447
    %p451 = scmp.eq.s32.totalorder %s28, 0
    %p452 = por %p450, %p451
    %p453 = scmp.ne.s32.totalorder %s445, %s447
    %p454 = scmp.eq.s32.totalorder %s33, 1
    %p455 = por %p453, %p454
    %p456 = scmp.ne.s32.totalorder %s447, %s448
    %p457 = scmp.eq.s32.totalorder %s33, 0
    %p458 = por %p456, %p457
    %p459 = scmp.ne.s32.totalorder %s447, %s448
    %p460 = scmp.eq.s32.totalorder %s34, 1
    %p461 = por %p459, %p460
    %p463 = scmp.ne.s32.totalorder %s448, %s462
    %p464 = scmp.eq.s32.totalorder %s34, 0
    %p465 = por %p463, %p464
    %s466 = ssub.s32 %s28, %s35
    %p467 = scmp.eq.s32.totalorder %s466, 0
    %s469 = sadd.s32 %s468, 1
    %s470 = scalar_select %p467, %s468, %s469
    %p473 = pneg %p467
    %p474 = scmp.eq.s32.totalorder %s28, 1
    %p475 = por %p473, %p474
    %p476 = scmp.ne.s32.totalorder %s468, %s471
    %p477 = scmp.eq.s32.totalorder %s28, 0
    %p478 = por %p476, %p477
    %p479 = scmp.ne.s32.totalorder %s468, %s471
    %p480 = scmp.eq.s32.totalorder %s33, 1
    %p481 = por %p479, %p480
    %p482 = scmp.ne.s32.totalorder %s471, %s472
    %p483 = scmp.eq.s32.totalorder %s33, 0
    %p484 = por %p482, %p483
    %p485 = scmp.ne.s32.totalorder %s471, %s472
    %p486 = scmp.eq.s32.totalorder %s34, 1
    %p487 = por %p485, %p486
    %p489 = scmp.ne.s32.totalorder %s472, %s488
    %p490 = scmp.eq.s32.totalorder %s34, 0
    %p491 = por %p489, %p490
    %p492 = scmp.le.s32.totalorder 1, %s28
    %p493 = scmp.lt.s32.totalorder %s28, 3
    %p494 = pnand %p492, %p493
    %p495 = pneg %p494
    // Predicated region
    $region9: #{cross_encoder_forward.2} parent=5 // pred_check
      _
    $region10: #{cross_encoder_forward.2} parent=5 // pred_check_branch
      %497 = sbr.rel (%p494) target = $region12
    $region11: #{cross_encoder_forward.2} parent=5 // pred_region
      %s498 = ssub.s32 %s28, 1
      // Predicated region
      $region13: #{cross_encoder_forward.2} parent=11 // pred_check
        %p499 = pneg %p101
      $region14: #{cross_encoder_forward.2} parent=11 // pred_check_branch
        %501 = sbr.rel (%p499) target = $region16
      $region15: #{cross_encoder_forward.2} parent=11 // pred_region
        _
      $region16: #{cross_encoder_forward.2} parent=11 // pred_fallthru
        _
      // Predicated region
      $region17: #{cross_encoder_forward.2} parent=11 // pred_check
        %p502 = pneg %p122
      $region18: #{cross_encoder_forward.2} parent=11 // pred_check_branch
        %504 = sbr.rel (%p502) target = $region20
      $region19: #{cross_encoder_forward.2} parent=11 // pred_region
        _
      $region20: #{cross_encoder_forward.2} parent=11 // pred_fallthru
        _
      // Predicated region
      $region21: #{cross_encoder_forward.2} parent=11 // pred_check
        %p505 = pneg %p143
      $region22: #{cross_encoder_forward.2} parent=11 // pred_check_branch
        %507 = sbr.rel (%p505) target = $region24
      $region23: #{cross_encoder_forward.2} parent=11 // pred_region
        _
      $region24: #{cross_encoder_forward.2} parent=11 // pred_fallthru
        _
      // Predicated region
      $region25: #{cross_encoder_forward.2} parent=11 // pred_check
        %p508 = pneg %p164
      $region26: #{cross_encoder_forward.2} parent=11 // pred_check_branch
        %510 = sbr.rel (%p508) target = $region28
      $region27: #{cross_encoder_forward.2} parent=11 // pred_region
        _
      $region28: #{cross_encoder_forward.2} parent=11 // pred_fallthru
        _
      // Predicated region
      $region29: #{cross_encoder_forward.2} parent=11 // pred_check
        %p511 = pneg %p185
      $region30: #{cross_encoder_forward.2} parent=11 // pred_check_branch
        %513 = sbr.rel (%p511) target = $region32
      $region31: #{cross_encoder_forward.2} parent=11 // pred_region
        _
      $region32: #{cross_encoder_forward.2} parent=11 // pred_fallthru
        _
      // Predicated region
      $region33: #{cross_encoder_forward.2} parent=11 // pred_check
        %p514 = pneg %p206
      $region34: #{cross_encoder_forward.2} parent=11 // pred_check_branch
        %516 = sbr.rel (%p514) target = $region36
      $region35: #{cross_encoder_forward.2} parent=11 // pred_region
        _
      $region36: #{cross_encoder_forward.2} parent=11 // pred_fallthru
        _
      // Predicated region
      $region37: #{cross_encoder_forward.2} parent=11 // pred_check
        %p517 = pneg %p227
      $region38: #{cross_encoder_forward.2} parent=11 // pred_check_branch
        %519 = sbr.rel (%p517) target = $region40
      $region39: #{cross_encoder_forward.2} parent=11 // pred_region
        _
      $region40: #{cross_encoder_forward.2} parent=11 // pred_fallthru
        _
      // Predicated region
      $region41: #{cross_encoder_forward.2} parent=11 // pred_check
        %p520 = pneg %p248
      $region42: #{cross_encoder_forward.2} parent=11 // pred_check_branch
        %522 = sbr.rel (%p520) target = $region44
      $region43: #{cross_encoder_forward.2} parent=11 // pred_region
        _
      $region44: #{cross_encoder_forward.2} parent=11 // pred_fallthru
        _
      // Predicated region
      $region45: #{cross_encoder_forward.2} parent=11 // pred_check
        %p523 = pneg %p269
      $region46: #{cross_encoder_forward.2} parent=11 // pred_check_branch
        %525 = sbr.rel (%p523) target = $region48
      $region47: #{cross_encoder_forward.2} parent=11 // pred_region
        _
      $region48: #{cross_encoder_forward.2} parent=11 // pred_fallthru
        _
      // Predicated region
      $region49: #{cross_encoder_forward.2} parent=11 // pred_check
        %p526 = pneg %p290
      $region50: #{cross_encoder_forward.2} parent=11 // pred_check_branch
        %528 = sbr.rel (%p526) target = $region52
      $region51: #{cross_encoder_forward.2} parent=11 // pred_region
        _
      $region52: #{cross_encoder_forward.2} parent=11 // pred_fallthru
        _
      // Predicated region
      $region53: #{cross_encoder_forward.2} parent=11 // pred_check
        %p529 = pneg %p311
      $region54: #{cross_encoder_forward.2} parent=11 // pred_check_branch
        %531 = sbr.rel (%p529) target = $region56
      $region55: #{cross_encoder_forward.2} parent=11 // pred_region
        _
      $region56: #{cross_encoder_forward.2} parent=11 // pred_fallthru
        _
      // Predicated region
      $region57: #{cross_encoder_forward.2} parent=11 // pred_check
        %p532 = pneg %p332
      $region58: #{cross_encoder_forward.2} parent=11 // pred_check_branch
        %534 = sbr.rel (%p532) target = $region60
      $region59: #{cross_encoder_forward.2} parent=11 // pred_region
        _
      $region60: #{cross_encoder_forward.2} parent=11 // pred_fallthru
        _
      // Predicated region
      $region61: #{cross_encoder_forward.2} parent=11 // pred_check
        %p535 = pneg %p353
      $region62: #{cross_encoder_forward.2} parent=11 // pred_check_branch
        %537 = sbr.rel (%p535) target = $region64
      $region63: #{cross_encoder_forward.2} parent=11 // pred_region
        _
      $region64: #{cross_encoder_forward.2} parent=11 // pred_fallthru
        _
      // Predicated region
      $region65: #{cross_encoder_forward.2} parent=11 // pred_check
        %p538 = pneg %p374
      $region66: #{cross_encoder_forward.2} parent=11 // pred_check_branch
        %540 = sbr.rel (%p538) target = $region68
      $region67: #{cross_encoder_forward.2} parent=11 // pred_region
        _
      $region68: #{cross_encoder_forward.2} parent=11 // pred_fallthru
        _
      // Predicated region
      $region69: #{cross_encoder_forward.2} parent=11 // pred_check
        %p541 = pneg %p395
      $region70: #{cross_encoder_forward.2} parent=11 // pred_check_branch
        %543 = sbr.rel (%p541) target = $region72
      $region71: #{cross_encoder_forward.2} parent=11 // pred_region
        _
      $region72: #{cross_encoder_forward.2} parent=11 // pred_fallthru
        _
      // Predicated region
      $region73: #{cross_encoder_forward.2} parent=11 // pred_check
        %p544 = pneg %p416
      $region74: #{cross_encoder_forward.2} parent=11 // pred_check_branch
        %546 = sbr.rel (%p544) target = $region76
      $region75: #{cross_encoder_forward.2} parent=11 // pred_region
        _
      $region76: #{cross_encoder_forward.2} parent=11 // pred_fallthru
        _
      // Predicated region
      $region77: #{cross_encoder_forward.2} parent=11 // pred_check
        %p547 = pneg %p437
      $region78: #{cross_encoder_forward.2} parent=11 // pred_check_branch
        %549 = sbr.rel (%p547) target = $region80
      $region79: #{cross_encoder_forward.2} parent=11 // pred_region
        _
      $region80: #{cross_encoder_forward.2} parent=11 // pred_fallthru
        _
      // Predicated region
      $region81: #{cross_encoder_forward.2} parent=11 // pred_check
        %p550 = pneg %p458
      $region82: #{cross_encoder_forward.2} parent=11 // pred_check_branch
        %552 = sbr.rel (%p550) target = $region84
      $region83: #{cross_encoder_forward.2} parent=11 // pred_region
        _
      $region84: #{cross_encoder_forward.2} parent=11 // pred_fallthru
        _
    $region12: #{cross_encoder_forward.2} parent=5 // pred_fallthru
      _
    %p553 = scmp.lt.s32.totalorder %s28, 2
    // Predicated region
    $region85: #{cross_encoder_forward.2} parent=5 // pred_check
      %p554 = pneg %p553
    $region86: #{cross_encoder_forward.2} parent=5 // pred_check_branch
      %556 = sbr.rel (%p554) target = $region88
    $region87: #{cross_encoder_forward.2} parent=5 // pred_region
      // Predicated region
      $region89: #{cross_encoder_forward.2} parent=87 // pred_check
        %p557 = pneg %p48
      $region90: #{cross_encoder_forward.2} parent=87 // pred_check_branch
        %559 = sbr.rel (%p557) target = $region92
      $region91: #{cross_encoder_forward.2} parent=87 // pred_region
        %p560 = scmp.lt.s32.totalorder %s28, 1
        %s561 = scalar_select %p560, %s28, 1
        %s562 = smul.addr %s561, 8
        %s563 = scalar_lea.vmem %s0, %s562
      $region92: #{cross_encoder_forward.2} parent=87 // pred_fallthru
        _
      // Predicated region
      $region93: #{cross_encoder_forward.2} parent=87 // pred_check
        %p564 = pneg %p74
      $region94: #{cross_encoder_forward.2} parent=87 // pred_check_branch
        %566 = sbr.rel (%p564) target = $region96
      $region95: #{cross_encoder_forward.2} parent=87 // pred_region
        %p567 = scmp.lt.s32.totalorder %s28, 1
        %s568 = scalar_select %p567, %s28, 1
        %s569 = scalar_lea.vmem %s1, %s568
      $region96: #{cross_encoder_forward.2} parent=87 // pred_fallthru
        _
    $region88: #{cross_encoder_forward.2} parent=5 // pred_fallthru
      _
    %p570 = scmp.le.s32.totalorder 1, %s28
    %p571 = scmp.lt.s32.totalorder %s28, 3
    %p572 = pnand %p570, %p571
    %p573 = pneg %p572
    // Predicated region
    $region97: #{cross_encoder_forward.2} parent=5 // pred_check
      _
    $region98: #{cross_encoder_forward.2} parent=5 // pred_check_branch
      %575 = sbr.rel (%p572) target = $region100
    $region99: #{cross_encoder_forward.2} parent=5 // pred_region
      %s576 = ssub.s32 %s28, 1
      %p577 = scmp.lt.s32.totalorder %s33, 1
      %s578 = scalar_select %p577, %s33, 1
      %s579 = smul.addr %s578, 8
      %s580 = scalar_lea.vmem %s0, %s579
      %p581 = pneg %p54
      %p582 = pneg %p51
      %p583 = scmp.lt.s32.totalorder %s33, 1
      %s584 = scalar_select %p583, %s33, 1
      %s585 = scalar_lea.vmem %s1, %s584
      %p586 = pneg %p80
      %p587 = pneg %p77
      %p588 = pneg %p101
      %p589 = pneg %p98
      %p590 = pneg %p122
      %p591 = pneg %p119
      %p592 = pneg %p143
      %p593 = pneg %p140
      %p594 = pneg %p164
      %p595 = pneg %p161
      %p596 = pneg %p185
      %p597 = pneg %p182
      %p598 = pneg %p206
      %p599 = pneg %p203
      %p600 = pneg %p227
      %p601 = pneg %p224
      %p602 = pneg %p248
      %p603 = pneg %p245
      %p604 = pneg %p269
      %p605 = pneg %p266
      %p606 = pneg %p290
      %p607 = pneg %p287
      %p608 = pneg %p311
      %p609 = pneg %p308
      %p610 = pneg %p332
      %p611 = pneg %p329
      %p612 = pneg %p353
      %p613 = pneg %p350
      %p614 = pneg %p374
      %p615 = pneg %p371
      %p616 = pneg %p395
      %p617 = pneg %p392
      %p618 = pneg %p416
      %p619 = pneg %p413
      %p620 = pneg %p437
      %p621 = pneg %p434
      %p622 = pneg %p458
      %p623 = pneg %p455
      %p624 = pneg %p484
      %p625 = pneg %p481
      %p626 = scmp.lt.s32.totalorder %s33, 1
      %s627 = scalar_select %p626, %s33, 1
      %s628 = scalar_lea.vmem %s20, %s627
      %p629 = scmp.lt.s32.totalorder %s33, 1
      %s630 = scalar_select %p629, %s33, 1
      %s631 = smul.addr %s630, 8
      %s632 = scalar_lea.vmem %s0, %s631
      %p633 = scmp.lt.s32.totalorder %s33, 1
      %s634 = scalar_select %p633, %s33, 1
      %s635 = scalar_lea.vmem %s1, %s634
      %p636 = scmp.lt.s32.totalorder %s33, 1
      %s637 = scalar_select %p636, %s33, 1
      %s638 = scalar_lea.vmem %s20, %s637
      %v640 = vld [vmem:[%s632] sm:$0xff]
      %v641 = vld [vmem:[%s635] sm:$0x1]
      %v642 = vld [vmem:[%s2] sm:$0x1]
      %v643 = vld [vmem:[%s3] sm:$0x1]
      %vm644 = vcmask 261120
      %v645 = vsel %vm644, %v640, 0.0
      %646 = vadd.xlane.f32.xlu0 %v645
      %v647 = vpop.xlane.xlu0 %646
      %v648 = vrcp.pop 32.0
      %v649 = vmul.f32 %v647, %v648
      %v650 = vsub.f32 %v640, %v649
      %v651 = vmul.f32 %v650, %v650
      %v652 = vsel %vm644, %v651, 0.0
      %653 = vadd.xlane.f32.xlu0 %v652
      %v654 = vpop.xlane.xlu0 %653
      %v655 = vmul.f32 %v654, %v648
      %v656 = vadd.f32 %v655, 1e-12
      %v657 = vrsqrt.pop %v656
      %v658 = vmul.f32 %v650, %v657
      %v660 = vlaneseq
      %v661 = vshrl.u32 %v660, 7
      %v662 = vsub.s32 0, %v661
      %v663 = vrot.slane %v642, %v662
      %v665 = vmul.f32 %v658, %v663
      %v667 = vlaneseq
      %v668 = vshrl.u32 %v667, 7
      %v669 = vsub.s32 0, %v668
      %v670 = vrot.slane %v643, %v669
      %v672 = vadd.f32 %v665, %v670
      %v673 = vpack.c.bf16 %v672, %v672
      %v674 = vld [vmem:[%s4] sm:$0xf]
      %v675 = vld [vmem:[%s4 + $0x4] sm:$0xf]
      %v676 = vld [vmem:[%s4 + $0x8] sm:$0xf]
      %v677 = vld [vmem:[%s4 + $0xc] sm:$0xf]
      %v678 = vld [vmem:[%s5] sm:$0x1]
      %v680 = vlaneseq
      %v681 = vshrl.u32 %v680, 7
      %v682 = vsub.s32 0, %v681
      %v683 = vrot.slane %v678, %v682
      %v689 = vunpack.c.l.b16 %v674
      %v690 = vunpack.c.l.b16 %v675
      %v691 = vunpack.c.l.b16 %v676
      %v692 = vunpack.c.l.b16 %v677
      %v693 = vpack.c.b16 %v690, %v689
      %v694 = vpack.c.b16 %v692, %v691
      %v698 = vsel %vm644, %v673, 0
      %700 = vmatprep.subr.bf16.mxu0 0
      %701 = vmatpush1.bf16.msra.mxu0 %v693
      %702 = vmatprep.subr.bf16.mxu0 0
      %703 = vmatpush1.bf16.msra.mxu0 %v694
      %704 = vmatprep.subr.bf16.mxu0 0
      %705 = vmatpush1.bf16.msra.mxu0 0
      %706 = vmatprep.subr.bf16.mxu0 0
      %707 = vmatpush1.bf16.msra.mxu0 0
      %708 = vmatprep.subr.bf16.mxu0 0
      %709 = vmatpush1.bf16.msra.mxu0 0
      %710 = vmatprep.subr.bf16.mxu0 0
      %711 = vmatpush1.bf16.msra.mxu0 0
      %712 = vmatprep.subr.bf16.mxu0 0
      %713 = vmatpush1.bf16.msra.mxu0 0
      %714 = vmatprep.subr.bf16.mxu0 0
      %715 = vmatpush1.bf16.msra.mxu0 0
      %716 = vmatprep.subr.bf16.mxu0 0
      %717 = vmatpush1.bf16.msra.mxu0 0
      %718 = vmatprep.subr.bf16.mxu0 0
      %719 = vmatpush1.bf16.msra.mxu0 0
      %720 = vmatprep.subr.bf16.mxu0 0
      %721 = vmatpush1.bf16.msra.mxu0 0
      %722 = vmatprep.subr.bf16.mxu0 0
      %723 = vmatpush1.bf16.msra.mxu0 0
      %724 = vmatprep.subr.bf16.mxu0 0
      %725 = vmatpush1.bf16.msra.mxu0 0
      %726 = vmatprep.subr.bf16.mxu0 0
      %727 = vmatpush1.bf16.msra.mxu0 0
      %728 = vmatprep.subr.bf16.mxu0 0
      %729 = vmatpush1.bf16.msra.mxu0 0
      %730 = vmatprep.subr.bf16.mxu0 0
      %731 = vmatpush1.bf16.msra.mxu0 0
      %732 = vmatprep.mubr.bf16.mxu0 0
      %733 = vmatmul.mubr.bf16.gmra.mrb[0].mxu0 %v698
      %v734 = vpop.f32.mrb[0].mxu0
      %v735 = vadd.f32 %v683, %v734
      %v736 = vpop.f32.mrb[0].mxu0
      %v737 = vpop.f32.mrb[0].mxu0
      %v738 = vpop.f32.mrb[0].mxu0
      %739 = vdwg.mxu0
      %v740 = vpack.c.bf16 %v735, %v735
      %742 = vrot.lane.b32.xlu0 %v740, 96
      %v743 = vpop.permute.xlu0 %742
      %vm744 = vcmask 64512
      %v746 = vsel %vm744, %v740, 0
      %v749 = vsel %vm744, %v743, 0
      %751 = vmatprep.subr.bf16.mxu0 0
      %752 = vmatpush1.bf16.xpose.msra.mxu0 %v749
      %753 = vmatprep.subr.bf16.mxu0 0
      %754 = vmatpush1.bf16.xpose.msra.mxu0 0
      %755 = vmatprep.subr.bf16.mxu0 0
      %756 = vmatpush1.bf16.xpose.msra.mxu0 0
      %757 = vmatprep.subr.bf16.mxu0 0
      %758 = vmatpush1.bf16.xpose.msra.mxu0 0
      %759 = vmatprep.subr.bf16.mxu0 0
      %760 = vmatpush1.bf16.xpose.msra.mxu0 0
      %761 = vmatprep.subr.bf16.mxu0 0
      %762 = vmatpush1.bf16.xpose.msra.mxu0 0
      %763 = vmatprep.subr.bf16.mxu0 0
      %764 = vmatpush1.bf16.xpose.msra.mxu0 0
      %765 = vmatprep.subr.bf16.mxu0 0
      %766 = vmatpush1.bf16.xpose.msra.mxu0 0
      %767 = vmatprep.subr.bf16.mxu0 0
      %768 = vmatpush1.bf16.xpose.msra.mxu0 0
      %769 = vmatprep.subr.bf16.mxu0 0
      %770 = vmatpush1.bf16.xpose.msra.mxu0 0
      %771 = vmatprep.subr.bf16.mxu0 0
      %772 = vmatpush1.bf16.xpose.msra.mxu0 0
      %773 = vmatprep.subr.bf16.mxu0 0
      %774 = vmatpush1.bf16.xpose.msra.mxu0 0
      %775 = vmatprep.subr.bf16.mxu0 0
      %776 = vmatpush1.bf16.xpose.msra.mxu0 0
      %777 = vmatprep.subr.bf16.mxu0 0
      %778 = vmatpush1.bf16.xpose.msra.mxu0 0
      %779 = vmatprep.subr.bf16.mxu0 0
      %780 = vmatpush1.bf16.xpose.msra.mxu0 0
      %781 = vmatprep.subr.bf16.mxu0 0
      %782 = vmatpush1.bf16.xpose.msra.mxu0 0
      %783 = vmatprep.mubr.bf16.mxu0 0
      %784 = vmatmul.mubr.bf16.gmra.mrb[0].mxu0 %v746
      %v785 = vpop.f32.mrb[0].mxu0
      %v786 = vadd.f32 0.0, %v785
      %v787 = vpop.f32.mrb[0].mxu0
      %v788 = vpop.f32.mrb[0].mxu0
      %v789 = vpop.f32.mrb[0].mxu0
      %790 = vdwg.mxu0
      %v791 = vmul.f32 %v786, 0.35355338
      %v793 = vlaneseq
      %v794 = vshrl.u32 %v793, 7
      %v795 = vsub.s32 0, %v794
      %v796 = vrot.slane %v641, %v795
      %v798 = vadd.f32 %v791, %v796
      %v799 = vsel %vm744, %v798, -inf
      %800 = vmax.xlane.f32.xlu0 %v799
      %v801 = vpop.xlane.xlu0 %800
      %v802 = vsub.f32 %v798, %v801
      %v803 = vmul.f32 %v802, 1.442695
      %v804 = vpow.pop %v803
      %v805 = vsel %vm744, %v804, 0.0
      %806 = vadd.xlane.f32.xlu0 %v805
      %v807 = vpop.xlane.xlu0 %806
      %v808 = vrcp.pop %v807
      %v809 = vmul.f32 %v804, %v808
      %v810 = vpack.c.bf16 %v809, %v809
      %811 = vrot.lane.b32.xlu0 %v740, 64
      %v812 = vpop.permute.xlu0 %811
      %v814 = vsel %vm744, %v810, 0
      %vm816 = vcmask 1043456
      %v818 = vsel %vm816, %v812, 0
      %820 = vmatprep.subr.bf16.mxu0 0
      %821 = vmatpush1.bf16.msra.mxu0 %v818
      %822 = vmatprep.subr.bf16.mxu0 0
      %823 = vmatpush1.bf16.msra.mxu0 0
      %824 = vmatprep.subr.bf16.mxu0 0
      %825 = vmatpush1.bf16.msra.mxu0 0
      %826 = vmatprep.subr.bf16.mxu0 0
      %827 = vmatpush1.bf16.msra.mxu0 0
      %828 = vmatprep.subr.bf16.mxu0 0
      %829 = vmatpush1.bf16.msra.mxu0 0
      %830 = vmatprep.subr.bf16.mxu0 0
      %831 = vmatpush1.bf16.msra.mxu0 0
      %832 = vmatprep.subr.bf16.mxu0 0
      %833 = vmatpush1.bf16.msra.mxu0 0
      %834 = vmatprep.subr.bf16.mxu0 0
      %835 = vmatpush1.bf16.msra.mxu0 0
      %836 = vmatprep.subr.bf16.mxu0 0
      %837 = vmatpush1.bf16.msra.mxu0 0
      %838 = vmatprep.subr.bf16.mxu0 0
      %839 = vmatpush1.bf16.msra.mxu0 0
      %840 = vmatprep.subr.bf16.mxu0 0
      %841 = vmatpush1.bf16.msra.mxu0 0
      %842 = vmatprep.subr.bf16.mxu0 0
      %843 = vmatpush1.bf16.msra.mxu0 0
      %844 = vmatprep.subr.bf16.mxu0 0
      %845 = vmatpush1.bf16.msra.mxu0 0
      %846 = vmatprep.subr.bf16.mxu0 0
      %847 = vmatpush1.bf16.msra.mxu0 0
      %848 = vmatprep.subr.bf16.mxu0 0
      %849 = vmatpush1.bf16.msra.mxu0 0
      %850 = vmatprep.subr.bf16.mxu0 0
      %851 = vmatpush1.bf16.msra.mxu0 0
      %852 = vmatprep.mubr.bf16.mxu0 0
      %853 = vmatmul.mubr.bf16.gmra.mrb[0].mxu0 %v814
      %v854 = vpop.f32.mrb[0].mxu0
      %v855 = vadd.f32 0.0, %v854
      %v856 = vpop.f32.mrb[0].mxu0
      %v857 = vpop.f32.mrb[0].mxu0
      %v858 = vpop.f32.mrb[0].mxu0
      %859 = vdwg.mxu0
      %860 = vrot.lane.b32.xlu0 %v740, 120
      %v861 = vpop.permute.xlu0 %860
      %862 = vrot.lane.b32.xlu0 %v740, 88
      %v863 = vpop.permute.xlu0 %862
      %v865 = vsel %vm744, %v861, 0
      %v868 = vsel %vm744, %v863, 0
      %870 = vmatprep.subr.bf16.mxu0 0
      %871 = vmatpush1.bf16.xpose.msra.mxu0 %v868
      %872 = vmatprep.subr.bf16.mxu0 0
      %873 = vmatpush1.bf16.xpose.msra.mxu0 0
      %874 = vmatprep.subr.bf16.mxu0 0
      %875 = vmatpush1.bf16.xpose.msra.mxu0 0
      %876 = vmatprep.subr.bf16.mxu0 0
      %877 = vmatpush1.bf16.xpose.msra.mxu0 0
      %878 = vmatprep.subr.bf16.mxu0 0
      %879 = vmatpush1.bf16.xpose.msra.mxu0 0
      %880 = vmatprep.subr.bf16.mxu0 0
      %881 = vmatpush1.bf16.xpose.msra.mxu0 0
      %882 = vmatprep.subr.bf16.mxu0 0
      %883 = vmatpush1.bf16.xpose.msra.mxu0 0
      %884 = vmatprep.subr.bf16.mxu0 0
      %885 = vmatpush1.bf16.xpose.msra.mxu0 0
      %886 = vmatprep.subr.bf16.mxu0 0
      %887 = vmatpush1.bf16.xpose.msra.mxu0 0
      %888 = vmatprep.subr.bf16.mxu0 0
      %889 = vmatpush1.bf16.xpose.msra.mxu0 0
      %890 = vmatprep.subr.bf16.mxu0 0
      %891 = vmatpush1.bf16.xpose.msra.mxu0 0
      %892 = vmatprep.subr.bf16.mxu0 0
      %893 = vmatpush1.bf16.xpose.msra.mxu0 0
      %894 = vmatprep.subr.bf16.mxu0 0
      %895 = vmatpush1.bf16.xpose.msra.mxu0 0
      %896 = vmatprep.subr.bf16.mxu0 0
      %897 = vmatpush1.bf16.xpose.msra.mxu0 0
      %898 = vmatprep.subr.bf16.mxu0 0
      %899 = vmatpush1.bf16.xpose.msra.mxu0 0
      %900 = vmatprep.subr.bf16.mxu0 0
      %901 = vmatpush1.bf16.xpose.msra.mxu0 0
      %902 = vmatprep.mubr.bf16.mxu0 0
      %903 = vmatmul.mubr.bf16.gmra.mrb[0].mxu0 %v865
      %v904 = vpop.f32.mrb[0].mxu0
      %v905 = vadd.f32 0.0, %v904
      %v906 = vpop.f32.mrb[0].mxu0
      %v907 = vpop.f32.mrb[0].mxu0
      %v908 = vpop.f32.mrb[0].mxu0
      %909 = vdwg.mxu0
      %v910 = vmul.f32 %v905, 0.35355338
      %v911 = vadd.f32 %v910, %v796
      %v912 = vsel %vm744, %v911, -inf
      %913 = vmax.xlane.f32.xlu0 %v912
      %v914 = vpop.xlane.xlu0 %913
      %v915 = vsub.f32 %v911, %v914
      %v916 = vmul.f32 %v915, 1.442695
      %v917 = vpow.pop %v916
      %v918 = vsel %vm744, %v917, 0.0
      %919 = vadd.xlane.f32.xlu0 %v918
      %v920 = vpop.xlane.xlu0 %919
      %v921 = vrcp.pop %v920
      %v922 = vmul.f32 %v917, %v921
      %v923 = vpack.c.bf16 %v922, %v922
      %924 = vrot.lane.b32.xlu0 %v740, 56
      %v925 = vpop.permute.xlu0 %924
      %v927 = vsel %vm744, %v923, 0
      %v930 = vsel %vm816, %v925, 0
      %932 = vmatprep.subr.bf16.mxu0 0
      %933 = vmatpush1.bf16.msra.mxu0 %v930
      %934 = vmatprep.subr.bf16.mxu0 0
      %935 = vmatpush1.bf16.msra.mxu0 0
      %936 = vmatprep.subr.bf16.mxu0 0
      %937 = vmatpush1.bf16.msra.mxu0 0
      %938 = vmatprep.subr.bf16.mxu0 0
      %939 = vmatpush1.bf16.msra.mxu0 0
      %940 = vmatprep.subr.bf16.mxu0 0
      %941 = vmatpush1.bf16.msra.mxu0 0
      %942 = vmatprep.subr.bf16.mxu0 0
      %943 = vmatpush1.bf16.msra.mxu0 0
      %944 = vmatprep.subr.bf16.mxu0 0
      %945 = vmatpush1.bf16.msra.mxu0 0
      %946 = vmatprep.subr.bf16.mxu0 0
      %947 = vmatpush1.bf16.msra.mxu0 0
      %948 = vmatprep.subr.bf16.mxu0 0
      %949 = vmatpush1.bf16.msra.mxu0 0
      %950 = vmatprep.subr.bf16.mxu0 0
      %951 = vmatpush1.bf16.msra.mxu0 0
      %952 = vmatprep.subr.bf16.mxu0 0
      %953 = vmatpush1.bf16.msra.mxu0 0
      %954 = vmatprep.subr.bf16.mxu0 0
      %955 = vmatpush1.bf16.msra.mxu0 0
      %956 = vmatprep.subr.bf16.mxu0 0
      %957 = vmatpush1.bf16.msra.mxu0 0
      %958 = vmatprep.subr.bf16.mxu0 0
      %959 = vmatpush1.bf16.msra.mxu0 0
      %960 = vmatprep.subr.bf16.mxu0 0
      %961 = vmatpush1.bf16.msra.mxu0 0
      %962 = vmatprep.subr.bf16.mxu0 0
      %963 = vmatpush1.bf16.msra.mxu0 0
      %964 = vmatprep.mubr.bf16.mxu0 0
      %965 = vmatmul.mubr.bf16.gmra.mrb[0].mxu0 %v927
      %v966 = vpop.f32.mrb[0].mxu0
      %v967 = vadd.f32 0.0, %v966
      %v968 = vpop.f32.mrb[0].mxu0
      %v969 = vpop.f32.mrb[0].mxu0
      %v970 = vpop.f32.mrb[0].mxu0
      %971 = vdwg.mxu0
      %972 = vrot.lane.b32.xlu0 %v740, 112
      %v973 = vpop.permute.xlu0 %972
      %974 = vrot.lane.b32.xlu0 %v740, 80
      %v975 = vpop.permute.xlu0 %974
      %v977 = vsel %vm744, %v973, 0
      %v980 = vsel %vm744, %v975, 0
      %982 = vmatprep.subr.bf16.mxu0 0
      %983 = vmatpush1.bf16.xpose.msra.mxu0 %v980
      %984 = vmatprep.subr.bf16.mxu0 0
      %985 = vmatpush1.bf16.xpose.msra.mxu0 0
      %986 = vmatprep.subr.bf16.mxu0 0
      %987 = vmatpush1.bf16.xpose.msra.mxu0 0
      %988 = vmatprep.subr.bf16.mxu0 0
      %989 = vmatpush1.bf16.xpose.msra.mxu0 0
      %990 = vmatprep.subr.bf16.mxu0 0
      %991 = vmatpush1.bf16.xpose.msra.mxu0 0
      %992 = vmatprep.subr.bf16.mxu0 0
      %993 = vmatpush1.bf16.xpose.msra.mxu0 0
      %994 = vmatprep.subr.bf16.mxu0 0
      %995 = vmatpush1.bf16.xpose.msra.mxu0 0
      %996 = vmatprep.subr.bf16.mxu0 0
      %997 = vmatpush1.bf16.xpose.msra.mxu0 0
      %998 = vmatprep.subr.bf16.mxu0 0
      %999 = vmatpush1.bf16.xpose.msra.mxu0 0
      %1000 = vmatprep.subr.bf16.mxu0 0
      %1001 = vmatpush1.bf16.xpose.msra.mxu0 0
      %1002 = vmatprep.subr.bf16.mxu0 0
      %1003 = vmatpush1.bf16.xpose.msra.mxu0 0
      %1004 = vmatprep.subr.bf16.mxu0 0
      %1005 = vmatpush1.bf16.xpose.msra.mxu0 0
      %1006 = vmatprep.subr.bf16.mxu0 0
      %1007 = vmatpush1.bf16.xpose.msra.mxu0 0
      %1008 = vmatprep.subr.bf16.mxu0 0
      %1009 = vmatpush1.bf16.xpose.msra.mxu0 0
      %1010 = vmatprep.subr.bf16.mxu0 0
      %1011 = vmatpush1.bf16.xpose.msra.mxu0 0
      %1012 = vmatprep.subr.bf16.mxu0 0
      %1013 = vmatpush1.bf16.xpose.msra.mxu0 0
      %1014 = vmatprep.mubr.bf16.mxu0 0
      %1015 = vmatmul.mubr.bf16.gmra.mrb[0].mxu0 %v977
      %v1016 = vpop.f32.mrb[0].mxu0
      %v1017 = vadd.f32 0.0, %v1016
      %v1018 = vpop.f32.mrb[0].mxu0
      %v1019 = vpop.f32.mrb[0].mxu0
      %v1020 = vpop.f32.mrb[0].mxu0
      %1021 = vdwg.mxu0
      %v1022 = vmul.f32 %v1017, 0.35355338
      %v1023 = vadd.f32 %v1022, %v796
      %v1024 = vsel %vm744, %v1023, -inf
      %1025 = vmax.xlane.f32.xlu0 %v1024
      %v1026 = vpop.xlane.xlu0 %1025
      %v1027 = vsub.f32 %v1023, %v1026
      %v1028 = vmul.f32 %v1027, 1.442695
      %v1029 = vpow.pop %v1028
      %v1030 = vsel %vm744, %v1029, 0.0
      %1031 = vadd.xlane.f32.xlu0 %v1030
      %v1032 = vpop.xlane.xlu0 %1031
      %v1033 = vrcp.pop %v1032
      %v1034 = vmul.f32 %v1029, %v1033
      %v1035 = vpack.c.bf16 %v1034, %v1034
      %1036 = vrot.lane.b32.xlu0 %v740, 48
      %v1037 = vpop.permute.xlu0 %1036
      %v1039 = vsel %vm744, %v1035, 0
      %v1042 = vsel %vm816, %v1037, 0
      %1044 = vmatprep.subr.bf16.mxu0 0
      %1045 = vmatpush1.bf16.msra.mxu0 %v1042
      %1046 = vmatprep.subr.bf16.mxu0 0
      %1047 = vmatpush1.bf16.msra.mxu0 0
      %1048 = vmatprep.subr.bf16.mxu0 0
      %1049 = vmatpush1.bf16.msra.mxu0 0
      %1050 = vmatprep.subr.bf16.mxu0 0
      %1051 = vmatpush1.bf16.msra.mxu0 0
      %1052 = vmatprep.subr.bf16.mxu0 0
      %1053 = vmatpush1.bf16.msra.mxu0 0
      %1054 = vmatprep.subr.bf16.mxu0 0
      %1055 = vmatpush1.bf16.msra.mxu0 0
      %1056 = vmatprep.subr.bf16.mxu0 0
      %1057 = vmatpush1.bf16.msra.mxu0 0
      %1058 = vmatprep.subr.bf16.mxu0 0
      %1059 = vmatpush1.bf16.msra.mxu0 0
      %1060 = vmatprep.subr.bf16.mxu0 0
      %1061 = vmatpush1.bf16.msra.mxu0 0
      %1062 = vmatprep.subr.bf16.mxu0 0
      %1063 = vmatpush1.bf16.msra.mxu0 0
      %1064 = vmatprep.subr.bf16.mxu0 0
      %1065 = vmatpush1.bf16.msra.mxu0 0
      %1066 = vmatprep.subr.bf16.mxu0 0
      %1067 = vmatpush1.bf16.msra.mxu0 0
      %1068 = vmatprep.subr.bf16.mxu0 0
      %1069 = vmatpush1.bf16.msra.mxu0 0
      %1070 = vmatprep.subr.bf16.mxu0 0
      %1071 = vmatpush1.bf16.msra.mxu0 0
      %1072 = vmatprep.subr.bf16.mxu0 0
      %1073 = vmatpush1.bf16.msra.mxu0 0
      %1074 = vmatprep.subr.bf16.mxu0 0
      %1075 = vmatpush1.bf16.msra.mxu0 0
      %1076 = vmatprep.mubr.bf16.mxu0 0
      %1077 = vmatmul.mubr.bf16.gmra.mrb[0].mxu0 %v1039
      %v1078 = vpop.f32.mrb[0].mxu0
      %v1079 = vadd.f32 0.0, %v1078
      %v1080 = vpop.f32.mrb[0].mxu0
      %v1081 = vpop.f32.mrb[0].mxu0
      %v1082 = vpop.f32.mrb[0].mxu0
      %1083 = vdwg.mxu0
      %1084 = vrot.lane.b32.xlu0 %v740, 104
      %v1085 = vpop.permute.xlu0 %1084
      %1086 = vrot.lane.b32.xlu0 %v740, 72
      %v1087 = vpop.permute.xlu0 %1086
      %v1089 = vsel %vm744, %v1085, 0
      %v1092 = vsel %vm744, %v1087, 0
      %1094 = vmatprep.subr.bf16.mxu0 0
      %1095 = vmatpush1.bf16.xpose.msra.mxu0 %v1092
      %1096 = vmatprep.subr.bf16.mxu0 0
      %1097 = vmatpush1.bf16.xpose.msra.mxu0 0
      %1098 = vmatprep.subr.bf16.mxu0 0
      %1099 = vmatpush1.bf16.xpose.msra.mxu0 0
      %1100 = vmatprep.subr.bf16.mxu0 0
      %1101 = vmatpush1.bf16.xpose.msra.mxu0 0
      %1102 = vmatprep.subr.bf16.mxu0 0
      %1103 = vmatpush1.bf16.xpose.msra.mxu0 0
      %1104 = vmatprep.subr.bf16.mxu0 0
      %1105 = vmatpush1.bf16.xpose.msra.mxu0 0
      %1106 = vmatprep.subr.bf16.mxu0 0
      %1107 = vmatpush1.bf16.xpose.msra.mxu0 0
      %1108 = vmatprep.subr.bf16.mxu0 0
      %1109 = vmatpush1.bf16.xpose.msra.mxu0 0
      %1110 = vmatprep.subr.bf16.mxu0 0
      %1111 = vmatpush1.bf16.xpose.msra.mxu0 0
      %1112 = vmatprep.subr.bf16.mxu0 0
      %1113 = vmatpush1.bf16.xpose.msra.mxu0 0
      %1114 = vmatprep.subr.bf16.mxu0 0
      %1115 = vmatpush1.bf16.xpose.msra.mxu0 0
      %1116 = vmatprep.subr.bf16.mxu0 0
      %1117 = vmatpush1.bf16.xpose.msra.mxu0 0
      %1118 = vmatprep.subr.bf16.mxu0 0
      %1119 = vmatpush1.bf16.xpose.msra.mxu0 0
      %1120 = vmatprep.subr.bf16.mxu0 0
      %1121 = vmatpush1.bf16.xpose.msra.mxu0 0
      %1122 = vmatprep.subr.bf16.mxu0 0
      %1123 = vmatpush1.bf16.xpose.msra.mxu0 0
      %1124 = vmatprep.subr.bf16.mxu0 0
      %1125 = vmatpush1.bf16.xpose.msra.mxu0 0
      %1126 = vmatprep.mubr.bf16.mxu0 0
      %1127 = vmatmul.mubr.bf16.gmra.mrb[0].mxu0 %v1089
      %v1128 = vpop.f32.mrb[0].mxu0
      %v1129 = vadd.f32 0.0, %v1128
      %v1130 = vpop.f32.mrb[0].mxu0
      %v1131 = vpop.f32.mrb[0].mxu0
      %v1132 = vpop.f32.mrb[0].mxu0
      %1133 = vdwg.mxu0
      %v1134 = vmul.f32 %v1129, 0.35355338
      %v1135 = vadd.f32 %v1134, %v796
      %v1136 = vsel %vm744, %v1135, -inf
      %1137 = vmax.xlane.f32.xlu0 %v1136
      %v1138 = vpop.xlane.xlu0 %1137
      %v1139 = vsub.f32 %v1135, %v1138
      %v1140 = vmul.f32 %v1139, 1.442695
      %v1141 = vpow.pop %v1140
      %v1142 = vsel %vm744, %v1141, 0.0
      %1143 = vadd.xlane.f32.xlu0 %v1142
      %v1144 = vpop.xlane.xlu0 %1143
      %v1145 = vrcp.pop %v1144
      %v1146 = vmul.f32 %v1141, %v1145
      %v1147 = vpack.c.bf16 %v1146, %v1146
      %1148 = vrot.lane.b32.xlu0 %v740, 40
      %v1149 = vpop.permute.xlu0 %1148
      %v1151 = vsel %vm744, %v1147, 0
      %v1154 = vsel %vm816, %v1149, 0
      %1156 = vmatprep.subr.bf16.mxu0 0
      %1157 = vmatpush1.bf16.msra.mxu0 %v1154
      %1158 = vmatprep.subr.bf16.mxu0 0
      %1159 = vmatpush1.bf16.msra.mxu0 0
      %1160 = vmatprep.subr.bf16.mxu0 0
      %1161 = vmatpush1.bf16.msra.mxu0 0
      %1162 = vmatprep.subr.bf16.mxu0 0
      %1163 = vmatpush1.bf16.msra.mxu0 0
      %1164 = vmatprep.subr.bf16.mxu0 0
      %1165 = vmatpush1.bf16.msra.mxu0 0
      %1166 = vmatprep.subr.bf16.mxu0 0
      %1167 = vmatpush1.bf16.msra.mxu0 0
      %1168 = vmatprep.subr.bf16.mxu0 0
      %1169 = vmatpush1.bf16.msra.mxu0 0
      %1170 = vmatprep.subr.bf16.mxu0 0
      %1171 = vmatpush1.bf16.msra.mxu0 0
      %1172 = vmatprep.subr.bf16.mxu0 0
      %1173 = vmatpush1.bf16.msra.mxu0 0
      %1174 = vmatprep.subr.bf16.mxu0 0
      %1175 = vmatpush1.bf16.msra.mxu0 0
      %1176 = vmatprep.subr.bf16.mxu0 0
      %1177 = vmatpush1.bf16.msra.mxu0 0
      %1178 = vmatprep.subr.bf16.mxu0 0
      %1179 = vmatpush1.bf16.msra.mxu0 0
      %1180 = vmatprep.subr.bf16.mxu0 0
      %1181 = vmatpush1.bf16.msra.mxu0 0
      %1182 = vmatprep.subr.bf16.mxu0 0
      %1183 = vmatpush1.bf16.msra.mxu0 0
      %1184 = vmatprep.subr.bf16.mxu0 0
      %1185 = vmatpush1.bf16.msra.mxu0 0
      %1186 = vmatprep.subr.bf16.mxu0 0
      %1187 = vmatpush1.bf16.msra.mxu0 0
      %1188 = vmatprep.mubr.bf16.mxu0 0
      %1189 = vmatmul.mubr.bf16.gmra.mrb[0].mxu0 %v1151
      %v1190 = vpop.f32.mrb[0].mxu0
      %v1191 = vadd.f32 0.0, %v1190
      %v1192 = vpop.f32.mrb[0].mxu0
      %v1193 = vpop.f32.mrb[0].mxu0
      %v1194 = vpop.f32.mrb[0].mxu0
      %1195 = vdwg.mxu0
      %1197 = vrot.lane.b32.xlu0 %v967, 8
      %v1198 = vpop.permute.xlu0 %1197
      %1201 = vrot.lane.b32.xlu0 %v1079, 16
      %v1202 = vpop.permute.xlu0 %1201
      %1205 = vrot.lane.b32.xlu0 %v1191, 24
      %v1206 = vpop.permute.xlu0 %1205
      %v1208 = vsel %vm744, %v855, %v1198
      %vm1209 = vcmask 130048
      %v1210 = vsel %vm1209, %v1208, %v1202
      %vm1211 = vcmask 195584
      %v1212 = vsel %vm1211, %v1210, %v1206
      %v1213 = vpack.c.bf16 %v1212, %v1212
      %v1214 = vld [vmem:[%s6] sm:$0xf]
      %v1215 = vld [vmem:[%s6 + $0x4] sm:$0xf]
      %v1216 = vld [vmem:[%s6 + $0x8] sm:$0xf]
      %v1217 = vld [vmem:[%s6 + $0xc] sm:$0xf]
      %v1218 = vld [vmem:[%s7] sm:$0x1]
      %v1220 = vlaneseq
      %v1221 = vshrl.u32 %v1220, 7
      %v1222 = vsub.s32 0, %v1221
      %v1223 = vrot.slane %v1218, %v1222
      %v1229 = vunpack.c.l.b16 %v1214
      %v1230 = vunpack.c.l.b16 %v1215
      %v1231 = vunpack.c.l.b16 %v1216
      %v1232 = vunpack.c.l.b16 %v1217
      %v1233 = vpack.c.b16 %v1230, %v1229
      %v1234 = vpack.c.b16 %v1232, %v1231
      %v1238 = vsel %vm644, %v1213, 0
      %1240 = vmatprep.subr.bf16.mxu0 0
      %1241 = vmatpush1.bf16.msra.mxu0 %v1233
      %1242 = vmatprep.subr.bf16.mxu0 0
      %1243 = vmatpush1.bf16.msra.mxu0 %v1234
      %1244 = vmatprep.subr.bf16.mxu0 0
      %1245 = vmatpush1.bf16.msra.mxu0 0
      %1246 = vmatprep.subr.bf16.mxu0 0
      %1247 = vmatpush1.bf16.msra.mxu0 0
      %1248 = vmatprep.subr.bf16.mxu0 0
      %1249 = vmatpush1.bf16.msra.mxu0 0
      %1250 = vmatprep.subr.bf16.mxu0 0
      %1251 = vmatpush1.bf16.msra.mxu0 0
      %1252 = vmatprep.subr.bf16.mxu0 0
      %1253 = vmatpush1.bf16.msra.mxu0 0
      %1254 = vmatprep.subr.bf16.mxu0 0
      %1255 = vmatpush1.bf16.msra.mxu0 0
      %1256 = vmatprep.subr.bf16.mxu0 0
      %1257 = vmatpush1.bf16.msra.mxu0 0
      %1258 = vmatprep.subr.bf16.mxu0 0
      %1259 = vmatpush1.bf16.msra.mxu0 0
      %1260 = vmatprep.subr.bf16.mxu0 0
      %1261 = vmatpush1.bf16.msra.mxu0 0
      %1262 = vmatprep.subr.bf16.mxu0 0
      %1263 = vmatpush1.bf16.msra.mxu0 0
      %1264 = vmatprep.subr.bf16.mxu0 0
      %1265 = vmatpush1.bf16.msra.mxu0 0
      %1266 = vmatprep.subr.bf16.mxu0 0
      %1267 = vmatpush1.bf16.msra.mxu0 0
      %1268 = vmatprep.subr.bf16.mxu0 0
      %1269 = vmatpush1.bf16.msra.mxu0 0
      %1270 = vmatprep.subr.bf16.mxu0 0
      %1271 = vmatpush1.bf16.msra.mxu0 0
      %1272 = vmatprep.mubr.bf16.mxu0 0
      %1273 = vmatmul.mubr.bf16.gmra.mrb[0].mxu0 %v1238
      %v1274 = vpop.f32.mrb[0].mxu0
      %v1275 = vadd.f32 %v1223, %v1274
      %v1276 = vpop.f32.mrb[0].mxu0
      %v1277 = vpop.f32.mrb[0].mxu0
      %v1278 = vpop.f32.mrb[0].mxu0
      %1279 = vdwg.mxu0
      %v1280 = vadd.f32 %v672, %v1275
      %v1281 = vld [vmem:[%s8] sm:$0x1]
      %v1282 = vld [vmem:[%s9] sm:$0x1]
      %v1283 = vsel %vm644, %v1280, 0.0
      %1284 = vadd.xlane.f32.xlu0 %v1283
      %v1285 = vpop.xlane.xlu0 %1284
      %v1286 = vmul.f32 %v1285, %v648
      %v1287 = vsub.f32 %v1280, %v1286
      %v1288 = vmul.f32 %v1287, %v1287
      %v1289 = vsel %vm644, %v1288, 0.0
      %1290 = vadd.xlane.f32.xlu0 %v1289
      %v1291 = vpop.xlane.xlu0 %1290
      %v1292 = vmul.f32 %v1291, %v648
      %v1293 = vadd.f32 %v1292, 1e-12
      %v1294 = vrsqrt.pop %v1293
      %v1295 = vmul.f32 %v1287, %v1294
      %v1297 = vlaneseq
      %v1298 = vshrl.u32 %v1297, 7
      %v1299 = vsub.s32 0, %v1298
      %v1300 = vrot.slane %v1281, %v1299
      %v1302 = vmul.f32 %v1295, %v1300
      %v1304 = vlaneseq
      %v1305 = vshrl.u32 %v1304, 7
      %v1306 = vsub.s32 0, %v1305
      %v1307 = vrot.slane %v1282, %v1306
      %v1309 = vadd.f32 %v1302, %v1307
      %v1310 = vpack.c.bf16 %v1309, %v1309
      %v1311 = vld [vmem:[%s10] sm:$0xf]
      %v1312 = vld [vmem:[%s10 + $0x4] sm:$0xf]
      %v1313 = vld [vmem:[%s10 + $0x8] sm:$0xf]
      %v1314 = vld [vmem:[%s10 + $0xc] sm:$0xf]
      %v1315 = vld [vmem:[%s11] sm:$0x1]
      %v1317 = vlaneseq
      %v1318 = vshrl.u32 %v1317, 7
      %v1319 = vsub.s32 0, %v1318
      %v1320 = vrot.slane %v1315, %v1319
      %v1326 = vunpack.c.l.b16 %v1311
      %v1327 = vunpack.c.l.b16 %v1312
      %v1328 = vunpack.c.l.b16 %v1313
      %v1329 = vunpack.c.l.b16 %v1314
      %v1330 = vpack.c.b16 %v1327, %v1326
      %v1331 = vpack.c.b16 %v1329, %v1328
      %v1335 = vsel %vm644, %v1310, 0
      %1337 = vmatprep.subr.bf16.mxu0 0
      %1338 = vmatpush1.bf16.msra.mxu0 %v1330
      %1339 = vmatprep.subr.bf16.mxu0 0
      %1340 = vmatpush1.bf16.msra.mxu0 %v1331
      %1341 = vmatprep.subr.bf16.mxu0 0
      %1342 = vmatpush1.bf16.msra.mxu0 0
      %1343 = vmatprep.subr.bf16.mxu0 0
      %1344 = vmatpush1.bf16.msra.mxu0 0
      %1345 = vmatprep.subr.bf16.mxu0 0
      %1346 = vmatpush1.bf16.msra.mxu0 0
      %1347 = vmatprep.subr.bf16.mxu0 0
      %1348 = vmatpush1.bf16.msra.mxu0 0
      %1349 = vmatprep.subr.bf16.mxu0 0
      %1350 = vmatpush1.bf16.msra.mxu0 0
      %1351 = vmatprep.subr.bf16.mxu0 0
      %1352 = vmatpush1.bf16.msra.mxu0 0
      %1353 = vmatprep.subr.bf16.mxu0 0
      %1354 = vmatpush1.bf16.msra.mxu0 0
      %1355 = vmatprep.subr.bf16.mxu0 0
      %1356 = vmatpush1.bf16.msra.mxu0 0
      %1357 = vmatprep.subr.bf16.mxu0 0
      %1358 = vmatpush1.bf16.msra.mxu0 0
      %1359 = vmatprep.subr.bf16.mxu0 0
      %1360 = vmatpush1.bf16.msra.mxu0 0
      %1361 = vmatprep.subr.bf16.mxu0 0
      %1362 = vmatpush1.bf16.msra.mxu0 0
      %1363 = vmatprep.subr.bf16.mxu0 0
      %1364 = vmatpush1.bf16.msra.mxu0 0
      %1365 = vmatprep.subr.bf16.mxu0 0
      %1366 = vmatpush1.bf16.msra.mxu0 0
      %1367 = vmatprep.subr.bf16.mxu0 0
      %1368 = vmatpush1.bf16.msra.mxu0 0
      %1369 = vmatprep.mubr.bf16.mxu0 0
      %1370 = vmatmul.mubr.bf16.gmra.mrb[0].mxu0 %v1335
      %v1371 = vpop.f32.mrb[0].mxu0
      %v1372 = vadd.f32 %v1320, %v1371
      %v1373 = vpop.f32.mrb[0].mxu0
      %v1374 = vpop.f32.mrb[0].mxu0
      %v1375 = vpop.f32.mrb[0].mxu0
      %1376 = vdwg.mxu0
      %v1377 = vmul.f32 %v1372, 0.70710677
      %v1378 = vand.u32 2147483647, %v1377
      %v1379 = vmul.f32 %v1378, 0.3275911
      %v1380 = vadd.f32 %v1379, 1.0
      %v1381 = vrcp.pop %v1380
      %v1382 = vmul.f32 1.0, %v1381
      %v1383 = vmul.f32 %v1382, 1.0614054
      %v1384 = vadd.f32 %v1383, -1.4531521
      %v1385 = vmul.f32 %v1382, %v1384
      %v1386 = vadd.f32 %v1385, 1.4214138
      %v1387 = vmul.f32 %v1382, %v1386
      %v1388 = vadd.f32 %v1387, -0.28449672
      %v1389 = vmul.f32 %v1382, %v1388
      %v1390 = vadd.f32 %v1389, 0.2548296
      %v1391 = vmul.f32 %v1382, %v1390
      %v1392 = vsub.f32 0.0, %v1378
      %v1393 = vmul.f32 %v1392, %v1378
      %v1394 = vmul.f32 %v1393, 1.442695
      %v1395 = vpow.pop %v1394
      %v1396 = vmul.f32 %v1391, %v1395
      %v1397 = vsub.f32 1.0, %v1396
      %vm1398 = vcmp.ge.f32.partialorder %v1377, 0.0
      %v1399 = vsub.f32 0.0, %v1397
      %v1400 = vsel %vm1398, %v1397, %v1399
      %v1401 = vmul.f32 %v1372, 0.5
      %v1402 = vadd.f32 %v1400, 1.0
      %v1403 = vmul.f32 %v1401, %v1402
      %v1404 = vpack.c.bf16 %v1403, %v1403
      %v1405 = vld [vmem:[%s12] sm:$0xf]
      %v1406 = vld [vmem:[%s12 + $0x4] sm:$0xf]
      %v1407 = vld [vmem:[%s12 + $0x8] sm:$0xf]
      %v1408 = vld [vmem:[%s12 + $0xc] sm:$0xf]
      %v1409 = vld [vmem:[%s12 + $0x10] sm:$0xf]
      %v1410 = vld [vmem:[%s12 + $0x14] sm:$0xf]
      %v1411 = vld [vmem:[%s12 + $0x18] sm:$0xf]
      %v1412 = vld [vmem:[%s12 + $0x1c] sm:$0xf]
      %v1413 = vld [vmem:[%s13] sm:$0x1]
      %v1415 = vlaneseq
      %v1416 = vshrl.u32 %v1415, 7
      %v1417 = vsub.s32 0, %v1416
      %v1418 = vrot.slane %v1413, %v1417
      %v1428 = vunpack.c.l.b16 %v1405
      %v1429 = vunpack.c.l.b16 %v1406
      %v1430 = vunpack.c.l.b16 %v1407
      %v1431 = vunpack.c.l.b16 %v1408
      %v1432 = vunpack.c.l.b16 %v1409
      %v1433 = vunpack.c.l.b16 %v1410
      %v1434 = vunpack.c.l.b16 %v1411
      %v1435 = vunpack.c.l.b16 %v1412
      %v1436 = vpack.c.b16 %v1429, %v1428
      %v1437 = vpack.c.b16 %v1431, %v1430
      %v1438 = vpack.c.b16 %v1433, %v1432
      %v1439 = vpack.c.b16 %v1435, %v1434
      %vm1444 = vcmask 523264
      %v1446 = vsel %vm1444, %v1404, 0
      %1448 = vmatprep.subr.bf16.mxu0 0
      %1449 = vmatpush1.bf16.msra.mxu0 %v1436
      %1450 = vmatprep.subr.bf16.mxu0 0
      %1451 = vmatpush1.bf16.msra.mxu0 %v1437
      %1452 = vmatprep.subr.bf16.mxu0 0
      %1453 = vmatpush1.bf16.msra.mxu0 %v1438
      %1454 = vmatprep.subr.bf16.mxu0 0
      %1455 = vmatpush1.bf16.msra.mxu0 %v1439
      %1456 = vmatprep.subr.bf16.mxu0 0
      %1457 = vmatpush1.bf16.msra.mxu0 0
      %1458 = vmatprep.subr.bf16.mxu0 0
      %1459 = vmatpush1.bf16.msra.mxu0 0
      %1460 = vmatprep.subr.bf16.mxu0 0
      %1461 = vmatpush1.bf16.msra.mxu0 0
      %1462 = vmatprep.subr.bf16.mxu0 0
      %1463 = vmatpush1.bf16.msra.mxu0 0
      %1464 = vmatprep.subr.bf16.mxu0 0
      %1465 = vmatpush1.bf16.msra.mxu0 0
      %1466 = vmatprep.subr.bf16.mxu0 0
      %1467 = vmatpush1.bf16.msra.mxu0 0
      %1468 = vmatprep.subr.bf16.mxu0 0
      %1469 = vmatpush1.bf16.msra.mxu0 0
      %1470 = vmatprep.subr.bf16.mxu0 0
      %1471 = vmatpush1.bf16.msra.mxu0 0
      %1472 = vmatprep.subr.bf16.mxu0 0
      %1473 = vmatpush1.bf16.msra.mxu0 0
      %1474 = vmatprep.subr.bf16.mxu0 0
      %1475 = vmatpush1.bf16.msra.mxu0 0
      %1476 = vmatprep.subr.bf16.mxu0 0
      %1477 = vmatpush1.bf16.msra.mxu0 0
      %1478 = vmatprep.subr.bf16.mxu0 0
      %1479 = vmatpush1.bf16.msra.mxu0 0
      %1480 = vmatprep.mubr.bf16.mxu0 0
      %1481 = vmatmul.mubr.bf16.gmra.mrb[0].mxu0 %v1446
      %v1482 = vpop.f32.mrb[0].mxu0
      %v1483 = vadd.f32 %v1418, %v1482
      %v1484 = vpop.f32.mrb[0].mxu0
      %v1485 = vpop.f32.mrb[0].mxu0
      %v1486 = vpop.f32.mrb[0].mxu0
      %1487 = vdwg.mxu0
      %v1488 = vadd.f32 %v1309, %v1483
      %v1489 = vld [vmem:[%s14] sm:$0x1]
      %v1490 = vld [vmem:[%s15] sm:$0x1]
      %v1491 = vsel %vm644, %v1488, 0.0
      %1492 = vadd.xlane.f32.xlu0 %v1491
      %v1493 = vpop.xlane.xlu0 %1492
      %v1494 = vmul.f32 %v1493, %v648
      %v1495 = vsub.f32 %v1488, %v1494
      %v1496 = vmul.f32 %v1495, %v1495
      %v1497 = vsel %vm644, %v1496, 0.0
      %1498 = vadd.xlane.f32.xlu0 %v1497
      %v1499 = vpop.xlane.xlu0 %1498
      %v1500 = vmul.f32 %v1499, %v648
      %v1501 = vadd.f32 %v1500, 1e-12
      %v1502 = vrsqrt.pop %v1501
      %v1503 = vmul.f32 %v1495, %v1502
      %v1505 = vlaneseq
      %v1506 = vshrl.u32 %v1505, 7
      %v1507 = vsub.s32 0, %v1506
      %v1508 = vrot.slane %v1489, %v1507
      %v1510 = vmul.f32 %v1503, %v1508
      %v1512 = vlaneseq
      %v1513 = vshrl.u32 %v1512, 7
      %v1514 = vsub.s32 0, %v1513
      %v1515 = vrot.slane %v1490, %v1514
      %v1517 = vadd.f32 %v1510, %v1515
      %v1518 = vpack.c.bf16 %v1517, %v1517
      %s1519 = scalar_lea.vmem %s4, 16
      %v1520 = vld [vmem:[%s1519] sm:$0xf]
      %v1521 = vld [vmem:[%s1519 + $0x4] sm:$0xf]
      %v1522 = vld [vmem:[%s1519 + $0x8] sm:$0xf]
      %v1523 = vld [vmem:[%s1519 + $0xc] sm:$0xf]
      %s1524 = scalar_lea.vmem %s5, 1
      %v1525 = vld [vmem:[%s1524] sm:$0x1]
      %v1527 = vlaneseq
      %v1528 = vshrl.u32 %v1527, 7
      %v1529 = vsub.s32 0, %v1528
      %v1530 = vrot.slane %v1525, %v1529
      %v1536 = vunpack.c.l.b16 %v1520
      %v1537 = vunpack.c.l.b16 %v1521
      %v1538 = vunpack.c.l.b16 %v1522
      %v1539 = vunpack.c.l.b16 %v1523
      %v1540 = vpack.c.b16 %v1537, %v1536
      %v1541 = vpack.c.b16 %v1539, %v1538
      %v1545 = vsel %vm644, %v1518, 0
      %1547 = vmatprep.subr.bf16.mxu0 0
      %1548 = vmatpush1.bf16.msra.mxu0 %v1540
      %1549 = vmatprep.subr.bf16.mxu0 0
      %1550 = vmatpush1.bf16.msra.mxu0 %v1541
      %1551 = vmatprep.subr.bf16.mxu0 0
      %1552 = vmatpush1.bf16.msra.mxu0 0
      %1553 = vmatprep.subr.bf16.mxu0 0
      %1554 = vmatpush1.bf16.msra.mxu0 0
      %1555 = vmatprep.subr.bf16.mxu0 0
      %1556 = vmatpush1.bf16.msra.mxu0 0
      %1557 = vmatprep.subr.bf16.mxu0 0
      %1558 = vmatpush1.bf16.msra.mxu0 0
      %1559 = vmatprep.subr.bf16.mxu0 0
      %1560 = vmatpush1.bf16.msra.mxu0 0
      %1561 = vmatprep.subr.bf16.mxu0 0
      %1562 = vmatpush1.bf16.msra.mxu0 0
      %1563 = vmatprep.subr.bf16.mxu0 0
      %1564 = vmatpush1.bf16.msra.mxu0 0
      %1565 = vmatprep.subr.bf16.mxu0 0
      %1566 = vmatpush1.bf16.msra.mxu0 0
      %1567 = vmatprep.subr.bf16.mxu0 0
      %1568 = vmatpush1.bf16.msra.mxu0 0
      %1569 = vmatprep.subr.bf16.mxu0 0
      %1570 = vmatpush1.bf16.msra.mxu0 0
      %1571 = vmatprep.subr.bf16.mxu0 0
      %1572 = vmatpush1.bf16.msra.mxu0 0
      %1573 = vmatprep.subr.bf16.mxu0 0
      %1574 = vmatpush1.bf16.msra.mxu0 0
      %1575 = vmatprep.subr.bf16.mxu0 0
      %1576 = vmatpush1.bf16.msra.mxu0 0
      %1577 = vmatprep.subr.bf16.mxu0 0
      %1578 = vmatpush1.bf16.msra.mxu0 0
      %1579 = vmatprep.mubr.bf16.mxu0 0
      %1580 = vmatmul.mubr.bf16.gmra.mrb[0].mxu0 %v1545
      %v1581 = vpop.f32.mrb[0].mxu0
      %v1582 = vadd.f32 %v1530, %v1581
      %v1583 = vpop.f32.mrb[0].mxu0
      %v1584 = vpop.f32.mrb[0].mxu0
      %v1585 = vpop.f32.mrb[0].mxu0
      %1586 = vdwg.mxu0
      %v1587 = vpack.c.bf16 %v1582, %v1582
      %1589 = vrot.lane.b32.xlu0 %v1587, 96
      %v1590 = vpop.permute.xlu0 %1589
      %v1592 = vsel %vm744, %v1587, 0
      %v1595 = vsel %vm744, %v1590, 0
      %1597 = vmatprep.subr.bf16.mxu0 0
      %1598 = vmatpush1.bf16.xpose.msra.mxu0 %v1595
      %1599 = vmatprep.subr.bf16.mxu0 0
      %1600 = vmatpush1.bf16.xpose.msra.mxu0 0
      %1601 = vmatprep.subr.bf16.mxu0 0
      %1602 = vmatpush1.bf16.xpose.msra.mxu0 0
      %1603 = vmatprep.subr.bf16.mxu0 0
      %1604 = vmatpush1.bf16.xpose.msra.mxu0 0
      %1605 = vmatprep.subr.bf16.mxu0 0
      %1606 = vmatpush1.bf16.xpose.msra.mxu0 0
      %1607 = vmatprep.subr.bf16.mxu0 0
      %1608 = vmatpush1.bf16.xpose.msra.mxu0 0
      %1609 = vmatprep.subr.bf16.mxu0 0
      %1610 = vmatpush1.bf16.xpose.msra.mxu0 0
      %1611 = vmatprep.subr.bf16.mxu0 0
      %1612 = vmatpush1.bf16.xpose.msra.mxu0 0
      %1613 = vmatprep.subr.bf16.mxu0 0
      %1614 = vmatpush1.bf16.xpose.msra.mxu0 0
      %1615 = vmatprep.subr.bf16.mxu0 0
      %1616 = vmatpush1.bf16.xpose.msra.mxu0 0
      %1617 = vmatprep.subr.bf16.mxu0 0
      %1618 = vmatpush1.bf16.xpose.msra.mxu0 0
      %1619 = vmatprep.subr.bf16.mxu0 0
      %1620 = vmatpush1.bf16.xpose.msra.mxu0 0
      %1621 = vmatprep.subr.bf16.mxu0 0
      %1622 = vmatpush1.bf16.xpose.msra.mxu0 0
      %1623 = vmatprep.subr.bf16.mxu0 0
      %1624 = vmatpush1.bf16.xpose.msra.mxu0 0
      %1625 = vmatprep.subr.bf16.mxu0 0
      %1626 = vmatpush1.bf16.xpose.msra.mxu0 0
      %1627 = vmatprep.subr.bf16.mxu0 0
      %1628 = vmatpush1.bf16.xpose.msra.mxu0 0
      %1629 = vmatprep.mubr.bf16.mxu0 0
      %1630 = vmatmul.mubr.bf16.gmra.mrb[0].mxu0 %v1592
      %v1631 = vpop.f32.mrb[0].mxu0
      %v1632 = vadd.f32 0.0, %v1631
      %v1633 = vpop.f32.mrb[0].mxu0
      %v1634 = vpop.f32.mrb[0].mxu0
      %v1635 = vpop.f32.mrb[0].mxu0
      %1636 = vdwg.mxu0
      %v1637 = vmul.f32 %v1632, 0.35355338
      %v1638 = vadd.f32 %v1637, %v796
      %v1639 = vsel %vm744, %v1638, -inf
      %1640 = vmax.xlane.f32.xlu0 %v1639
      %v1641 = vpop.xlane.xlu0 %1640
      %v1642 = vsub.f32 %v1638, %v1641
      %v1643 = vmul.f32 %v1642, 1.442695
      %v1644 = vpow.pop %v1643
      %v1645 = vsel %vm744, %v1644, 0.0
      %1646 = vadd.xlane.f32.xlu0 %v1645
      %v1647 = vpop.xlane.xlu0 %1646
      %v1648 = vrcp.pop %v1647
      %v1649 = vmul.f32 %v1644, %v1648
      %v1650 = vpack.c.bf16 %v1649, %v1649
      %1651 = vrot.lane.b32.xlu0 %v1587, 64
      %v1652 = vpop.permute.xlu0 %1651
      %v1654 = vsel %vm744, %v1650, 0
      %v1657 = vsel %vm816, %v1652, 0
      %1659 = vmatprep.subr.bf16.mxu0 0
      %1660 = vmatpush1.bf16.msra.mxu0 %v1657
      %1661 = vmatprep.subr.bf16.mxu0 0
      %1662 = vmatpush1.bf16.msra.mxu0 0
      %1663 = vmatprep.subr.bf16.mxu0 0
      %1664 = vmatpush1.bf16.msra.mxu0 0
      %1665 = vmatprep.subr.bf16.mxu0 0
      %1666 = vmatpush1.bf16.msra.mxu0 0
      %1667 = vmatprep.subr.bf16.mxu0 0
      %1668 = vmatpush1.bf16.msra.mxu0 0
      %1669 = vmatprep.subr.bf16.mxu0 0
      %1670 = vmatpush1.bf16.msra.mxu0 0
      %1671 = vmatprep.subr.bf16.mxu0 0
      %1672 = vmatpush1.bf16.msra.mxu0 0
      %1673 = vmatprep.subr.bf16.mxu0 0
      %1674 = vmatpush1.bf16.msra.mxu0 0
      %1675 = vmatprep.subr.bf16.mxu0 0
      %1676 = vmatpush1.bf16.msra.mxu0 0
      %1677 = vmatprep.subr.bf16.mxu0 0
      %1678 = vmatpush1.bf16.msra.mxu0 0
      %1679 = vmatprep.subr.bf16.mxu0 0
      %1680 = vmatpush1.bf16.msra.mxu0 0
      %1681 = vmatprep.subr.bf16.mxu0 0
      %1682 = vmatpush1.bf16.msra.mxu0 0
      %1683 = vmatprep.subr.bf16.mxu0 0
      %1684 = vmatpush1.bf16.msra.mxu0 0
      %1685 = vmatprep.subr.bf16.mxu0 0
      %1686 = vmatpush1.bf16.msra.mxu0 0
      %1687 = vmatprep.subr.bf16.mxu0 0
      %1688 = vmatpush1.bf16.msra.mxu0 0
      %1689 = vmatprep.subr.bf16.mxu0 0
      %1690 = vmatpush1.bf16.msra.mxu0 0
      %1691 = vmatprep.mubr.bf16.mxu0 0
      %1692 = vmatmul.mubr.bf16.gmra.mrb[0].mxu0 %v1654
      %v1693 = vpop.f32.mrb[0].mxu0
      %v1694 = vadd.f32 0.0, %v1693
      %v1695 = vpop.f32.mrb[0].mxu0
      %v1696 = vpop.f32.mrb[0].mxu0
      %v1697 = vpop.f32.mrb[0].mxu0
      %1698 = vdwg.mxu0
      %1699 = vrot.lane.b32.xlu0 %v1587, 120
      %v1700 = vpop.permute.xlu0 %1699
      %1701 = vrot.lane.b32.xlu0 %v1587, 88
      %v1702 = vpop.permute.xlu0 %1701
      %v1704 = vsel %vm744, %v1700, 0
      %v1707 = vsel %vm744, %v1702, 0
      %1709 = vmatprep.subr.bf16.mxu0 0
      %1710 = vmatpush1.bf16.xpose.msra.mxu0 %v1707
      %1711 = vmatprep.subr.bf16.mxu0 0
      %1712 = vmatpush1.bf16.xpose.msra.mxu0 0
      %1713 = vmatprep.subr.bf16.mxu0 0
      %1714 = vmatpush1.bf16.xpose.msra.mxu0 0
      %1715 = vmatprep.subr.bf16.mxu0 0
      %1716 = vmatpush1.bf16.xpose.msra.mxu0 0
      %1717 = vmatprep.subr.bf16.mxu0 0
      %1718 = vmatpush1.bf16.xpose.msra.mxu0 0
      %1719 = vmatprep.subr.bf16.mxu0 0
      %1720 = vmatpush1.bf16.xpose.msra.mxu0 0
      %1721 = vmatprep.subr.bf16.mxu0 0
      %1722 = vmatpush1.bf16.xpose.msra.mxu0 0
      %1723 = vmatprep.subr.bf16.mxu0 0
      %1724 = vmatpush1.bf16.xpose.msra.mxu0 0
      %1725 = vmatprep.subr.bf16.mxu0 0
      %1726 = vmatpush1.bf16.xpose.msra.mxu0 0
      %1727 = vmatprep.subr.bf16.mxu0 0
      %1728 = vmatpush1.bf16.xpose.msra.mxu0 0
      %1729 = vmatprep.subr.bf16.mxu0 0
      %1730 = vmatpush1.bf16.xpose.msra.mxu0 0
      %1731 = vmatprep.subr.bf16.mxu0 0
      %1732 = vmatpush1.bf16.xpose.msra.mxu0 0
      %1733 = vmatprep.subr.bf16.mxu0 0
      %1734 = vmatpush1.bf16.xpose.msra.mxu0 0
      %1735 = vmatprep.subr.bf16.mxu0 0
      %1736 = vmatpush1.bf16.xpose.msra.mxu0 0
      %1737 = vmatprep.subr.bf16.mxu0 0
      %1738 = vmatpush1.bf16.xpose.msra.mxu0 0
      %1739 = vmatprep.subr.bf16.mxu0 0
      %1740 = vmatpush1.bf16.xpose.msra.mxu0 0
      %1741 = vmatprep.mubr.bf16.mxu0 0
      %1742 = vmatmul.mubr.bf16.gmra.mrb[0].mxu0 %v1704
      %v1743 = vpop.f32.mrb[0].mxu0
      %v1744 = vadd.f32 0.0, %v1743
      %v1745 = vpop.f32.mrb[0].mxu0
      %v1746 = vpop.f32.mrb[0].mxu0
      %v1747 = vpop.f32.mrb[0].mxu0
      %1748 = vdwg.mxu0
      %v1749 = vmul.f32 %v1744, 0.35355338
      %v1750 = vadd.f32 %v1749, %v796
      %v1751 = vsel %vm744, %v1750, -inf
      %1752 = vmax.xlane.f32.xlu0 %v1751
      %v1753 = vpop.xlane.xlu0 %1752
      %v1754 = vsub.f32 %v1750, %v1753
      %v1755 = vmul.f32 %v1754, 1.442695
      %v1756 = vpow.pop %v1755
      %v1757 = vsel %vm744, %v1756, 0.0
      %1758 = vadd.xlane.f32.xlu0 %v1757
      %v1759 = vpop.xlane.xlu0 %1758
      %v1760 = vrcp.pop %v1759
      %v1761 = vmul.f32 %v1756, %v1760
      %v1762 = vpack.c.bf16 %v1761, %v1761
      %1763 = vrot.lane.b32.xlu0 %v1587, 56
      %v1764 = vpop.permute.xlu0 %1763
      %v1766 = vsel %vm744, %v1762, 0
      %v1769 = vsel %vm816, %v1764, 0
      %1771 = vmatprep.subr.bf16.mxu0 0
      %1772 = vmatpush1.bf16.msra.mxu0 %v1769
      %1773 = vmatprep.subr.bf16.mxu0 0
      %1774 = vmatpush1.bf16.msra.mxu0 0
      %1775 = vmatprep.subr.bf16.mxu0 0
      %1776 = vmatpush1.bf16.msra.mxu0 0
      %1777 = vmatprep.subr.bf16.mxu0 0
      %1778 = vmatpush1.bf16.msra.mxu0 0
      %1779 = vmatprep.subr.bf16.mxu0 0
      %1780 = vmatpush1.bf16.msra.mxu0 0
      %1781 = vmatprep.subr.bf16.mxu0 0
      %1782 = vmatpush1.bf16.msra.mxu0 0
      %1783 = vmatprep.subr.bf16.mxu0 0
      %1784 = vmatpush1.bf16.msra.mxu0 0
      %1785 = vmatprep.subr.bf16.mxu0 0
      %1786 = vmatpush1.bf16.msra.mxu0 0
      %1787 = vmatprep.subr.bf16.mxu0 0
      %1788 = vmatpush1.bf16.msra.mxu0 0
      %1789 = vmatprep.subr.bf16.mxu0 0
      %1790 = vmatpush1.bf16.msra.mxu0 0
      %1791 = vmatprep.subr.bf16.mxu0 0
      %1792 = vmatpush1.bf16.msra.mxu0 0
      %1793 = vmatprep.subr.bf16.mxu0 0
      %1794 = vmatpush1.bf16.msra.mxu0 0
      %1795 = vmatprep.subr.bf16.mxu0 0
      %1796 = vmatpush1.bf16.msra.mxu0 0
      %1797 = vmatprep.subr.bf16.mxu0 0
      %1798 = vmatpush1.bf16.msra.mxu0 0
      %1799 = vmatprep.subr.bf16.mxu0 0
      %1800 = vmatpush1.bf16.msra.mxu0 0
      %1801 = vmatprep.subr.bf16.mxu0 0
      %1802 = vmatpush1.bf16.msra.mxu0 0
      %1803 = vmatprep.mubr.bf16.mxu0 0
      %1804 = vmatmul.mubr.bf16.gmra.mrb[0].mxu0 %v1766
      %v1805 = vpop.f32.mrb[0].mxu0
      %v1806 = vadd.f32 0.0, %v1805
      %v1807 = vpop.f32.mrb[0].mxu0
      %v1808 = vpop.f32.mrb[0].mxu0
      %v1809 = vpop.f32.mrb[0].mxu0
      %1810 = vdwg.mxu0
      %1811 = vrot.lane.b32.xlu0 %v1587, 112
      %v1812 = vpop.permute.xlu0 %1811
      %1813 = vrot.lane.b32.xlu0 %v1587, 80
      %v1814 = vpop.permute.xlu0 %1813
      %v1816 = vsel %vm744, %v1812, 0
      %v1819 = vsel %vm744, %v1814, 0
      %1821 = vmatprep.subr.bf16.mxu0 0
      %1822 = vmatpush1.bf16.xpose.msra.mxu0 %v1819
      %1823 = vmatprep.subr.bf16.mxu0 0
      %1824 = vmatpush1.bf16.xpose.msra.mxu0 0
      %1825 = vmatprep.subr.bf16.mxu0 0
      %1826 = vmatpush1.bf16.xpose.msra.mxu0 0
      %1827 = vmatprep.subr.bf16.mxu0 0
      %1828 = vmatpush1.bf16.xpose.msra.mxu0 0
      %1829 = vmatprep.subr.bf16.mxu0 0
      %1830 = vmatpush1.bf16.xpose.msra.mxu0 0
      %1831 = vmatprep.subr.bf16.mxu0 0
      %1832 = vmatpush1.bf16.xpose.msra.mxu0 0
      %1833 = vmatprep.subr.bf16.mxu0 0
      %1834 = vmatpush1.bf16.xpose.msra.mxu0 0
      %1835 = vmatprep.subr.bf16.mxu0 0
      %1836 = vmatpush1.bf16.xpose.msra.mxu0 0
      %1837 = vmatprep.subr.bf16.mxu0 0
      %1838 = vmatpush1.bf16.xpose.msra.mxu0 0
      %1839 = vmatprep.subr.bf16.mxu0 0
      %1840 = vmatpush1.bf16.xpose.msra.mxu0 0
      %1841 = vmatprep.subr.bf16.mxu0 0
      %1842 = vmatpush1.bf16.xpose.msra.mxu0 0
      %1843 = vmatprep.subr.bf16.mxu0 0
      %1844 = vmatpush1.bf16.xpose.msra.mxu0 0
      %1845 = vmatprep.subr.bf16.mxu0 0
      %1846 = vmatpush1.bf16.xpose.msra.mxu0 0
      %1847 = vmatprep.subr.bf16.mxu0 0
      %1848 = vmatpush1.bf16.xpose.msra.mxu0 0
      %1849 = vmatprep.subr.bf16.mxu0 0
      %1850 = vmatpush1.bf16.xpose.msra.mxu0 0
      %1851 = vmatprep.subr.bf16.mxu0 0
      %1852 = vmatpush1.bf16.xpose.msra.mxu0 0
      %1853 = vmatprep.mubr.bf16.mxu0 0
      %1854 = vmatmul.mubr.bf16.gmra.mrb[0].mxu0 %v1816
      %v1855 = vpop.f32.mrb[0].mxu0
      %v1856 = vadd.f32 0.0, %v1855
      %v1857 = vpop.f32.mrb[0].mxu0
      %v1858 = vpop.f32.mrb[0].mxu0
      %v1859 = vpop.f32.mrb[0].mxu0
      %1860 = vdwg.mxu0
      %v1861 = vmul.f32 %v1856, 0.35355338
      %v1862 = vadd.f32 %v1861, %v796
      %v1863 = vsel %vm744, %v1862, -inf
      %1864 = vmax.xlane.f32.xlu0 %v1863
      %v1865 = vpop.xlane.xlu0 %1864
      %v1866 = vsub.f32 %v1862, %v1865
      %v1867 = vmul.f32 %v1866, 1.442695
      %v1868 = vpow.pop %v1867
      %v1869 = vsel %vm744, %v1868, 0.0
      %1870 = vadd.xlane.f32.xlu0 %v1869
      %v1871 = vpop.xlane.xlu0 %1870
      %v1872 = vrcp.pop %v1871
      %v1873 = vmul.f32 %v1868, %v1872
      %v1874 = vpack.c.bf16 %v1873, %v1873
      %1875 = vrot.lane.b32.xlu0 %v1587, 48
      %v1876 = vpop.permute.xlu0 %1875
      %v1878 = vsel %vm744, %v1874, 0
      %v1881 = vsel %vm816, %v1876, 0
      %1883 = vmatprep.subr.bf16.mxu0 0
      %1884 = vmatpush1.bf16.msra.mxu0 %v1881
      %1885 = vmatprep.subr.bf16.mxu0 0
      %1886 = vmatpush1.bf16.msra.mxu0 0
      %1887 = vmatprep.subr.bf16.mxu0 0
      %1888 = vmatpush1.bf16.msra.mxu0 0
      %1889 = vmatprep.subr.bf16.mxu0 0
      %1890 = vmatpush1.bf16.msra.mxu0 0
      %1891 = vmatprep.subr.bf16.mxu0 0
      %1892 = vmatpush1.bf16.msra.mxu0 0
      %1893 = vmatprep.subr.bf16.mxu0 0
      %1894 = vmatpush1.bf16.msra.mxu0 0
      %1895 = vmatprep.subr.bf16.mxu0 0
      %1896 = vmatpush1.bf16.msra.mxu0 0
      %1897 = vmatprep.subr.bf16.mxu0 0
      %1898 = vmatpush1.bf16.msra.mxu0 0
      %1899 = vmatprep.subr.bf16.mxu0 0
      %1900 = vmatpush1.bf16.msra.mxu0 0
      %1901 = vmatprep.subr.bf16.mxu0 0
      %1902 = vmatpush1.bf16.msra.mxu0 0
      %1903 = vmatprep.subr.bf16.mxu0 0
      %1904 = vmatpush1.bf16.msra.mxu0 0
      %1905 = vmatprep.subr.bf16.mxu0 0
      %1906 = vmatpush1.bf16.msra.mxu0 0
      %1907 = vmatprep.subr.bf16.mxu0 0
      %1908 = vmatpush1.bf16.msra.mxu0 0
      %1909 = vmatprep.subr.bf16.mxu0 0
      %1910 = vmatpush1.bf16.msra.mxu0 0
      %1911 = vmatprep.subr.bf16.mxu0 0
      %1912 = vmatpush1.bf16.msra.mxu0 0
      %1913 = vmatprep.subr.bf16.mxu0 0
      %1914 = vmatpush1.bf16.msra.mxu0 0
      %1915 = vmatprep.mubr.bf16.mxu0 0
      %1916 = vmatmul.mubr.bf16.gmra.mrb[0].mxu0 %v1878
      %v1917 = vpop.f32.mrb[0].mxu0
      %v1918 = vadd.f32 0.0, %v1917
      %v1919 = vpop.f32.mrb[0].mxu0
      %v1920 = vpop.f32.mrb[0].mxu0
      %v1921 = vpop.f32.mrb[0].mxu0
      %1922 = vdwg.mxu0
      %1923 = vrot.lane.b32.xlu0 %v1587, 104
      %v1924 = vpop.permute.xlu0 %1923
      %1925 = vrot.lane.b32.xlu0 %v1587, 72
      %v1926 = vpop.permute.xlu0 %1925
      %v1928 = vsel %vm744, %v1924, 0
      %v1931 = vsel %vm744, %v1926, 0
      %1933 = vmatprep.subr.bf16.mxu0 0
      %1934 = vmatpush1.bf16.xpose.msra.mxu0 %v1931
      %1935 = vmatprep.subr.bf16.mxu0 0
      %1936 = vmatpush1.bf16.xpose.msra.mxu0 0
      %1937 = vmatprep.subr.bf16.mxu0 0
      %1938 = vmatpush1.bf16.xpose.msra.mxu0 0
      %1939 = vmatprep.subr.bf16.mxu0 0
      %1940 = vmatpush1.bf16.xpose.msra.mxu0 0
      %1941 = vmatprep.subr.bf16.mxu0 0
      %1942 = vmatpush1.bf16.xpose.msra.mxu0 0
      %1943 = vmatprep.subr.bf16.mxu0 0
      %1944 = vmatpush1.bf16.xpose.msra.mxu0 0
      %1945 = vmatprep.subr.bf16.mxu0 0
      %1946 = vmatpush1.bf16.xpose.msra.mxu0 0
      %1947 = vmatprep.subr.bf16.mxu0 0
      %1948 = vmatpush1.bf16.xpose.msra.mxu0 0
      %1949 = vmatprep.subr.bf16.mxu0 0
      %1950 = vmatpush1.bf16.xpose.msra.mxu0 0
      %1951 = vmatprep.subr.bf16.mxu0 0
      %1952 = vmatpush1.bf16.xpose.msra.mxu0 0
      %1953 = vmatprep.subr.bf16.mxu0 0
      %1954 = vmatpush1.bf16.xpose.msra.mxu0 0
      %1955 = vmatprep.subr.bf16.mxu0 0
      %1956 = vmatpush1.bf16.xpose.msra.mxu0 0
      %1957 = vmatprep.subr.bf16.mxu0 0
      %1958 = vmatpush1.bf16.xpose.msra.mxu0 0
      %1959 = vmatprep.subr.bf16.mxu0 0
      %1960 = vmatpush1.bf16.xpose.msra.mxu0 0
      %1961 = vmatprep.subr.bf16.mxu0 0
      %1962 = vmatpush1.bf16.xpose.msra.mxu0 0
      %1963 = vmatprep.subr.bf16.mxu0 0
      %1964 = vmatpush1.bf16.xpose.msra.mxu0 0
      %1965 = vmatprep.mubr.bf16.mxu0 0
      %1966 = vmatmul.mubr.bf16.gmra.mrb[0].mxu0 %v1928
      %v1967 = vpop.f32.mrb[0].mxu0
      %v1968 = vadd.f32 0.0, %v1967
      %v1969 = vpop.f32.mrb[0].mxu0
      %v1970 = vpop.f32.mrb[0].mxu0
      %v1971 = vpop.f32.mrb[0].mxu0
      %1972 = vdwg.mxu0
      %v1973 = vmul.f32 %v1968, 0.35355338
      %v1974 = vadd.f32 %v1973, %v796
      %v1975 = vsel %vm744, %v1974, -inf
      %1976 = vmax.xlane.f32.xlu0 %v1975
      %v1977 = vpop.xlane.xlu0 %1976
      %v1978 = vsub.f32 %v1974, %v1977
      %v1979 = vmul.f32 %v1978, 1.442695
      %v1980 = vpow.pop %v1979
      %v1981 = vsel %vm744, %v1980, 0.0
      %1982 = vadd.xlane.f32.xlu0 %v1981
      %v1983 = vpop.xlane.xlu0 %1982
      %v1984 = vrcp.pop %v1983
      %v1985 = vmul.f32 %v1980, %v1984
      %v1986 = vpack.c.bf16 %v1985, %v1985
      %1987 = vrot.lane.b32.xlu0 %v1587, 40
      %v1988 = vpop.permute.xlu0 %1987
      %v1990 = vsel %vm744, %v1986, 0
      %v1993 = vsel %vm816, %v1988, 0
      %1995 = vmatprep.subr.bf16.mxu0 0
      %1996 = vmatpush1.bf16.msra.mxu0 %v1993
      %1997 = vmatprep.subr.bf16.mxu0 0
      %1998 = vmatpush1.bf16.msra.mxu0 0
      %1999 = vmatprep.subr.bf16.mxu0 0
      %2000 = vmatpush1.bf16.msra.mxu0 0
      %2001 = vmatprep.subr.bf16.mxu0 0
      %2002 = vmatpush1.bf16.msra.mxu0 0
      %2003 = vmatprep.subr.bf16.mxu0 0
      %2004 = vmatpush1.bf16.msra.mxu0 0
      %2005 = vmatprep.subr.bf16.mxu0 0
      %2006 = vmatpush1.bf16.msra.mxu0 0
      %2007 = vmatprep.subr.bf16.mxu0 0
      %2008 = vmatpush1.bf16.msra.mxu0 0
      %2009 = vmatprep.subr.bf16.mxu0 0
      %2010 = vmatpush1.bf16.msra.mxu0 0
      %2011 = vmatprep.subr.bf16.mxu0 0
      %2012 = vmatpush1.bf16.msra.mxu0 0
      %2013 = vmatprep.subr.bf16.mxu0 0
      %2014 = vmatpush1.bf16.msra.mxu0 0
      %2015 = vmatprep.subr.bf16.mxu0 0
      %2016 = vmatpush1.bf16.msra.mxu0 0
      %2017 = vmatprep.subr.bf16.mxu0 0
      %2018 = vmatpush1.bf16.msra.mxu0 0
      %2019 = vmatprep.subr.bf16.mxu0 0
      %2020 = vmatpush1.bf16.msra.mxu0 0
      %2021 = vmatprep.subr.bf16.mxu0 0
      %2022 = vmatpush1.bf16.msra.mxu0 0
      %2023 = vmatprep.subr.bf16.mxu0 0
      %2024 = vmatpush1.bf16.msra.mxu0 0
      %2025 = vmatprep.subr.bf16.mxu0 0
      %2026 = vmatpush1.bf16.msra.mxu0 0
      %2027 = vmatprep.mubr.bf16.mxu0 0
      %2028 = vmatmul.mubr.bf16.gmra.mrb[0].mxu0 %v1990
      %v2029 = vpop.f32.mrb[0].mxu0
      %v2030 = vadd.f32 0.0, %v2029
      %v2031 = vpop.f32.mrb[0].mxu0
      %v2032 = vpop.f32.mrb[0].mxu0
      %v2033 = vpop.f32.mrb[0].mxu0
      %2034 = vdwg.mxu0
      %2036 = vrot.lane.b32.xlu0 %v1806, 8
      %v2037 = vpop.permute.xlu0 %2036
      %2040 = vrot.lane.b32.xlu0 %v1918, 16
      %v2041 = vpop.permute.xlu0 %2040
      %2044 = vrot.lane.b32.xlu0 %v2030, 24
      %v2045 = vpop.permute.xlu0 %2044
      %v2047 = vsel %vm744, %v1694, %v2037
      %v2048 = vsel %vm1209, %v2047, %v2041
      %v2049 = vsel %vm1211, %v2048, %v2045
      %v2050 = vpack.c.bf16 %v2049, %v2049
      %s2051 = scalar_lea.vmem %s6, 16
      %v2052 = vld [vmem:[%s2051] sm:$0xf]
      %v2053 = vld [vmem:[%s2051 + $0x4] sm:$0xf]
      %v2054 = vld [vmem:[%s2051 + $0x8] sm:$0xf]
      %v2055 = vld [vmem:[%s2051 + $0xc] sm:$0xf]
      %s2056 = scalar_lea.vmem %s7, 1
      %v2057 = vld [vmem:[%s2056] sm:$0x1]
      %v2059 = vlaneseq
      %v2060 = vshrl.u32 %v2059, 7
      %v2061 = vsub.s32 0, %v2060
      %v2062 = vrot.slane %v2057, %v2061
      %v2068 = vunpack.c.l.b16 %v2052
      %v2069 = vunpack.c.l.b16 %v2053
      %v2070 = vunpack.c.l.b16 %v2054
      %v2071 = vunpack.c.l.b16 %v2055
      %v2072 = vpack.c.b16 %v2069, %v2068
      %v2073 = vpack.c.b16 %v2071, %v2070
      %v2077 = vsel %vm644, %v2050, 0
      %2079 = vmatprep.subr.bf16.mxu0 0
      %2080 = vmatpush1.bf16.msra.mxu0 %v2072
      %2081 = vmatprep.subr.bf16.mxu0 0
      %2082 = vmatpush1.bf16.msra.mxu0 %v2073
      %2083 = vmatprep.subr.bf16.mxu0 0
      %2084 = vmatpush1.bf16.msra.mxu0 0
      %2085 = vmatprep.subr.bf16.mxu0 0
      %2086 = vmatpush1.bf16.msra.mxu0 0
      %2087 = vmatprep.subr.bf16.mxu0 0
      %2088 = vmatpush1.bf16.msra.mxu0 0
      %2089 = vmatprep.subr.bf16.mxu0 0
      %2090 = vmatpush1.bf16.msra.mxu0 0
      %2091 = vmatprep.subr.bf16.mxu0 0
      %2092 = vmatpush1.bf16.msra.mxu0 0
      %2093 = vmatprep.subr.bf16.mxu0 0
      %2094 = vmatpush1.bf16.msra.mxu0 0
      %2095 = vmatprep.subr.bf16.mxu0 0
      %2096 = vmatpush1.bf16.msra.mxu0 0
      %2097 = vmatprep.subr.bf16.mxu0 0
      %2098 = vmatpush1.bf16.msra.mxu0 0
      %2099 = vmatprep.subr.bf16.mxu0 0
      %2100 = vmatpush1.bf16.msra.mxu0 0
      %2101 = vmatprep.subr.bf16.mxu0 0
      %2102 = vmatpush1.bf16.msra.mxu0 0
      %2103 = vmatprep.subr.bf16.mxu0 0
      %2104 = vmatpush1.bf16.msra.mxu0 0
      %2105 = vmatprep.subr.bf16.mxu0 0
      %2106 = vmatpush1.bf16.msra.mxu0 0
      %2107 = vmatprep.subr.bf16.mxu0 0
      %2108 = vmatpush1.bf16.msra.mxu0 0
      %2109 = vmatprep.subr.bf16.mxu0 0
      %2110 = vmatpush1.bf16.msra.mxu0 0
      %2111 = vmatprep.mubr.bf16.mxu0 0
      %2112 = vmatmul.mubr.bf16.gmra.mrb[0].mxu0 %v2077
      %v2113 = vpop.f32.mrb[0].mxu0
      %v2114 = vadd.f32 %v2062, %v2113
      %v2115 = vpop.f32.mrb[0].mxu0
      %v2116 = vpop.f32.mrb[0].mxu0
      %v2117 = vpop.f32.mrb[0].mxu0
      %2118 = vdwg.mxu0
      %v2119 = vadd.f32 %v1517, %v2114
      %s2120 = scalar_lea.vmem %s8, 1
      %v2121 = vld [vmem:[%s2120] sm:$0x1]
      %s2122 = scalar_lea.vmem %s9, 1
      %v2123 = vld [vmem:[%s2122] sm:$0x1]
      %v2124 = vsel %vm644, %v2119, 0.0
      %2125 = vadd.xlane.f32.xlu0 %v2124
      %v2126 = vpop.xlane.xlu0 %2125
      %v2127 = vmul.f32 %v2126, %v648
      %v2128 = vsub.f32 %v2119, %v2127
      %v2129 = vmul.f32 %v2128, %v2128
      %v2130 = vsel %vm644, %v2129, 0.0
      %2131 = vadd.xlane.f32.xlu0 %v2130
      %v2132 = vpop.xlane.xlu0 %2131
      %v2133 = vmul.f32 %v2132, %v648
      %v2134 = vadd.f32 %v2133, 1e-12
      %v2135 = vrsqrt.pop %v2134
      %v2136 = vmul.f32 %v2128, %v2135
      %v2138 = vlaneseq
      %v2139 = vshrl.u32 %v2138, 7
      %v2140 = vsub.s32 0, %v2139
      %v2141 = vrot.slane %v2121, %v2140
      %v2143 = vmul.f32 %v2136, %v2141
      %v2145 = vlaneseq
      %v2146 = vshrl.u32 %v2145, 7
      %v2147 = vsub.s32 0, %v2146
      %v2148 = vrot.slane %v2123, %v2147
      %v2150 = vadd.f32 %v2143, %v2148
      %v2151 = vpack.c.bf16 %v2150, %v2150
      %s2152 = scalar_lea.vmem %s10, 16
      %v2153 = vld [vmem:[%s2152] sm:$0xf]
      %v2154 = vld [vmem:[%s2152 + $0x4] sm:$0xf]
      %v2155 = vld [vmem:[%s2152 + $0x8] sm:$0xf]
      %v2156 = vld [vmem:[%s2152 + $0xc] sm:$0xf]
      %s2157 = scalar_lea.vmem %s11, 1
      %v2158 = vld [vmem:[%s2157] sm:$0x1]
      %v2160 = vlaneseq
      %v2161 = vshrl.u32 %v2160, 7
      %v2162 = vsub.s32 0, %v2161
      %v2163 = vrot.slane %v2158, %v2162
      %v2169 = vunpack.c.l.b16 %v2153
      %v2170 = vunpack.c.l.b16 %v2154
      %v2171 = vunpack.c.l.b16 %v2155
      %v2172 = vunpack.c.l.b16 %v2156
      %v2173 = vpack.c.b16 %v2170, %v2169
      %v2174 = vpack.c.b16 %v2172, %v2171
      %v2178 = vsel %vm644, %v2151, 0
      %2180 = vmatprep.subr.bf16.mxu0 0
      %2181 = vmatpush1.bf16.msra.mxu0 %v2173
      %2182 = vmatprep.subr.bf16.mxu0 0
      %2183 = vmatpush1.bf16.msra.mxu0 %v2174
      %2184 = vmatprep.subr.bf16.mxu0 0
      %2185 = vmatpush1.bf16.msra.mxu0 0
      %2186 = vmatprep.subr.bf16.mxu0 0
      %2187 = vmatpush1.bf16.msra.mxu0 0
      %2188 = vmatprep.subr.bf16.mxu0 0
      %2189 = vmatpush1.bf16.msra.mxu0 0
      %2190 = vmatprep.subr.bf16.mxu0 0
      %2191 = vmatpush1.bf16.msra.mxu0 0
      %2192 = vmatprep.subr.bf16.mxu0 0
      %2193 = vmatpush1.bf16.msra.mxu0 0
      %2194 = vmatprep.subr.bf16.mxu0 0
      %2195 = vmatpush1.bf16.msra.mxu0 0
      %2196 = vmatprep.subr.bf16.mxu0 0
      %2197 = vmatpush1.bf16.msra.mxu0 0
      %2198 = vmatprep.subr.bf16.mxu0 0
      %2199 = vmatpush1.bf16.msra.mxu0 0
      %2200 = vmatprep.subr.bf16.mxu0 0
      %2201 = vmatpush1.bf16.msra.mxu0 0
      %2202 = vmatprep.subr.bf16.mxu0 0
      %2203 = vmatpush1.bf16.msra.mxu0 0
      %2204 = vmatprep.subr.bf16.mxu0 0
      %2205 = vmatpush1.bf16.msra.mxu0 0
      %2206 = vmatprep.subr.bf16.mxu0 0
      %2207 = vmatpush1.bf16.msra.mxu0 0
      %2208 = vmatprep.subr.bf16.mxu0 0
      %2209 = vmatpush1.bf16.msra.mxu0 0
      %2210 = vmatprep.subr.bf16.mxu0 0
      %2211 = vmatpush1.bf16.msra.mxu0 0
      %2212 = vmatprep.mubr.bf16.mxu0 0
      %2213 = vmatmul.mubr.bf16.gmra.mrb[0].mxu0 %v2178
      %v2214 = vpop.f32.mrb[0].mxu0
      %v2215 = vadd.f32 %v2163, %v2214
      %v2216 = vpop.f32.mrb[0].mxu0
      %v2217 = vpop.f32.mrb[0].mxu0
      %v2218 = vpop.f32.mrb[0].mxu0
      %2219 = vdwg.mxu0
      %v2220 = vmul.f32 %v2215, 0.70710677
      %v2221 = vand.u32 2147483647, %v2220
      %v2222 = vmul.f32 %v2221, 0.3275911
      %v2223 = vadd.f32 %v2222, 1.0
      %v2224 = vrcp.pop %v2223
      %v2225 = vmul.f32 1.0, %v2224
      %v2226 = vmul.f32 %v2225, 1.0614054
      %v2227 = vadd.f32 %v2226, -1.4531521
      %v2228 = vmul.f32 %v2225, %v2227
      %v2229 = vadd.f32 %v2228, 1.4214138
      %v2230 = vmul.f32 %v2225, %v2229
      %v2231 = vadd.f32 %v2230, -0.28449672
      %v2232 = vmul.f32 %v2225, %v2231
      %v2233 = vadd.f32 %v2232, 0.2548296
      %v2234 = vmul.f32 %v2225, %v2233
      %v2235 = vsub.f32 0.0, %v2221
      %v2236 = vmul.f32 %v2235, %v2221
      %v2237 = vmul.f32 %v2236, 1.442695
      %v2238 = vpow.pop %v2237
      %v2239 = vmul.f32 %v2234, %v2238
      %v2240 = vsub.f32 1.0, %v2239
      %vm2241 = vcmp.ge.f32.partialorder %v2220, 0.0
      %v2242 = vsub.f32 0.0, %v2240
      %v2243 = vsel %vm2241, %v2240, %v2242
      %v2244 = vmul.f32 %v2215, 0.5
      %v2245 = vadd.f32 %v2243, 1.0
      %v2246 = vmul.f32 %v2244, %v2245
      %v2247 = vpack.c.bf16 %v2246, %v2246
      %s2248 = scalar_lea.vmem %s12, 32
      %v2249 = vld [vmem:[%s2248] sm:$0xf]
      %v2250 = vld [vmem:[%s2248 + $0x4] sm:$0xf]
      %v2251 = vld [vmem:[%s2248 + $0x8] sm:$0xf]
      %v2252 = vld [vmem:[%s2248 + $0xc] sm:$0xf]
      %v2253 = vld [vmem:[%s2248 + $0x10] sm:$0xf]
      %v2254 = vld [vmem:[%s2248 + $0x14] sm:$0xf]
      %v2255 = vld [vmem:[%s2248 + $0x18] sm:$0xf]
      %v2256 = vld [vmem:[%s2248 + $0x1c] sm:$0xf]
      %s2257 = scalar_lea.vmem %s13, 1
      %v2258 = vld [vmem:[%s2257] sm:$0x1]
      %v2260 = vlaneseq
      %v2261 = vshrl.u32 %v2260, 7
      %v2262 = vsub.s32 0, %v2261
      %v2263 = vrot.slane %v2258, %v2262
      %v2273 = vunpack.c.l.b16 %v2249
      %v2274 = vunpack.c.l.b16 %v2250
      %v2275 = vunpack.c.l.b16 %v2251
      %v2276 = vunpack.c.l.b16 %v2252
      %v2277 = vunpack.c.l.b16 %v2253
      %v2278 = vunpack.c.l.b16 %v2254
      %v2279 = vunpack.c.l.b16 %v2255
      %v2280 = vunpack.c.l.b16 %v2256
      %v2281 = vpack.c.b16 %v2274, %v2273
      %v2282 = vpack.c.b16 %v2276, %v2275
      %v2283 = vpack.c.b16 %v2278, %v2277
      %v2284 = vpack.c.b16 %v2280, %v2279
      %v2290 = vsel %vm1444, %v2247, 0
      %2292 = vmatprep.subr.bf16.mxu0 0
      %2293 = vmatpush1.bf16.msra.mxu0 %v2281
      %2294 = vmatprep.subr.bf16.mxu0 0
      %2295 = vmatpush1.bf16.msra.mxu0 %v2282
      %2296 = vmatprep.subr.bf16.mxu0 0
      %2297 = vmatpush1.bf16.msra.mxu0 %v2283
      %2298 = vmatprep.subr.bf16.mxu0 0
      %2299 = vmatpush1.bf16.msra.mxu0 %v2284
      %2300 = vmatprep.subr.bf16.mxu0 0
      %2301 = vmatpush1.bf16.msra.mxu0 0
      %2302 = vmatprep.subr.bf16.mxu0 0
      %2303 = vmatpush1.bf16.msra.mxu0 0
      %2304 = vmatprep.subr.bf16.mxu0 0
      %2305 = vmatpush1.bf16.msra.mxu0 0
      %2306 = vmatprep.subr.bf16.mxu0 0
      %2307 = vmatpush1.bf16.msra.mxu0 0
      %2308 = vmatprep.subr.bf16.mxu0 0
      %2309 = vmatpush1.bf16.msra.mxu0 0
      %2310 = vmatprep.subr.bf16.mxu0 0
      %2311 = vmatpush1.bf16.msra.mxu0 0
      %2312 = vmatprep.subr.bf16.mxu0 0
      %2313 = vmatpush1.bf16.msra.mxu0 0
      %2314 = vmatprep.subr.bf16.mxu0 0
      %2315 = vmatpush1.bf16.msra.mxu0 0
      %2316 = vmatprep.subr.bf16.mxu0 0
      %2317 = vmatpush1.bf16.msra.mxu0 0
      %2318 = vmatprep.subr.bf16.mxu0 0
      %2319 = vmatpush1.bf16.msra.mxu0 0
      %2320 = vmatprep.subr.bf16.mxu0 0
      %2321 = vmatpush1.bf16.msra.mxu0 0
      %2322 = vmatprep.subr.bf16.mxu0 0
      %2323 = vmatpush1.bf16.msra.mxu0 0
      %2324 = vmatprep.mubr.bf16.mxu0 0
      %2325 = vmatmul.mubr.bf16.gmra.mrb[0].mxu0 %v2290
      %v2326 = vpop.f32.mrb[0].mxu0
      %v2327 = vadd.f32 %v2263, %v2326
      %v2328 = vpop.f32.mrb[0].mxu0
      %v2329 = vpop.f32.mrb[0].mxu0
      %v2330 = vpop.f32.mrb[0].mxu0
      %2331 = vdwg.mxu0
      %v2332 = vadd.f32 %v2150, %v2327
      %s2333 = scalar_lea.vmem %s14, 1
      %v2334 = vld [vmem:[%s2333] sm:$0x1]
      %s2335 = scalar_lea.vmem %s15, 1
      %v2336 = vld [vmem:[%s2335] sm:$0x1]
      %v2337 = vsel %vm644, %v2332, 0.0
      %2338 = vadd.xlane.f32.xlu0 %v2337
      %v2339 = vpop.xlane.xlu0 %2338
      %v2340 = vmul.f32 %v2339, %v648
      %v2341 = vsub.f32 %v2332, %v2340
      %v2342 = vmul.f32 %v2341, %v2341
      %v2343 = vsel %vm644, %v2342, 0.0
      %2344 = vadd.xlane.f32.xlu0 %v2343
      %v2345 = vpop.xlane.xlu0 %2344
      %v2346 = vmul.f32 %v2345, %v648
      %v2347 = vadd.f32 %v2346, 1e-12
      %v2348 = vrsqrt.pop %v2347
      %v2349 = vmul.f32 %v2341, %v2348
      %v2351 = vlaneseq
      %v2352 = vshrl.u32 %v2351, 7
      %v2353 = vsub.s32 0, %v2352
      %v2354 = vrot.slane %v2334, %v2353
      %v2356 = vmul.f32 %v2349, %v2354
      %v2358 = vlaneseq
      %v2359 = vshrl.u32 %v2358, 7
      %v2360 = vsub.s32 0, %v2359
      %v2361 = vrot.slane %v2336, %v2360
      %v2363 = vadd.f32 %v2356, %v2361
      %v2364 = vpack.c.bf16 %v2363, %v2363
      %v2365 = vld [vmem:[%s16] sm:$0xf]
      %v2366 = vld [vmem:[%s16 + $0x4] sm:$0xf]
      %v2367 = vld [vmem:[%s16 + $0x8] sm:$0xf]
      %v2368 = vld [vmem:[%s16 + $0xc] sm:$0xf]
      %v2369 = vld [vmem:[%s17] sm:$0x1]
      %v2374 = vunpack.c.l.b16 %v2365
      %v2375 = vunpack.c.l.b16 %v2366
      %v2376 = vunpack.c.l.b16 %v2367
      %v2377 = vunpack.c.l.b16 %v2368
      %v2378 = vpack.c.b16 %v2375, %v2374
      %v2379 = vpack.c.b16 %v2377, %v2376
      %v2383 = vsel %vm644, %v2364, 0
      %2385 = vmatprep.subr.bf16.mxu0 0
      %2386 = vmatpush1.bf16.msra.mxu0 %v2378
      %2387 = vmatprep.subr.bf16.mxu0 0
      %2388 = vmatpush1.bf16.msra.mxu0 %v2379
      %2389 = vmatprep.subr.bf16.mxu0 0
      %2390 = vmatpush1.bf16.msra.mxu0 0
      %2391 = vmatprep.subr.bf16.mxu0 0
      %2392 = vmatpush1.bf16.msra.mxu0 0
      %2393 = vmatprep.subr.bf16.mxu0 0
      %2394 = vmatpush1.bf16.msra.mxu0 0
      %2395 = vmatprep.subr.bf16.mxu0 0
      %2396 = vmatpush1.bf16.msra.mxu0 0
      %2397 = vmatprep.subr.bf16.mxu0 0
      %2398 = vmatpush1.bf16.msra.mxu0 0
      %2399 = vmatprep.subr.bf16.mxu0 0
      %2400 = vmatpush1.bf16.msra.mxu0 0
      %2401 = vmatprep.subr.bf16.mxu0 0
      %2402 = vmatpush1.bf16.msra.mxu0 0
      %2403 = vmatprep.subr.bf16.mxu0 0
      %2404 = vmatpush1.bf16.msra.mxu0 0
      %2405 = vmatprep.subr.bf16.mxu0 0
      %2406 = vmatpush1.bf16.msra.mxu0 0
      %2407 = vmatprep.subr.bf16.mxu0 0
      %2408 = vmatpush1.bf16.msra.mxu0 0
      %2409 = vmatprep.subr.bf16.mxu0 0
      %2410 = vmatpush1.bf16.msra.mxu0 0
      %2411 = vmatprep.subr.bf16.mxu0 0
      %2412 = vmatpush1.bf16.msra.mxu0 0
      %2413 = vmatprep.subr.bf16.mxu0 0
      %2414 = vmatpush1.bf16.msra.mxu0 0
      %2415 = vmatprep.subr.bf16.mxu0 0
      %2416 = vmatpush1.bf16.msra.mxu0 0
      %2417 = vmatprep.mubr.bf16.mxu0 0
      %2418 = vmatmul.mubr.bf16.gmra.mrb[0].mxu0 %v2383
      %v2419 = vpop.f32.mrb[0].mxu0
      %v2420 = vadd.f32 %v2369, %v2419
      %v2421 = vpop.f32.mrb[0].mxu0
      %v2422 = vpop.f32.mrb[0].mxu0
      %v2423 = vpop.f32.mrb[0].mxu0
      %2424 = vdwg.mxu0
      %v2425 = vtanh.pop %v2420
      %v2426 = vld [vmem:[%s18] sm:$0x1]
      %v2427 = vmul.f32 %v2425, %v2426
      %vm2428 = vcmask 253952
      %v2429 = vsel %vm2428, %v2427, 0.0
      %2430 = vadd.xlane.f32.xlu0 %v2429
      %v2431 = vpop.xlane.xlu0 %2430
      %v2432 = vld [vmem:[#allocation2] sm:$0x1]
      %v2433 = vadd.f32 %v2431, %v2432
      %vm2434 = vcmask 0
      %2435 = vst.msk [vmem:[%s638] sm:$0x1] %vm2434, %v2433
      %p2436 = scmp.lt.s32.totalorder %s33, 1
      %s2437 = scalar_select %p2436, %s33, 1
      %s2438 = scalar_lea.vmem %s20, %s2437
      // Predicated region
      $region101: #{cross_encoder_forward.2} parent=99 // pred_check
        %p2439 = pneg %p481
      $region102: #{cross_encoder_forward.2} parent=99 // pred_check_branch
        %2441 = sbr.rel (%p2439) target = $region104
      $region103: #{cross_encoder_forward.2} parent=99 // pred_region
        _
      $region104: #{cross_encoder_forward.2} parent=99 // pred_fallthru
        _
    $region100: #{cross_encoder_forward.2} parent=5 // pred_fallthru
      _
    %p2442 = scmp.le.s32.totalorder 2, %s28
    // Predicated region
    $region105: #{cross_encoder_forward.2} parent=5 // pred_check
      %p2443 = pneg %p2442
    $region106: #{cross_encoder_forward.2} parent=5 // pred_check_branch
      %2445 = sbr.rel (%p2443) target = $region108
    $region107: #{cross_encoder_forward.2} parent=5 // pred_region
      %s2446 = ssub.s32 %s28, 2
      // Predicated region
      $region109: #{cross_encoder_forward.2} parent=107 // pred_check
        %p2447 = pneg %p487
      $region110: #{cross_encoder_forward.2} parent=107 // pred_check_branch
        %2449 = sbr.rel (%p2447) target = $region112
      $region111: #{cross_encoder_forward.2} parent=107 // pred_region
        %p2450 = scmp.lt.s32.totalorder %s34, 1
        %s2451 = scalar_select %p2450, %s34, 1
        %s2452 = scalar_lea.vmem %s20, %s2451
      $region112: #{cross_encoder_forward.2} parent=107 // pred_fallthru
        _
    $region108: #{cross_encoder_forward.2} parent=5 // pred_fallthru
      _
  $region6: #{cross_encoder_forward.2} parent=0 // loop_footer
    %s32 = sadd.s32 1, %s28
  $region7: #{cross_encoder_forward.2} parent=0 // loop_footer_branch
    %27 = sbr.rel target = $region3
  $region8: #{cross_encoder_forward.2} parent=0 // loop_exit
    _

</llo_original>
